<compile_context>
chip_gen: v5e
topology: v5e:2x2
jax: 0.10.0
libtpu: 0.0.40
codegen_flags: <defaults>
</compile_context>

<pallas_src>
import functools

import numpy as np

import jax
import jax.numpy as jnp
from jax import lax
from jax.experimental import pallas as pl
from jax.experimental.pallas import tpu as pltpu

COUT_PAD = 16   # Cout=10 padded to 16 (two f32 sublane tiles) for channel-major output.


def _one_level(x_ref, pw_ref, w_ref, b_ref, m_ref, o_ref, *, H, W, C):
    """abs(conv3x3_same(tanh(1x1_proj(x))) + b) for one pyramid level.

    x_ref : (1, Cin, H*W)        raw (pooled) image, channel-major, f32
    pw_ref: (C, Cin)             1x1 projection weight (backbone stand-in), f32
    w_ref : (9*COUT_PAD, C)      conv weight, stacked per tap (dy-major), bf16
    b_ref : (COUT_PAD, 1)        bias (Cout padded), f32
    m_ref : (9, H*W)             per-tap border masks (SAME padding), bf16
    o_ref : (1, COUT_PAD, H*W)   |conv + b|, channel-major (already NCHW-shaped)
    """
    HW = H * W
    x = x_ref[0]                               # (Cin, HW) f32
    cin = x.shape[0]

    # Backbone stand-in: 1x1 projection as Cin broadcast FMAs on the VPU
    # (a K=Cin=3 matmul would give <3% MXU fill), then tanh on the EUP (f32).
    feat = pw_ref[:, 0:1] * x[0:1, :]
    for c in range(1, cin):
        feat = feat + pw_ref[:, c:c + 1] * x[c:c + 1, :]
    feat = jnp.tanh(feat)                      # (C, HW) f32

    # 3x3 SAME conv, channel-major: each tap is a lane-roll of the flattened
    # spatial axis (XLU) + border-mask multiply (VPU) + one accumulating MXU
    # matmul.  No im2col scratch, no slice/reshape/concat relayout.
    acc = jnp.zeros((COUT_PAD, HW), jnp.float32)
    t = 0
    for dy in (-1, 0, 1):
        for dx in (-1, 0, 1):
            s = dy * W + dx                    # flattened spatial tap offset
            if s == 0:
                tap = feat.astype(jnp.bfloat16)
            else:
                rolled = pltpu.roll(feat, (-s) % HW, axis=1)
                tap = (rolled * m_ref[t:t + 1, :]).astype(jnp.bfloat16)
            w_tap = w_ref[t * COUT_PAD:(t + 1) * COUT_PAD, :]      # (16, C) bf16
            acc = acc + jnp.dot(w_tap, tap, preferred_element_type=jnp.float32)
            t += 1

    o_ref[0] = jnp.abs(acc + b_ref[...])       # bias + abs epilogue, f32


def _affinity_kernel(*refs, meta):
    """All pyramid levels for one batch element, in a single grid step."""
    L = len(meta)
    x_refs, pw_refs, w_refs, b_refs, m_refs = (
        refs[i * L:(i + 1) * L] for i in range(5))
    o_refs = refs[5 * L:6 * L]
    for lvl, (h, w, cf) in enumerate(meta):
        _one_level(x_refs[lvl], pw_refs[lvl], w_refs[lvl], b_refs[lvl],
                   m_refs[lvl], o_refs[lvl], H=h, W=w, C=cf)


def _border_masks(H, W):
    """(9, H*W) bf16 masks zeroing out-of-image taps for SAME padding."""
    m = np.ones((9, H, W), np.float32)
    t = 0
    for dy in (-1, 0, 1):
        for dx in (-1, 0, 1):
            if dy == -1:
                m[t, 0, :] = 0.0
            if dy == 1:
                m[t, H - 1, :] = 0.0
            if dx == -1:
                m[t, :, 0] = 0.0
            if dx == 1:
                m[t, :, W - 1] = 0.0
            t += 1
    return jnp.asarray(m.reshape(9, H * W), dtype=jnp.bfloat16)


def affinity_net_forward(ipt_nchw, proj_ws, conv_ws, conv_bs):
    """AffinityNet.forward: multi-level features -> [abs(conv_out_lvl(f))]."""
    N, Cin, _, _ = ipt_nchw.shape
    L = len(proj_ws)
    cout = conv_ws[0].shape[0]
    assert cout <= COUT_PAD

    xs, pws, ws, bs, ms, metas, out_shapes = [], [], [], [], [], [], []
    x = ipt_nchw
    for lvl in range(L):
        bn, bc, h, w = x.shape
        cf = proj_ws[lvl].shape[0]
        xs.append(x.reshape(bn, bc, h * w))           # channel-major: free reshape of NCHW
        pws.append(proj_ws[lvl].astype(jnp.float32))
        # OIHW -> per-tap stacked (9*COUT_PAD, C_feat); Cout padded 10->16 on sublanes.
        w9 = jnp.transpose(conv_ws[lvl], (2, 3, 0, 1)).reshape(9, cout, cf)
        wp = jnp.zeros((9, COUT_PAD, cf), jnp.float32).at[:, :cout, :].set(w9)
        ws.append(wp.reshape(9 * COUT_PAD, cf).astype(jnp.bfloat16))
        bs.append(jnp.zeros((COUT_PAD, 1), jnp.float32).at[:cout, 0].set(conv_bs[lvl]))
        ms.append(_border_masks(h, w))
        metas.append((h, w, cf))
        out_shapes.append(jax.ShapeDtypeStruct((bn, COUT_PAD, h * w), jnp.float32))
        if lvl + 1 < L:
            # Backbone stand-in glue: 2x average-pool pyramid on the raw image.
            x = x.reshape(bn, bc, h // 2, 2, w // 2, 2).mean(axis=(3, 5))

    kernel = functools.partial(_affinity_kernel, meta=tuple(metas))

    in_specs = (
        [pl.BlockSpec((1, Cin, h * w), lambda i: (i, 0, 0)) for (h, w, cf) in metas]
        + [pl.BlockSpec((cf, Cin), lambda i: (0, 0)) for (h, w, cf) in metas]
        + [pl.BlockSpec((9 * COUT_PAD, cf), lambda i: (0, 0)) for (h, w, cf) in metas]
        + [pl.BlockSpec((COUT_PAD, 1), lambda i: (0, 0)) for _ in metas]
        + [pl.BlockSpec((9, h * w), lambda i: (0, 0)) for (h, w, cf) in metas]
    )
    out_specs = [pl.BlockSpec((1, COUT_PAD, h * w), lambda i: (i, 0, 0))
                 for (h, w, cf) in metas]

    outs = pl.pallas_call(
        kernel,
        out_shape=tuple(out_shapes),
        grid_spec=pltpu.PrefetchScalarGridSpec(
            num_scalar_prefetch=0,
            grid=(N,),                 # batch -> feeds both v7x TensorCores
            in_specs=in_specs,
            out_specs=out_specs,
        ),
        compiler_params=pltpu.CompilerParams(
            dimension_semantics=("parallel",),
            vmem_limit_bytes=32 * 1024 * 1024,
        ),
    )(*(xs + pws + ws + bs + ms))

    # Slice away the sublane padding (16 -> 10 channels); output is already NCHW.
    return [o[:, :cout, :].reshape(o.shape[0], cout, h, w)
            for (h, w, cf), o in zip(metas, outs)]


def _reference_level(x_nchw, proj_w, conv_w_oihw, conv_b):
    """Plain-XLA reference for one level (f32 throughout), NCHW output."""
    feat = jnp.tanh(jnp.einsum('dc,nchw->ndhw', proj_w, x_nchw))
    y = lax.conv_general_dilated(
        feat, conv_w_oihw, window_strides=(1, 1), padding='SAME',
        dimension_numbers=('NCHW', 'OIHW', 'NCHW'))
    return jnp.abs(y + conv_b[None, :, None, None])


if __name__ == "__main__":
    key = jax.random.PRNGKey(0)

    # Small, module-consistent shapes (2-level backbone pyramid; H*W per level
    # kept a multiple of 128 so loads/rolls/stores stay lane-dense).
    N, C_IN, H, W = 2, 3, 32, 32
    num_bp_layers = 1
    out_channels = num_bp_layers * 2 * 5          # = 10, as in AffinityNet.__init__
    net_out_channels = [16, 32]                   # backbone feature channels per level

    keys = jax.random.split(key, 1 + 3 * len(net_out_channels))
    ipt = jax.random.normal(keys[0], (N, C_IN, H, W), jnp.float32)

    proj_ws, conv_ws, conv_bs = [], [], []
    for lvl, cf in enumerate(net_out_channels):
        k_p, k_w, k_b = keys[1 + 3 * lvl: 4 + 3 * lvl]
        proj_ws.append(0.1 * jax.random.normal(k_p, (cf, C_IN), jnp.float32))
        conv_ws.append(jax.random.normal(k_w, (out_channels, cf, 3, 3),
                                         jnp.float32) / jnp.sqrt(9.0 * cf))
        conv_bs.append(0.01 * jax.random.normal(k_b, (out_channels,), jnp.float32))

    fwd = jax.jit(affinity_net_forward)
    affinities = fwd(ipt, proj_ws, conv_ws, conv_bs)
    for a in affinities:
        jax.block_until_ready(a)

    # Sanity-check the fused Pallas path against an XLA reference.
    # (Kernel feeds the MXU bf16 with f32 accumulation -> relaxed tolerance.)
    x = ipt
    for proj_w, conv_w, conv_b, a in zip(proj_ws, conv_ws, conv_bs, affinities):
        ref = _reference_level(x, proj_w, conv_w, conv_b)
        assert a.shape == ref.shape, (a.shape, ref.shape)
        err = float(jnp.max(jnp.abs(a - ref)))
        assert err < 5e-2, err
        bn, bc, hh, ww = x.shape
        x = x.reshape(bn, bc, hh // 2, 2, ww // 2, 2).mean(axis=(3, 5))

    print("KERNEL_OK")
</pallas_src>

<mosaic_0001>
module attributes {stable_mosaic.version = 11 : i64} {
  func.func @_affinity_kernel(%arg0: i32, %arg1: memref<1x3x1024xf32, #tpu.memory_space<vmem>>, %arg2: memref<1x3x256xf32, #tpu.memory_space<vmem>>, %arg3: memref<16x3xf32, #tpu.memory_space<vmem>>, %arg4: memref<32x3xf32, #tpu.memory_space<vmem>>, %arg5: memref<144x16xbf16, #tpu.memory_space<vmem>>, %arg6: memref<144x32xbf16, #tpu.memory_space<vmem>>, %arg7: memref<16x1xf32, #tpu.memory_space<vmem>>, %arg8: memref<16x1xf32, #tpu.memory_space<vmem>>, %arg9: memref<9x1024xbf16, #tpu.memory_space<vmem>>, %arg10: memref<9x256xbf16, #tpu.memory_space<vmem>>, %arg11: memref<1x16x1024xf32, #tpu.memory_space<vmem>>, %arg12: memref<1x16x256xf32, #tpu.memory_space<vmem>>) attributes {dimension_semantics = [#tpu.dimension_semantics<parallel>], iteration_bounds = array<i64: 2>, scalar_prefetch = 0 : i64, scratch_operands = 0 : i64, tpu.core_type = #tpu.core_type<tc>, window_params = [{transform_indices = @transform_0, window_bounds = array<i64: 1, 3, 1024>}, {transform_indices = @transform_1, window_bounds = array<i64: 1, 3, 256>}, {pipeline_mode = #tpu.pipeline_mode<synchronous>, transform_indices = @transform_2, window_bounds = array<i64: 16, 3>}, {pipeline_mode = #tpu.pipeline_mode<synchronous>, transform_indices = @transform_3, window_bounds = array<i64: 32, 3>}, {pipeline_mode = #tpu.pipeline_mode<synchronous>, transform_indices = @transform_4, window_bounds = array<i64: 144, 16>}, {pipeline_mode = #tpu.pipeline_mode<synchronous>, transform_indices = @transform_5, window_bounds = array<i64: 144, 32>}, {pipeline_mode = #tpu.pipeline_mode<synchronous>, transform_indices = @transform_6, window_bounds = array<i64: 16, 1>}, {pipeline_mode = #tpu.pipeline_mode<synchronous>, transform_indices = @transform_7, window_bounds = array<i64: 16, 1>}, {pipeline_mode = #tpu.pipeline_mode<synchronous>, transform_indices = @transform_8, window_bounds = array<i64: 9, 1024>}, {pipeline_mode = #tpu.pipeline_mode<synchronous>, transform_indices = @transform_9, window_bounds = array<i64: 9, 256>}, {transform_indices = @transform_10, window_bounds = array<i64: 1, 16, 1024>}, {transform_indices = @transform_11, window_bounds = array<i64: 1, 16, 256>}]} {
    %c0 = arith.constant 0 : index
    %c0_0 = arith.constant 0 : index
    %c0_1 = arith.constant 0 : index
    %0 = vector.load %arg1[%c0, %c0_0, %c0_1] : memref<1x3x1024xf32, #tpu.memory_space<vmem>>, vector<1x3x1024xf32>
    %1 = vector.shape_cast %0 : vector<1x3x1024xf32> to vector<3x1024xf32>
    %c0_2 = arith.constant 0 : index
    %c0_3 = arith.constant 0 : index
    %2 = vector.load %arg3[%c0_2, %c0_3] : memref<16x3xf32, #tpu.memory_space<vmem>>, vector<16x1xf32>
    %3 = vector.extract_strided_slice %1 {offsets = [0, 0], sizes = [1, 1024], strides = [1, 1]} : vector<3x1024xf32> to vector<1x1024xf32>
    %4 = vector.broadcast %2 : vector<16x1xf32> to vector<16x1024xf32>
    %5 = vector.broadcast %3 : vector<1x1024xf32> to vector<16x1024xf32>
    %6 = arith.mulf %4, %5 : vector<16x1024xf32>
    %c0_4 = arith.constant 0 : index
    %c1 = arith.constant 1 : index
    %7 = vector.load %arg3[%c0_4, %c1] : memref<16x3xf32, #tpu.memory_space<vmem>>, vector<16x1xf32>
    %8 = vector.extract_strided_slice %1 {offsets = [1, 0], sizes = [1, 1024], strides = [1, 1]} : vector<3x1024xf32> to vector<1x1024xf32>
    %9 = vector.broadcast %7 : vector<16x1xf32> to vector<16x1024xf32>
    %10 = vector.broadcast %8 : vector<1x1024xf32> to vector<16x1024xf32>
    %11 = arith.mulf %9, %10 : vector<16x1024xf32>
    %12 = arith.addf %6, %11 : vector<16x1024xf32>
    %c0_5 = arith.constant 0 : index
    %c2 = arith.constant 2 : index
    %13 = vector.load %arg3[%c0_5, %c2] : memref<16x3xf32, #tpu.memory_space<vmem>>, vector<16x1xf32>
    %14 = vector.extract_strided_slice %1 {offsets = [2, 0], sizes = [1, 1024], strides = [1, 1]} : vector<3x1024xf32> to vector<1x1024xf32>
    %15 = vector.broadcast %13 : vector<16x1xf32> to vector<16x1024xf32>
    %16 = vector.broadcast %14 : vector<1x1024xf32> to vector<16x1024xf32>
    %17 = arith.mulf %15, %16 : vector<16x1024xf32>
    %18 = arith.addf %12, %17 : vector<16x1024xf32>
    %19 = math.tanh %18 : vector<16x1024xf32>
    %cst = arith.constant 0.000000e+00 : f32
    %20 = vector.broadcast %cst : f32 to vector<16x1024xf32>
    %c33_i32 = arith.constant 33 : i32
    %21 = tpu.dynamic_rotate %19 by %c33_i32 dim 1 : vector<16x1024xf32>, i32 -> vector<16x1024xf32>
    %c0_6 = arith.constant 0 : index
    %c0_7 = arith.constant 0 : index
    %22 = vector.load %arg9[%c0_6, %c0_7] : memref<9x1024xbf16, #tpu.memory_space<vmem>>, vector<1x1024xbf16>
    %23 = arith.extf %22 : vector<1x1024xbf16> to vector<1x1024xf32>
    %24 = vector.broadcast %23 : vector<1x1024xf32> to vector<16x1024xf32>
    %25 = arith.mulf %21, %24 : vector<16x1024xf32>
    %26 = arith.truncf %25 : vector<16x1024xf32> to vector<16x1024xbf16>
    %c0_8 = arith.constant 0 : index
    %c0_9 = arith.constant 0 : index
    %27 = vector.load %arg5[%c0_8, %c0_9] : memref<144x16xbf16, #tpu.memory_space<vmem>>, vector<16x16xbf16>
    %cst_10 = arith.constant dense<0.000000e+00> : vector<16x1024xf32>
    %28 = tpu.matmul %27, %26, %cst_10 {dimension_numbers = #tpu.dot_dimension_numbers<[1], [0], [0], [1], [0, 0, 1, 1], [], []>} : vector<16x16xbf16>, vector<16x1024xbf16>, vector<16x1024xf32> -> vector<16x1024xf32>
    %29 = arith.addf %20, %28 : vector<16x1024xf32>
    %c32_i32 = arith.constant 32 : i32
    %30 = tpu.dynamic_rotate %19 by %c32_i32 dim 1 : vector<16x1024xf32>, i32 -> vector<16x1024xf32>
    %c1_11 = arith.constant 1 : index
    %c0_12 = arith.constant 0 : index
    %31 = vector.load %arg9[%c1_11, %c0_12] : memref<9x1024xbf16, #tpu.memory_space<vmem>>, vector<1x1024xbf16>
    %32 = arith.extf %31 : vector<1x1024xbf16> to vector<1x1024xf32>
    %33 = vector.broadcast %32 : vector<1x1024xf32> to vector<16x1024xf32>
    %34 = arith.mulf %30, %33 : vector<16x1024xf32>
    %35 = arith.truncf %34 : vector<16x1024xf32> to vector<16x1024xbf16>
    %c16 = arith.constant 16 : index
    %c0_13 = arith.constant 0 : index
    %36 = vector.load %arg5[%c16, %c0_13] : memref<144x16xbf16, #tpu.memory_space<vmem>>, vector<16x16xbf16>
    %cst_14 = arith.constant dense<0.000000e+00> : vector<16x1024xf32>
    %37 = tpu.matmul %36, %35, %cst_14 {dimension_numbers = #tpu.dot_dimension_numbers<[1], [0], [0], [1], [0, 0, 1, 1], [], []>} : vector<16x16xbf16>, vector<16x1024xbf16>, vector<16x1024xf32> -> vector<16x1024xf32>
    %38 = arith.addf %29, %37 : vector<16x1024xf32>
    %c31_i32 = arith.constant 31 : i32
    %39 = tpu.dynamic_rotate %19 by %c31_i32 dim 1 : vector<16x1024xf32>, i32 -> vector<16x1024xf32>
    %c2_15 = arith.constant 2 : index
    %c0_16 = arith.constant 0 : index
    %40 = vector.load %arg9[%c2_15, %c0_16] : memref<9x1024xbf16, #tpu.memory_space<vmem>>, vector<1x1024xbf16>
    %41 = arith.extf %40 : vector<1x1024xbf16> to vector<1x1024xf32>
    %42 = vector.broadcast %41 : vector<1x1024xf32> to vector<16x1024xf32>
    %43 = arith.mulf %39, %42 : vector<16x1024xf32>
    %44 = arith.truncf %43 : vector<16x1024xf32> to vector<16x1024xbf16>
    %c32 = arith.constant 32 : index
    %c0_17 = arith.constant 0 : index
    %45 = vector.load %arg5[%c32, %c0_17] : memref<144x16xbf16, #tpu.memory_space<vmem>>, vector<16x16xbf16>
    %cst_18 = arith.constant dense<0.000000e+00> : vector<16x1024xf32>
    %46 = tpu.matmul %45, %44, %cst_18 {dimension_numbers = #tpu.dot_dimension_numbers<[1], [0], [0], [1], [0, 0, 1, 1], [], []>} : vector<16x16xbf16>, vector<16x1024xbf16>, vector<16x1024xf32> -> vector<16x1024xf32>
    %47 = arith.addf %38, %46 : vector<16x1024xf32>
    %c1_i32 = arith.constant 1 : i32
    %48 = tpu.dynamic_rotate %19 by %c1_i32 dim 1 : vector<16x1024xf32>, i32 -> vector<16x1024xf32>
    %c3 = arith.constant 3 : index
    %c0_19 = arith.constant 0 : index
    %49 = vector.load %arg9[%c3, %c0_19] : memref<9x1024xbf16, #tpu.memory_space<vmem>>, vector<1x1024xbf16>
    %50 = arith.extf %49 : vector<1x1024xbf16> to vector<1x1024xf32>
    %51 = vector.broadcast %50 : vector<1x1024xf32> to vector<16x1024xf32>
    %52 = arith.mulf %48, %51 : vector<16x1024xf32>
    %53 = arith.truncf %52 : vector<16x1024xf32> to vector<16x1024xbf16>
    %c48 = arith.constant 48 : index
    %c0_20 = arith.constant 0 : index
    %54 = vector.load %arg5[%c48, %c0_20] : memref<144x16xbf16, #tpu.memory_space<vmem>>, vector<16x16xbf16>
    %cst_21 = arith.constant dense<0.000000e+00> : vector<16x1024xf32>
    %55 = tpu.matmul %54, %53, %cst_21 {dimension_numbers = #tpu.dot_dimension_numbers<[1], [0], [0], [1], [0, 0, 1, 1], [], []>} : vector<16x16xbf16>, vector<16x1024xbf16>, vector<16x1024xf32> -> vector<16x1024xf32>
    %56 = arith.addf %47, %55 : vector<16x1024xf32>
    %57 = arith.truncf %19 : vector<16x1024xf32> to vector<16x1024xbf16>
    %c64 = arith.constant 64 : index
    %c0_22 = arith.constant 0 : index
    %58 = vector.load %arg5[%c64, %c0_22] : memref<144x16xbf16, #tpu.memory_space<vmem>>, vector<16x16xbf16>
    %cst_23 = arith.constant dense<0.000000e+00> : vector<16x1024xf32>
    %59 = tpu.matmul %58, %57, %cst_23 {dimension_numbers = #tpu.dot_dimension_numbers<[1], [0], [0], [1], [0, 0, 1, 1], [], []>} : vector<16x16xbf16>, vector<16x1024xbf16>, vector<16x1024xf32> -> vector<16x1024xf32>
    %60 = arith.addf %56, %59 : vector<16x1024xf32>
    %c1023_i32 = arith.constant 1023 : i32
    %61 = tpu.dynamic_rotate %19 by %c1023_i32 dim 1 : vector<16x1024xf32>, i32 -> vector<16x1024xf32>
    %c5 = arith.constant 5 : index
    %c0_24 = arith.constant 0 : index
    %62 = vector.load %arg9[%c5, %c0_24] : memref<9x1024xbf16, #tpu.memory_space<vmem>>, vector<1x1024xbf16>
    %63 = arith.extf %62 : vector<1x1024xbf16> to vector<1x1024xf32>
    %64 = vector.broadcast %63 : vector<1x1024xf32> to vector<16x1024xf32>
    %65 = arith.mulf %61, %64 : vector<16x1024xf32>
    %66 = arith.truncf %65 : vector<16x1024xf32> to vector<16x1024xbf16>
    %c80 = arith.constant 80 : index
    %c0_25 = arith.constant 0 : index
    %67 = vector.load %arg5[%c80, %c0_25] : memref<144x16xbf16, #tpu.memory_space<vmem>>, vector<16x16xbf16>
    %cst_26 = arith.constant dense<0.000000e+00> : vector<16x1024xf32>
    %68 = tpu.matmul %67, %66, %cst_26 {dimension_numbers = #tpu.dot_dimension_numbers<[1], [0], [0], [1], [0, 0, 1, 1], [], []>} : vector<16x16xbf16>, vector<16x1024xbf16>, vector<16x1024xf32> -> vector<16x1024xf32>
    %69 = arith.addf %60, %68 : vector<16x1024xf32>
    %c993_i32 = arith.constant 993 : i32
    %70 = tpu.dynamic_rotate %19 by %c993_i32 dim 1 : vector<16x1024xf32>, i32 -> vector<16x1024xf32>
    %c6 = arith.constant 6 : index
    %c0_27 = arith.constant 0 : index
    %71 = vector.load %arg9[%c6, %c0_27] : memref<9x1024xbf16, #tpu.memory_space<vmem>>, vector<1x1024xbf16>
    %72 = arith.extf %71 : vector<1x1024xbf16> to vector<1x1024xf32>
    %73 = vector.broadcast %72 : vector<1x1024xf32> to vector<16x1024xf32>
    %74 = arith.mulf %70, %73 : vector<16x1024xf32>
    %75 = arith.truncf %74 : vector<16x1024xf32> to vector<16x1024xbf16>
    %c96 = arith.constant 96 : index
    %c0_28 = arith.constant 0 : index
    %76 = vector.load %arg5[%c96, %c0_28] : memref<144x16xbf16, #tpu.memory_space<vmem>>, vector<16x16xbf16>
    %cst_29 = arith.constant dense<0.000000e+00> : vector<16x1024xf32>
    %77 = tpu.matmul %76, %75, %cst_29 {dimension_numbers = #tpu.dot_dimension_numbers<[1], [0], [0], [1], [0, 0, 1, 1], [], []>} : vector<16x16xbf16>, vector<16x1024xbf16>, vector<16x1024xf32> -> vector<16x1024xf32>
    %78 = arith.addf %69, %77 : vector<16x1024xf32>
    %c992_i32 = arith.constant 992 : i32
    %79 = tpu.dynamic_rotate %19 by %c992_i32 dim 1 : vector<16x1024xf32>, i32 -> vector<16x1024xf32>
    %c7 = arith.constant 7 : index
    %c0_30 = arith.constant 0 : index
    %80 = vector.load %arg9[%c7, %c0_30] : memref<9x1024xbf16, #tpu.memory_space<vmem>>, vector<1x1024xbf16>
    %81 = arith.extf %80 : vector<1x1024xbf16> to vector<1x1024xf32>
    %82 = vector.broadcast %81 : vector<1x1024xf32> to vector<16x1024xf32>
    %83 = arith.mulf %79, %82 : vector<16x1024xf32>
    %84 = arith.truncf %83 : vector<16x1024xf32> to vector<16x1024xbf16>
    %c112 = arith.constant 112 : index
    %c0_31 = arith.constant 0 : index
    %85 = vector.load %arg5[%c112, %c0_31] : memref<144x16xbf16, #tpu.memory_space<vmem>>, vector<16x16xbf16>
    %cst_32 = arith.constant dense<0.000000e+00> : vector<16x1024xf32>
    %86 = tpu.matmul %85, %84, %cst_32 {dimension_numbers = #tpu.dot_dimension_numbers<[1], [0], [0], [1], [0, 0, 1, 1], [], []>} : vector<16x16xbf16>, vector<16x1024xbf16>, vector<16x1024xf32> -> vector<16x1024xf32>
    %87 = arith.addf %78, %86 : vector<16x1024xf32>
    %c991_i32 = arith.constant 991 : i32
    %88 = tpu.dynamic_rotate %19 by %c991_i32 dim 1 : vector<16x1024xf32>, i32 -> vector<16x1024xf32>
    %c8 = arith.constant 8 : index
    %c0_33 = arith.constant 0 : index
    %89 = vector.load %arg9[%c8, %c0_33] : memref<9x1024xbf16, #tpu.memory_space<vmem>>, vector<1x1024xbf16>
    %90 = arith.extf %89 : vector<1x1024xbf16> to vector<1x1024xf32>
    %91 = vector.broadcast %90 : vector<1x1024xf32> to vector<16x1024xf32>
    %92 = arith.mulf %88, %91 : vector<16x1024xf32>
    %93 = arith.truncf %92 : vector<16x1024xf32> to vector<16x1024xbf16>
    %c128 = arith.constant 128 : index
    %c0_34 = arith.constant 0 : index
    %94 = vector.load %arg5[%c128, %c0_34] : memref<144x16xbf16, #tpu.memory_space<vmem>>, vector<16x16xbf16>
    %cst_35 = arith.constant dense<0.000000e+00> : vector<16x1024xf32>
    %95 = tpu.matmul %94, %93, %cst_35 {dimension_numbers = #tpu.dot_dimension_numbers<[1], [0], [0], [1], [0, 0, 1, 1], [], []>} : vector<16x16xbf16>, vector<16x1024xbf16>, vector<16x1024xf32> -> vector<16x1024xf32>
    %96 = arith.addf %87, %95 : vector<16x1024xf32>
    %c0_36 = arith.constant 0 : index
    %c0_37 = arith.constant 0 : index
    %97 = vector.load %arg7[%c0_36, %c0_37] : memref<16x1xf32, #tpu.memory_space<vmem>>, vector<16x1xf32>
    %98 = vector.broadcast %97 : vector<16x1xf32> to vector<16x1024xf32>
    %99 = arith.addf %96, %98 : vector<16x1024xf32>
    %100 = math.absf %99 : vector<16x1024xf32>
    %c0_38 = arith.constant 0 : index
    %c0_39 = arith.constant 0 : index
    %c0_40 = arith.constant 0 : index
    %101 = vector.load %arg11[%c0_38, %c0_39, %c0_40] : memref<1x16x1024xf32, #tpu.memory_space<vmem>>, vector<1x16x1024xf32>
    %102 = vector.shape_cast %101 : vector<1x16x1024xf32> to vector<16x1024xf32>
    %103 = vector.shape_cast %100 : vector<16x1024xf32> to vector<1x16x1024xf32>
    tpu.vector_store %arg11[%c0_38, %c0_39, %c0_40], %103 {strides = array<i32>} : memref<1x16x1024xf32, #tpu.memory_space<vmem>>, vector<1x16x1024xf32>,
    %c0_41 = arith.constant 0 : index
    %c0_42 = arith.constant 0 : index
    %c0_43 = arith.constant 0 : index
    %104 = vector.load %arg2[%c0_41, %c0_42, %c0_43] : memref<1x3x256xf32, #tpu.memory_space<vmem>>, vector<1x3x256xf32>
    %105 = vector.shape_cast %104 : vector<1x3x256xf32> to vector<3x256xf32>
    %c0_44 = arith.constant 0 : index
    %c0_45 = arith.constant 0 : index
    %106 = vector.load %arg4[%c0_44, %c0_45] : memref<32x3xf32, #tpu.memory_space<vmem>>, vector<32x1xf32>
    %107 = vector.extract_strided_slice %105 {offsets = [0, 0], sizes = [1, 256], strides = [1, 1]} : vector<3x256xf32> to vector<1x256xf32>
    %108 = vector.broadcast %106 : vector<32x1xf32> to vector<32x256xf32>
    %109 = vector.broadcast %107 : vector<1x256xf32> to vector<32x256xf32>
    %110 = arith.mulf %108, %109 : vector<32x256xf32>
    %c0_46 = arith.constant 0 : index
    %c1_47 = arith.constant 1 : index
    %111 = vector.load %arg4[%c0_46, %c1_47] : memref<32x3xf32, #tpu.memory_space<vmem>>, vector<32x1xf32>
    %112 = vector.extract_strided_slice %105 {offsets = [1, 0], sizes = [1, 256], strides = [1, 1]} : vector<3x256xf32> to vector<1x256xf32>
    %113 = vector.broadcast %111 : vector<32x1xf32> to vector<32x256xf32>
    %114 = vector.broadcast %112 : vector<1x256xf32> to vector<32x256xf32>
    %115 = arith.mulf %113, %114 : vector<32x256xf32>
    %116 = arith.addf %110, %115 : vector<32x256xf32>
    %c0_48 = arith.constant 0 : index
    %c2_49 = arith.constant 2 : index
    %117 = vector.load %arg4[%c0_48, %c2_49] : memref<32x3xf32, #tpu.memory_space<vmem>>, vector<32x1xf32>
    %118 = vector.extract_strided_slice %105 {offsets = [2, 0], sizes = [1, 256], strides = [1, 1]} : vector<3x256xf32> to vector<1x256xf32>
    %119 = vector.broadcast %117 : vector<32x1xf32> to vector<32x256xf32>
    %120 = vector.broadcast %118 : vector<1x256xf32> to vector<32x256xf32>
    %121 = arith.mulf %119, %120 : vector<32x256xf32>
    %122 = arith.addf %116, %121 : vector<32x256xf32>
    %123 = math.tanh %122 : vector<32x256xf32>
    %cst_50 = arith.constant 0.000000e+00 : f32
    %124 = vector.broadcast %cst_50 : f32 to vector<16x256xf32>
    %c17_i32 = arith.constant 17 : i32
    %125 = tpu.dynamic_rotate %123 by %c17_i32 dim 1 : vector<32x256xf32>, i32 -> vector<32x256xf32>
    %c0_51 = arith.constant 0 : index
    %c0_52 = arith.constant 0 : index
    %126 = vector.load %arg10[%c0_51, %c0_52] : memref<9x256xbf16, #tpu.memory_space<vmem>>, vector<1x256xbf16>
    %127 = arith.extf %126 : vector<1x256xbf16> to vector<1x256xf32>
    %128 = vector.broadcast %127 : vector<1x256xf32> to vector<32x256xf32>
    %129 = arith.mulf %125, %128 : vector<32x256xf32>
    %130 = arith.truncf %129 : vector<32x256xf32> to vector<32x256xbf16>
    %c0_53 = arith.constant 0 : index
    %c0_54 = arith.constant 0 : index
    %131 = vector.load %arg6[%c0_53, %c0_54] : memref<144x32xbf16, #tpu.memory_space<vmem>>, vector<16x32xbf16>
    %cst_55 = arith.constant dense<0.000000e+00> : vector<16x256xf32>
    %132 = tpu.matmul %131, %130, %cst_55 {dimension_numbers = #tpu.dot_dimension_numbers<[1], [0], [0], [1], [0, 0, 1, 1], [], []>} : vector<16x32xbf16>, vector<32x256xbf16>, vector<16x256xf32> -> vector<16x256xf32>
    %133 = arith.addf %124, %132 : vector<16x256xf32>
    %c16_i32 = arith.constant 16 : i32
    %134 = tpu.dynamic_rotate %123 by %c16_i32 dim 1 : vector<32x256xf32>, i32 -> vector<32x256xf32>
    %c1_56 = arith.constant 1 : index
    %c0_57 = arith.constant 0 : index
    %135 = vector.load %arg10[%c1_56, %c0_57] : memref<9x256xbf16, #tpu.memory_space<vmem>>, vector<1x256xbf16>
    %136 = arith.extf %135 : vector<1x256xbf16> to vector<1x256xf32>
    %137 = vector.broadcast %136 : vector<1x256xf32> to vector<32x256xf32>
    %138 = arith.mulf %134, %137 : vector<32x256xf32>
    %139 = arith.truncf %138 : vector<32x256xf32> to vector<32x256xbf16>
    %c16_58 = arith.constant 16 : index
    %c0_59 = arith.constant 0 : index
    %140 = vector.load %arg6[%c16_58, %c0_59] : memref<144x32xbf16, #tpu.memory_space<vmem>>, vector<16x32xbf16>
    %cst_60 = arith.constant dense<0.000000e+00> : vector<16x256xf32>
    %141 = tpu.matmul %140, %139, %cst_60 {dimension_numbers = #tpu.dot_dimension_numbers<[1], [0], [0], [1], [0, 0, 1, 1], [], []>} : vector<16x32xbf16>, vector<32x256xbf16>, vector<16x256xf32> -> vector<16x256xf32>
    %142 = arith.addf %133, %141 : vector<16x256xf32>
    %c15_i32 = arith.constant 15 : i32
    %143 = tpu.dynamic_rotate %123 by %c15_i32 dim 1 : vector<32x256xf32>, i32 -> vector<32x256xf32>
    %c2_61 = arith.constant 2 : index
    %c0_62 = arith.constant 0 : index
    %144 = vector.load %arg10[%c2_61, %c0_62] : memref<9x256xbf16, #tpu.memory_space<vmem>>, vector<1x256xbf16>
    %145 = arith.extf %144 : vector<1x256xbf16> to vector<1x256xf32>
    %146 = vector.broadcast %145 : vector<1x256xf32> to vector<32x256xf32>
    %147 = arith.mulf %143, %146 : vector<32x256xf32>
    %148 = arith.truncf %147 : vector<32x256xf32> to vector<32x256xbf16>
    %c32_63 = arith.constant 32 : index
    %c0_64 = arith.constant 0 : index
    %149 = vector.load %arg6[%c32_63, %c0_64] : memref<144x32xbf16, #tpu.memory_space<vmem>>, vector<16x32xbf16>
    %cst_65 = arith.constant dense<0.000000e+00> : vector<16x256xf32>
    %150 = tpu.matmul %149, %148, %cst_65 {dimension_numbers = #tpu.dot_dimension_numbers<[1], [0], [0], [1], [0, 0, 1, 1], [], []>} : vector<16x32xbf16>, vector<32x256xbf16>, vector<16x256xf32> -> vector<16x256xf32>
    %151 = arith.addf %142, %150 : vector<16x256xf32>
    %c1_i32_66 = arith.constant 1 : i32
    %152 = tpu.dynamic_rotate %123 by %c1_i32_66 dim 1 : vector<32x256xf32>, i32 -> vector<32x256xf32>
    %c3_67 = arith.constant 3 : index
    %c0_68 = arith.constant 0 : index
    %153 = vector.load %arg10[%c3_67, %c0_68] : memref<9x256xbf16, #tpu.memory_space<vmem>>, vector<1x256xbf16>
    %154 = arith.extf %153 : vector<1x256xbf16> to vector<1x256xf32>
    %155 = vector.broadcast %154 : vector<1x256xf32> to vector<32x256xf32>
    %156 = arith.mulf %152, %155 : vector<32x256xf32>
    %157 = arith.truncf %156 : vector<32x256xf32> to vector<32x256xbf16>
    %c48_69 = arith.constant 48 : index
    %c0_70 = arith.constant 0 : index
    %158 = vector.load %arg6[%c48_69, %c0_70] : memref<144x32xbf16, #tpu.memory_space<vmem>>, vector<16x32xbf16>
    %cst_71 = arith.constant dense<0.000000e+00> : vector<16x256xf32>
    %159 = tpu.matmul %158, %157, %cst_71 {dimension_numbers = #tpu.dot_dimension_numbers<[1], [0], [0], [1], [0, 0, 1, 1], [], []>} : vector<16x32xbf16>, vector<32x256xbf16>, vector<16x256xf32> -> vector<16x256xf32>
    %160 = arith.addf %151, %159 : vector<16x256xf32>
    %161 = arith.truncf %123 : vector<32x256xf32> to vector<32x256xbf16>
    %c64_72 = arith.constant 64 : index
    %c0_73 = arith.constant 0 : index
    %162 = vector.load %arg6[%c64_72, %c0_73] : memref<144x32xbf16, #tpu.memory_space<vmem>>, vector<16x32xbf16>
    %cst_74 = arith.constant dense<0.000000e+00> : vector<16x256xf32>
    %163 = tpu.matmul %162, %161, %cst_74 {dimension_numbers = #tpu.dot_dimension_numbers<[1], [0], [0], [1], [0, 0, 1, 1], [], []>} : vector<16x32xbf16>, vector<32x256xbf16>, vector<16x256xf32> -> vector<16x256xf32>
    %164 = arith.addf %160, %163 : vector<16x256xf32>
    %c255_i32 = arith.constant 255 : i32
    %165 = tpu.dynamic_rotate %123 by %c255_i32 dim 1 : vector<32x256xf32>, i32 -> vector<32x256xf32>
    %c5_75 = arith.constant 5 : index
    %c0_76 = arith.constant 0 : index
    %166 = vector.load %arg10[%c5_75, %c0_76] : memref<9x256xbf16, #tpu.memory_space<vmem>>, vector<1x256xbf16>
    %167 = arith.extf %166 : vector<1x256xbf16> to vector<1x256xf32>
    %168 = vector.broadcast %167 : vector<1x256xf32> to vector<32x256xf32>
    %169 = arith.mulf %165, %168 : vector<32x256xf32>
    %170 = arith.truncf %169 : vector<32x256xf32> to vector<32x256xbf16>
    %c80_77 = arith.constant 80 : index
    %c0_78 = arith.constant 0 : index
    %171 = vector.load %arg6[%c80_77, %c0_78] : memref<144x32xbf16, #tpu.memory_space<vmem>>, vector<16x32xbf16>
    %cst_79 = arith.constant dense<0.000000e+00> : vector<16x256xf32>
    %172 = tpu.matmul %171, %170, %cst_79 {dimension_numbers = #tpu.dot_dimension_numbers<[1], [0], [0], [1], [0, 0, 1, 1], [], []>} : vector<16x32xbf16>, vector<32x256xbf16>, vector<16x256xf32> -> vector<16x256xf32>
    %173 = arith.addf %164, %172 : vector<16x256xf32>
    %c241_i32 = arith.constant 241 : i32
    %174 = tpu.dynamic_rotate %123 by %c241_i32 dim 1 : vector<32x256xf32>, i32 -> vector<32x256xf32>
    %c6_80 = arith.constant 6 : index
    %c0_81 = arith.constant 0 : index
    %175 = vector.load %arg10[%c6_80, %c0_81] : memref<9x256xbf16, #tpu.memory_space<vmem>>, vector<1x256xbf16>
    %176 = arith.extf %175 : vector<1x256xbf16> to vector<1x256xf32>
    %177 = vector.broadcast %176 : vector<1x256xf32> to vector<32x256xf32>
    %178 = arith.mulf %174, %177 : vector<32x256xf32>
    %179 = arith.truncf %178 : vector<32x256xf32> to vector<32x256xbf16>
    %c96_82 = arith.constant 96 : index
    %c0_83 = arith.constant 0 : index
    %180 = vector.load %arg6[%c96_82, %c0_83] : memref<144x32xbf16, #tpu.memory_space<vmem>>, vector<16x32xbf16>
    %cst_84 = arith.constant dense<0.000000e+00> : vector<16x256xf32>
    %181 = tpu.matmul %180, %179, %cst_84 {dimension_numbers = #tpu.dot_dimension_numbers<[1], [0], [0], [1], [0, 0, 1, 1], [], []>} : vector<16x32xbf16>, vector<32x256xbf16>, vector<16x256xf32> -> vector<16x256xf32>
    %182 = arith.addf %173, %181 : vector<16x256xf32>
    %c240_i32 = arith.constant 240 : i32
    %183 = tpu.dynamic_rotate %123 by %c240_i32 dim 1 : vector<32x256xf32>, i32 -> vector<32x256xf32>
    %c7_85 = arith.constant 7 : index
    %c0_86 = arith.constant 0 : index
    %184 = vector.load %arg10[%c7_85, %c0_86] : memref<9x256xbf16, #tpu.memory_space<vmem>>, vector<1x256xbf16>
    %185 = arith.extf %184 : vector<1x256xbf16> to vector<1x256xf32>
    %186 = vector.broadcast %185 : vector<1x256xf32> to vector<32x256xf32>
    %187 = arith.mulf %183, %186 : vector<32x256xf32>
    %188 = arith.truncf %187 : vector<32x256xf32> to vector<32x256xbf16>
    %c112_87 = arith.constant 112 : index
    %c0_88 = arith.constant 0 : index
    %189 = vector.load %arg6[%c112_87, %c0_88] : memref<144x32xbf16, #tpu.memory_space<vmem>>, vector<16x32xbf16>
    %cst_89 = arith.constant dense<0.000000e+00> : vector<16x256xf32>
    %190 = tpu.matmul %189, %188, %cst_89 {dimension_numbers = #tpu.dot_dimension_numbers<[1], [0], [0], [1], [0, 0, 1, 1], [], []>} : vector<16x32xbf16>, vector<32x256xbf16>, vector<16x256xf32> -> vector<16x256xf32>
    %191 = arith.addf %182, %190 : vector<16x256xf32>
    %c239_i32 = arith.constant 239 : i32
    %192 = tpu.dynamic_rotate %123 by %c239_i32 dim 1 : vector<32x256xf32>, i32 -> vector<32x256xf32>
    %c8_90 = arith.constant 8 : index
    %c0_91 = arith.constant 0 : index
    %193 = vector.load %arg10[%c8_90, %c0_91] : memref<9x256xbf16, #tpu.memory_space<vmem>>, vector<1x256xbf16>
    %194 = arith.extf %193 : vector<1x256xbf16> to vector<1x256xf32>
    %195 = vector.broadcast %194 : vector<1x256xf32> to vector<32x256xf32>
    %196 = arith.mulf %192, %195 : vector<32x256xf32>
    %197 = arith.truncf %196 : vector<32x256xf32> to vector<32x256xbf16>
    %c128_92 = arith.constant 128 : index
    %c0_93 = arith.constant 0 : index
    %198 = vector.load %arg6[%c128_92, %c0_93] : memref<144x32xbf16, #tpu.memory_space<vmem>>, vector<16x32xbf16>
    %cst_94 = arith.constant dense<0.000000e+00> : vector<16x256xf32>
    %199 = tpu.matmul %198, %197, %cst_94 {dimension_numbers = #tpu.dot_dimension_numbers<[1], [0], [0], [1], [0, 0, 1, 1], [], []>} : vector<16x32xbf16>, vector<32x256xbf16>, vector<16x256xf32> -> vector<16x256xf32>
    %200 = arith.addf %191, %199 : vector<16x256xf32>
    %c0_95 = arith.constant 0 : index
    %c0_96 = arith.constant 0 : index
    %201 = vector.load %arg8[%c0_95, %c0_96] : memref<16x1xf32, #tpu.memory_space<vmem>>, vector<16x1xf32>
    %202 = vector.broadcast %201 : vector<16x1xf32> to vector<16x256xf32>
    %203 = arith.addf %200, %202 : vector<16x256xf32>
    %204 = math.absf %203 : vector<16x256xf32>
    %c0_97 = arith.constant 0 : index
    %c0_98 = arith.constant 0 : index
    %c0_99 = arith.constant 0 : index
    %205 = vector.load %arg12[%c0_97, %c0_98, %c0_99] : memref<1x16x256xf32, #tpu.memory_space<vmem>>, vector<1x16x256xf32>
    %206 = vector.shape_cast %205 : vector<1x16x256xf32> to vector<16x256xf32>
    %207 = vector.shape_cast %204 : vector<16x256xf32> to vector<1x16x256xf32>
    tpu.vector_store %arg12[%c0_97, %c0_98, %c0_99], %207 {strides = array<i32>} : memref<1x16x256xf32, #tpu.memory_space<vmem>>, vector<1x16x256xf32>,
    return
  }
  func.func @transform_0(%arg0: i32) -> (i32, i32, i32) {
    %c0_i32 = arith.constant 0 : i32
    %c0_i32_0 = arith.constant 0 : i32
    %c0_i32_1 = arith.constant 0 : i32
    return %arg0, %c0_i32, %c0_i32_0 : i32, i32, i32
  }
  func.func @transform_1(%arg0: i32) -> (i32, i32, i32) {
    %c0_i32 = arith.constant 0 : i32
    %c0_i32_0 = arith.constant 0 : i32
    %c0_i32_1 = arith.constant 0 : i32
    return %arg0, %c0_i32, %c0_i32_0 : i32, i32, i32
  }
  func.func @transform_2(%arg0: i32) -> (i32, i32) {
    %c0_i32 = arith.constant 0 : i32
    %c0_i32_0 = arith.constant 0 : i32
    %c0_i32_1 = arith.constant 0 : i32
    return %c0_i32, %c0_i32_0 : i32, i32
  }
  func.func @transform_3(%arg0: i32) -> (i32, i32) {
    %c0_i32 = arith.constant 0 : i32
    %c0_i32_0 = arith.constant 0 : i32
    %c0_i32_1 = arith.constant 0 : i32
    return %c0_i32, %c0_i32_0 : i32, i32
  }
  func.func @transform_4(%arg0: i32) -> (i32, i32) {
    %c0_i32 = arith.constant 0 : i32
    %c0_i32_0 = arith.constant 0 : i32
    %c0_i32_1 = arith.constant 0 : i32
    return %c0_i32, %c0_i32_0 : i32, i32
  }
  func.func @transform_5(%arg0: i32) -> (i32, i32) {
    %c0_i32 = arith.constant 0 : i32
    %c0_i32_0 = arith.constant 0 : i32
    %c0_i32_1 = arith.constant 0 : i32
    return %c0_i32, %c0_i32_0 : i32, i32
  }
  func.func @transform_6(%arg0: i32) -> (i32, i32) {
    %c0_i32 = arith.constant 0 : i32
    %c0_i32_0 = arith.constant 0 : i32
    %c0_i32_1 = arith.constant 0 : i32
    return %c0_i32, %c0_i32_0 : i32, i32
  }
  func.func @transform_7(%arg0: i32) -> (i32, i32) {
    %c0_i32 = arith.constant 0 : i32
    %c0_i32_0 = arith.constant 0 : i32
    %c0_i32_1 = arith.constant 0 : i32
    return %c0_i32, %c0_i32_0 : i32, i32
  }
  func.func @transform_8(%arg0: i32) -> (i32, i32) {
    %c0_i32 = arith.constant 0 : i32
    %c0_i32_0 = arith.constant 0 : i32
    %c0_i32_1 = arith.constant 0 : i32
    return %c0_i32, %c0_i32_0 : i32, i32
  }
  func.func @transform_9(%arg0: i32) -> (i32, i32) {
    %c0_i32 = arith.constant 0 : i32
    %c0_i32_0 = arith.constant 0 : i32
    %c0_i32_1 = arith.constant 0 : i32
    return %c0_i32, %c0_i32_0 : i32, i32
  }
  func.func @transform_10(%arg0: i32) -> (i32, i32, i32) {
    %c0_i32 = arith.constant 0 : i32
    %c0_i32_0 = arith.constant 0 : i32
    %c0_i32_1 = arith.constant 0 : i32
    return %arg0, %c0_i32, %c0_i32_0 : i32, i32, i32
  }
  func.func @transform_11(%arg0: i32) -> (i32, i32, i32) {
    %c0_i32 = arith.constant 0 : i32
    %c0_i32_0 = arith.constant 0 : i32
    %c0_i32_1 = arith.constant 0 : i32
    return %arg0, %c0_i32, %c0_i32_0 : i32, i32, i32
  }
}

</mosaic_0001>

<llo_original>
// kernel: affinity_net_forward.1
$region0: #{affinity_net_forward.1}
  #allocation0 [shape = 'u32[]', space=smem, size = 0x4, offset = 0x4, fixed_abs, tag = 'smem constant byte address 0x4 - core index']
  #allocation1 [shape = 'u32[72,128]{1,0:T(1,128)}', space=vmem, size = 0x9000, scoped, tag = 'internal scratch']
  %s0 = inlined_call_operand.vmem [shape: f32[2,3,1024], index: 0, kind: input, shape index: {}]
  %s1 = inlined_call_operand.vmem [shape: f32[2,3,256], index: 1, kind: input, shape index: {}]
  %s2 = inlined_call_operand.vmem [shape: f32[16,3], index: 2, kind: input, shape index: {}]
  %s3 = inlined_call_operand.vmem [shape: f32[32,3], index: 3, kind: input, shape index: {}]
  %s4 = inlined_call_operand.vmem [shape: bf16[144,16], index: 4, kind: input, shape index: {}]
  %s5 = inlined_call_operand.vmem [shape: bf16[144,32], index: 5, kind: input, shape index: {}]
  %s6 = inlined_call_operand.vmem [shape: f32[16,1], index: 6, kind: input, shape index: {}]
  %s7 = inlined_call_operand.vmem [shape: f32[16,1], index: 7, kind: input, shape index: {}]
  %s8 = inlined_call_operand.vmem [shape: bf16[9,1024], index: 8, kind: input, shape index: {}]
  %s9 = inlined_call_operand.vmem [shape: bf16[9,256], index: 9, kind: input, shape index: {}]
  %s10 = inlined_call_operand.vmem [shape: f32[2,16,1024], index: 10, kind: output, shape index: {0}]
  %s11 = inlined_call_operand.vmem [shape: f32[2,16,256], index: 11, kind: output, shape index: {1}]
  %12 = xla_tuple %s10, %s11
  %s13 = sld [smem:[#allocation0]]
  $region81: #{affinity_net_forward.1} parent=0
    _
  %s15 = ssub.s32 1, %s13
  %s16 = scalar_select 0, %s15, %s13
  loop: start=0, step=1, limit=4
  $region2: #{affinity_net_forward.1} parent=0 // loop_pre_header
    _
  $region3: #{affinity_net_forward.1} parent=0 // loop_header
    %s18 = sphi 0, %s22
    %p19 = scmp.ge.s32.totalorder %s18, 4
    %s28 = sphi 0, %s30
    %s31 = sphi 0, %s28
    %s32 = sphi 0, %s31
    %s48 = sphi 0, %s32
    %s54 = sphi 0, %s56
    %s57 = sphi 0, %s54
    %s58 = sphi 0, %s57
    %s74 = sphi 0, %s58
    %s78 = sphi 0, %s78
    %s80 = sphi 0, %s78
    %s81 = sphi 0, %s80
    %s95 = sphi 0, %s81
    %s99 = sphi 0, %s99
    %s101 = sphi 0, %s99
    %s102 = sphi 0, %s101
    %s116 = sphi 0, %s102
    %s120 = sphi 0, %s120
    %s122 = sphi 0, %s120
    %s123 = sphi 0, %s122
    %s137 = sphi 0, %s123
    %s141 = sphi 0, %s141
    %s143 = sphi 0, %s141
    %s144 = sphi 0, %s143
    %s158 = sphi 0, %s144
    %s162 = sphi 0, %s162
    %s164 = sphi 0, %s162
    %s165 = sphi 0, %s164
    %s179 = sphi 0, %s165
    %s183 = sphi 0, %s183
    %s185 = sphi 0, %s183
    %s186 = sphi 0, %s185
    %s200 = sphi 0, %s186
    %s204 = sphi 0, %s204
    %s206 = sphi 0, %s204
    %s207 = sphi 0, %s206
    %s221 = sphi 0, %s207
    %s225 = sphi 0, %s225
    %s227 = sphi 0, %s225
    %s228 = sphi 0, %s227
    %s242 = sphi 0, %s228
    %s248 = sphi 0, %s250
    %s251 = sphi 0, %s248
    %s252 = sphi 0, %s251
    %s268 = sphi 0, %s252
    %s274 = sphi 0, %s276
    %s277 = sphi 0, %s274
    %s278 = sphi 0, %s277
    %s294 = sphi 0, %s278
  $region4: #{affinity_net_forward.1} parent=0 // loop_header_branch
    %21 = sbr.rel (%p19) target = $region8
  $region5: #{affinity_net_forward.1} parent=0 // loop_body
    %s23 = ssub.s32 %s18, 1
    %s24 = ssub.s32 %s18, 2
    %s25 = sadd.s32 %s18, 1
    %s26 = ssub.s32 %s18, %s25
    %p27 = scmp.eq.s32.totalorder %s26, 0
    %s29 = sadd.s32 %s28, 1
    %s30 = scalar_select %p27, %s28, %s29
    %p33 = pneg %p27
    %p34 = scmp.eq.s32.totalorder %s18, 1
    %p35 = por %p33, %p34
    %p36 = scmp.ne.s32.totalorder %s28, %s31
    %p37 = scmp.eq.s32.totalorder %s18, 0
    %p38 = por %p36, %p37
    %p39 = scmp.ne.s32.totalorder %s28, %s31
    %p40 = scmp.eq.s32.totalorder %s23, 1
    %p41 = por %p39, %p40
    %p42 = scmp.ne.s32.totalorder %s31, %s32
    %p43 = scmp.eq.s32.totalorder %s23, 0
    %p44 = por %p42, %p43
    %p45 = scmp.ne.s32.totalorder %s31, %s32
    %p46 = scmp.eq.s32.totalorder %s24, 1
    %p47 = por %p45, %p46
    %p49 = scmp.ne.s32.totalorder %s32, %s48
    %p50 = scmp.eq.s32.totalorder %s24, 0
    %p51 = por %p49, %p50
    %s52 = ssub.s32 %s18, %s25
    %p53 = scmp.eq.s32.totalorder %s52, 0
    %s55 = sadd.s32 %s54, 1
    %s56 = scalar_select %p53, %s54, %s55
    %p59 = pneg %p53
    %p60 = scmp.eq.s32.totalorder %s18, 1
    %p61 = por %p59, %p60
    %p62 = scmp.ne.s32.totalorder %s54, %s57
    %p63 = scmp.eq.s32.totalorder %s18, 0
    %p64 = por %p62, %p63
    %p65 = scmp.ne.s32.totalorder %s54, %s57
    %p66 = scmp.eq.s32.totalorder %s23, 1
    %p67 = por %p65, %p66
    %p68 = scmp.ne.s32.totalorder %s57, %s58
    %p69 = scmp.eq.s32.totalorder %s23, 0
    %p70 = por %p68, %p69
    %p71 = scmp.ne.s32.totalorder %s57, %s58
    %p72 = scmp.eq.s32.totalorder %s24, 1
    %p73 = por %p71, %p72
    %p75 = scmp.ne.s32.totalorder %s58, %s74
    %p76 = scmp.eq.s32.totalorder %s24, 0
    %p77 = por %p75, %p76
    %s79 = sadd.s32 %s78, 1
    %p82 = scmp.eq.s32.totalorder %s18, 1
    %p83 = scmp.ne.s32.totalorder %s78, %s80
    %p84 = scmp.eq.s32.totalorder %s18, 0
    %p85 = por %p83, %p84
    %p86 = scmp.ne.s32.totalorder %s78, %s80
    %p87 = scmp.eq.s32.totalorder %s23, 1
    %p88 = por %p86, %p87
    %p89 = scmp.ne.s32.totalorder %s80, %s81
    %p90 = scmp.eq.s32.totalorder %s23, 0
    %p91 = por %p89, %p90
    %p92 = scmp.ne.s32.totalorder %s80, %s81
    %p93 = scmp.eq.s32.totalorder %s24, 1
    %p94 = por %p92, %p93
    %p96 = scmp.ne.s32.totalorder %s81, %s95
    %p97 = scmp.eq.s32.totalorder %s24, 0
    %p98 = por %p96, %p97
    %s100 = sadd.s32 %s99, 1
    %p103 = scmp.eq.s32.totalorder %s18, 1
    %p104 = scmp.ne.s32.totalorder %s99, %s101
    %p105 = scmp.eq.s32.totalorder %s18, 0
    %p106 = por %p104, %p105
    %p107 = scmp.ne.s32.totalorder %s99, %s101
    %p108 = scmp.eq.s32.totalorder %s23, 1
    %p109 = por %p107, %p108
    %p110 = scmp.ne.s32.totalorder %s101, %s102
    %p111 = scmp.eq.s32.totalorder %s23, 0
    %p112 = por %p110, %p111
    %p113 = scmp.ne.s32.totalorder %s101, %s102
    %p114 = scmp.eq.s32.totalorder %s24, 1
    %p115 = por %p113, %p114
    %p117 = scmp.ne.s32.totalorder %s102, %s116
    %p118 = scmp.eq.s32.totalorder %s24, 0
    %p119 = por %p117, %p118
    %s121 = sadd.s32 %s120, 1
    %p124 = scmp.eq.s32.totalorder %s18, 1
    %p125 = scmp.ne.s32.totalorder %s120, %s122
    %p126 = scmp.eq.s32.totalorder %s18, 0
    %p127 = por %p125, %p126
    %p128 = scmp.ne.s32.totalorder %s120, %s122
    %p129 = scmp.eq.s32.totalorder %s23, 1
    %p130 = por %p128, %p129
    %p131 = scmp.ne.s32.totalorder %s122, %s123
    %p132 = scmp.eq.s32.totalorder %s23, 0
    %p133 = por %p131, %p132
    %p134 = scmp.ne.s32.totalorder %s122, %s123
    %p135 = scmp.eq.s32.totalorder %s24, 1
    %p136 = por %p134, %p135
    %p138 = scmp.ne.s32.totalorder %s123, %s137
    %p139 = scmp.eq.s32.totalorder %s24, 0
    %p140 = por %p138, %p139
    %s142 = sadd.s32 %s141, 1
    %p145 = scmp.eq.s32.totalorder %s18, 1
    %p146 = scmp.ne.s32.totalorder %s141, %s143
    %p147 = scmp.eq.s32.totalorder %s18, 0
    %p148 = por %p146, %p147
    %p149 = scmp.ne.s32.totalorder %s141, %s143
    %p150 = scmp.eq.s32.totalorder %s23, 1
    %p151 = por %p149, %p150
    %p152 = scmp.ne.s32.totalorder %s143, %s144
    %p153 = scmp.eq.s32.totalorder %s23, 0
    %p154 = por %p152, %p153
    %p155 = scmp.ne.s32.totalorder %s143, %s144
    %p156 = scmp.eq.s32.totalorder %s24, 1
    %p157 = por %p155, %p156
    %p159 = scmp.ne.s32.totalorder %s144, %s158
    %p160 = scmp.eq.s32.totalorder %s24, 0
    %p161 = por %p159, %p160
    %s163 = sadd.s32 %s162, 1
    %p166 = scmp.eq.s32.totalorder %s18, 1
    %p167 = scmp.ne.s32.totalorder %s162, %s164
    %p168 = scmp.eq.s32.totalorder %s18, 0
    %p169 = por %p167, %p168
    %p170 = scmp.ne.s32.totalorder %s162, %s164
    %p171 = scmp.eq.s32.totalorder %s23, 1
    %p172 = por %p170, %p171
    %p173 = scmp.ne.s32.totalorder %s164, %s165
    %p174 = scmp.eq.s32.totalorder %s23, 0
    %p175 = por %p173, %p174
    %p176 = scmp.ne.s32.totalorder %s164, %s165
    %p177 = scmp.eq.s32.totalorder %s24, 1
    %p178 = por %p176, %p177
    %p180 = scmp.ne.s32.totalorder %s165, %s179
    %p181 = scmp.eq.s32.totalorder %s24, 0
    %p182 = por %p180, %p181
    %s184 = sadd.s32 %s183, 1
    %p187 = scmp.eq.s32.totalorder %s18, 1
    %p188 = scmp.ne.s32.totalorder %s183, %s185
    %p189 = scmp.eq.s32.totalorder %s18, 0
    %p190 = por %p188, %p189
    %p191 = scmp.ne.s32.totalorder %s183, %s185
    %p192 = scmp.eq.s32.totalorder %s23, 1
    %p193 = por %p191, %p192
    %p194 = scmp.ne.s32.totalorder %s185, %s186
    %p195 = scmp.eq.s32.totalorder %s23, 0
    %p196 = por %p194, %p195
    %p197 = scmp.ne.s32.totalorder %s185, %s186
    %p198 = scmp.eq.s32.totalorder %s24, 1
    %p199 = por %p197, %p198
    %p201 = scmp.ne.s32.totalorder %s186, %s200
    %p202 = scmp.eq.s32.totalorder %s24, 0
    %p203 = por %p201, %p202
    %s205 = sadd.s32 %s204, 1
    %p208 = scmp.eq.s32.totalorder %s18, 1
    %p209 = scmp.ne.s32.totalorder %s204, %s206
    %p210 = scmp.eq.s32.totalorder %s18, 0
    %p211 = por %p209, %p210
    %p212 = scmp.ne.s32.totalorder %s204, %s206
    %p213 = scmp.eq.s32.totalorder %s23, 1
    %p214 = por %p212, %p213
    %p215 = scmp.ne.s32.totalorder %s206, %s207
    %p216 = scmp.eq.s32.totalorder %s23, 0
    %p217 = por %p215, %p216
    %p218 = scmp.ne.s32.totalorder %s206, %s207
    %p219 = scmp.eq.s32.totalorder %s24, 1
    %p220 = por %p218, %p219
    %p222 = scmp.ne.s32.totalorder %s207, %s221
    %p223 = scmp.eq.s32.totalorder %s24, 0
    %p224 = por %p222, %p223
    %s226 = sadd.s32 %s225, 1
    %p229 = scmp.eq.s32.totalorder %s18, 1
    %p230 = scmp.ne.s32.totalorder %s225, %s227
    %p231 = scmp.eq.s32.totalorder %s18, 0
    %p232 = por %p230, %p231
    %p233 = scmp.ne.s32.totalorder %s225, %s227
    %p234 = scmp.eq.s32.totalorder %s23, 1
    %p235 = por %p233, %p234
    %p236 = scmp.ne.s32.totalorder %s227, %s228
    %p237 = scmp.eq.s32.totalorder %s23, 0
    %p238 = por %p236, %p237
    %p239 = scmp.ne.s32.totalorder %s227, %s228
    %p240 = scmp.eq.s32.totalorder %s24, 1
    %p241 = por %p239, %p240
    %p243 = scmp.ne.s32.totalorder %s228, %s242
    %p244 = scmp.eq.s32.totalorder %s24, 0
    %p245 = por %p243, %p244
    %s246 = ssub.s32 %s18, %s25
    %p247 = scmp.eq.s32.totalorder %s246, 0
    %s249 = sadd.s32 %s248, 1
    %s250 = scalar_select %p247, %s248, %s249
    %p253 = pneg %p247
    %p254 = scmp.eq.s32.totalorder %s18, 1
    %p255 = por %p253, %p254
    %p256 = scmp.ne.s32.totalorder %s248, %s251
    %p257 = scmp.eq.s32.totalorder %s18, 0
    %p258 = por %p256, %p257
    %p259 = scmp.ne.s32.totalorder %s248, %s251
    %p260 = scmp.eq.s32.totalorder %s23, 1
    %p261 = por %p259, %p260
    %p262 = scmp.ne.s32.totalorder %s251, %s252
    %p263 = scmp.eq.s32.totalorder %s23, 0
    %p264 = por %p262, %p263
    %p265 = scmp.ne.s32.totalorder %s251, %s252
    %p266 = scmp.eq.s32.totalorder %s24, 1
    %p267 = por %p265, %p266
    %p269 = scmp.ne.s32.totalorder %s252, %s268
    %p270 = scmp.eq.s32.totalorder %s24, 0
    %p271 = por %p269, %p270
    %s272 = ssub.s32 %s18, %s25
    %p273 = scmp.eq.s32.totalorder %s272, 0
    %s275 = sadd.s32 %s274, 1
    %s276 = scalar_select %p273, %s274, %s275
    %p279 = pneg %p273
    %p280 = scmp.eq.s32.totalorder %s18, 1
    %p281 = por %p279, %p280
    %p282 = scmp.ne.s32.totalorder %s274, %s277
    %p283 = scmp.eq.s32.totalorder %s18, 0
    %p284 = por %p282, %p283
    %p285 = scmp.ne.s32.totalorder %s274, %s277
    %p286 = scmp.eq.s32.totalorder %s23, 1
    %p287 = por %p285, %p286
    %p288 = scmp.ne.s32.totalorder %s277, %s278
    %p289 = scmp.eq.s32.totalorder %s23, 0
    %p290 = por %p288, %p289
    %p291 = scmp.ne.s32.totalorder %s277, %s278
    %p292 = scmp.eq.s32.totalorder %s24, 1
    %p293 = por %p291, %p292
    %p295 = scmp.ne.s32.totalorder %s278, %s294
    %p296 = scmp.eq.s32.totalorder %s24, 0
    %p297 = por %p295, %p296
    %p298 = scmp.le.s32.totalorder 1, %s18
    %p299 = scmp.lt.s32.totalorder %s18, 3
    %p300 = pnand %p298, %p299
    %p301 = pneg %p300
    // Predicated region
    $region9: #{affinity_net_forward.1} parent=5 // pred_check
      _
    $region10: #{affinity_net_forward.1} parent=5 // pred_check_branch
      %303 = sbr.rel (%p300) target = $region12
    $region11: #{affinity_net_forward.1} parent=5 // pred_region
      %s304 = ssub.s32 %s18, 1
      // Predicated region
      $region13: #{affinity_net_forward.1} parent=11 // pred_check
        %p305 = pneg %p91
      $region14: #{affinity_net_forward.1} parent=11 // pred_check_branch
        %307 = sbr.rel (%p305) target = $region16
      $region15: #{affinity_net_forward.1} parent=11 // pred_region
        _
      $region16: #{affinity_net_forward.1} parent=11 // pred_fallthru
        _
      // Predicated region
      $region17: #{affinity_net_forward.1} parent=11 // pred_check
        %p308 = pneg %p112
      $region18: #{affinity_net_forward.1} parent=11 // pred_check_branch
        %310 = sbr.rel (%p308) target = $region20
      $region19: #{affinity_net_forward.1} parent=11 // pred_region
        _
      $region20: #{affinity_net_forward.1} parent=11 // pred_fallthru
        _
      // Predicated region
      $region21: #{affinity_net_forward.1} parent=11 // pred_check
        %p311 = pneg %p133
      $region22: #{affinity_net_forward.1} parent=11 // pred_check_branch
        %313 = sbr.rel (%p311) target = $region24
      $region23: #{affinity_net_forward.1} parent=11 // pred_region
        _
      $region24: #{affinity_net_forward.1} parent=11 // pred_fallthru
        _
      // Predicated region
      $region25: #{affinity_net_forward.1} parent=11 // pred_check
        %p314 = pneg %p154
      $region26: #{affinity_net_forward.1} parent=11 // pred_check_branch
        %316 = sbr.rel (%p314) target = $region28
      $region27: #{affinity_net_forward.1} parent=11 // pred_region
        _
      $region28: #{affinity_net_forward.1} parent=11 // pred_fallthru
        _
      // Predicated region
      $region29: #{affinity_net_forward.1} parent=11 // pred_check
        %p317 = pneg %p175
      $region30: #{affinity_net_forward.1} parent=11 // pred_check_branch
        %319 = sbr.rel (%p317) target = $region32
      $region31: #{affinity_net_forward.1} parent=11 // pred_region
        _
      $region32: #{affinity_net_forward.1} parent=11 // pred_fallthru
        _
      // Predicated region
      $region33: #{affinity_net_forward.1} parent=11 // pred_check
        %p320 = pneg %p196
      $region34: #{affinity_net_forward.1} parent=11 // pred_check_branch
        %322 = sbr.rel (%p320) target = $region36
      $region35: #{affinity_net_forward.1} parent=11 // pred_region
        _
      $region36: #{affinity_net_forward.1} parent=11 // pred_fallthru
        _
      // Predicated region
      $region37: #{affinity_net_forward.1} parent=11 // pred_check
        %p323 = pneg %p217
      $region38: #{affinity_net_forward.1} parent=11 // pred_check_branch
        %325 = sbr.rel (%p323) target = $region40
      $region39: #{affinity_net_forward.1} parent=11 // pred_region
        _
      $region40: #{affinity_net_forward.1} parent=11 // pred_fallthru
        _
      // Predicated region
      $region41: #{affinity_net_forward.1} parent=11 // pred_check
        %p326 = pneg %p238
      $region42: #{affinity_net_forward.1} parent=11 // pred_check_branch
        %328 = sbr.rel (%p326) target = $region44
      $region43: #{affinity_net_forward.1} parent=11 // pred_region
        _
      $region44: #{affinity_net_forward.1} parent=11 // pred_fallthru
        _
    $region12: #{affinity_net_forward.1} parent=5 // pred_fallthru
      _
    %p329 = scmp.lt.s32.totalorder %s18, 2
    // Predicated region
    $region45: #{affinity_net_forward.1} parent=5 // pred_check
      %p330 = pneg %p329
    $region46: #{affinity_net_forward.1} parent=5 // pred_check_branch
      %332 = sbr.rel (%p330) target = $region48
    $region47: #{affinity_net_forward.1} parent=5 // pred_region
      // Predicated region
      $region49: #{affinity_net_forward.1} parent=47 // pred_check
        %p333 = pneg %p38
      $region50: #{affinity_net_forward.1} parent=47 // pred_check_branch
        %335 = sbr.rel (%p333) target = $region52
      $region51: #{affinity_net_forward.1} parent=47 // pred_region
        %p336 = scmp.lt.s32.totalorder %s18, 1
        %s337 = scalar_select %p336, %s18, 1
        %s338 = smul.addr %s337, 8
        %s339 = smul.addr %s338, 4
        %s340 = scalar_lea.vmem %s0, %s339
      $region52: #{affinity_net_forward.1} parent=47 // pred_fallthru
        _
      // Predicated region
      $region53: #{affinity_net_forward.1} parent=47 // pred_check
        %p341 = pneg %p64
      $region54: #{affinity_net_forward.1} parent=47 // pred_check_branch
        %343 = sbr.rel (%p341) target = $region56
      $region55: #{affinity_net_forward.1} parent=47 // pred_region
        %p344 = scmp.lt.s32.totalorder %s18, 1
        %s345 = scalar_select %p344, %s18, 1
        %s346 = smul.addr %s345, 2
        %s347 = smul.addr %s346, 4
        %s348 = scalar_lea.vmem %s1, %s347
      $region56: #{affinity_net_forward.1} parent=47 // pred_fallthru
        _
    $region48: #{affinity_net_forward.1} parent=5 // pred_fallthru
      _
    %p349 = scmp.le.s32.totalorder 1, %s18
    %p350 = scmp.lt.s32.totalorder %s18, 3
    %p351 = pnand %p349, %p350
    %p352 = pneg %p351
    // Predicated region
    $region57: #{affinity_net_forward.1} parent=5 // pred_check
      _
    $region58: #{affinity_net_forward.1} parent=5 // pred_check_branch
      %354 = sbr.rel (%p351) target = $region60
    $region59: #{affinity_net_forward.1} parent=5 // pred_region
      %s355 = ssub.s32 %s18, 1
      %p356 = scmp.lt.s32.totalorder %s23, 1
      %s357 = scalar_select %p356, %s23, 1
      %s358 = smul.addr %s357, 8
      %s359 = smul.addr %s358, 4
      %s360 = scalar_lea.vmem %s0, %s359
      %p361 = pneg %p44
      %p362 = pneg %p41
      %p363 = scmp.lt.s32.totalorder %s23, 1
      %s364 = scalar_select %p363, %s23, 1
      %s365 = smul.addr %s364, 2
      %s366 = smul.addr %s365, 4
      %s367 = scalar_lea.vmem %s1, %s366
      %p368 = pneg %p70
      %p369 = pneg %p67
      %p370 = pneg %p91
      %p371 = pneg %p88
      %p372 = pneg %p112
      %p373 = pneg %p109
      %p374 = pneg %p133
      %p375 = pneg %p130
      %p376 = pneg %p154
      %p377 = pneg %p151
      %p378 = pneg %p175
      %p379 = pneg %p172
      %p380 = pneg %p196
      %p381 = pneg %p193
      %p382 = pneg %p217
      %p383 = pneg %p214
      %p384 = pneg %p238
      %p385 = pneg %p235
      %p386 = pneg %p264
      %p387 = pneg %p261
      %p388 = scmp.lt.s32.totalorder %s23, 1
      %s389 = scalar_select %p388, %s23, 1
      %s390 = smul.addr %s389, 16
      %s391 = smul.addr %s390, 8
      %s392 = scalar_lea.vmem %s10, %s391
      %p393 = pneg %p290
      %p394 = pneg %p287
      %p395 = scmp.lt.s32.totalorder %s23, 1
      %s396 = scalar_select %p395, %s23, 1
      %s397 = smul.addr %s396, 4
      %s398 = smul.addr %s397, 8
      %s399 = scalar_lea.vmem %s11, %s398
      %p400 = scmp.lt.s32.totalorder %s23, 1
      %s401 = scalar_select %p400, %s23, 1
      %s402 = smul.addr %s401, 8
      %s403 = smul.addr %s402, 4
      %s404 = scalar_lea.vmem %s0, %s403
      %p405 = scmp.lt.s32.totalorder %s23, 1
      %s406 = scalar_select %p405, %s23, 1
      %s407 = smul.addr %s406, 2
      %s408 = smul.addr %s407, 4
      %s409 = scalar_lea.vmem %s1, %s408
      %p410 = scmp.lt.s32.totalorder %s23, 1
      %s411 = scalar_select %p410, %s23, 1
      %s412 = smul.addr %s411, 16
      %s413 = smul.addr %s412, 8
      %s414 = scalar_lea.vmem %s10, %s413
      %p415 = scmp.lt.s32.totalorder %s23, 1
      %s416 = scalar_select %p415, %s23, 1
      %s417 = smul.addr %s416, 4
      %s418 = smul.addr %s417, 8
      %s419 = scalar_lea.vmem %s11, %s418
      %v421 = vld [vmem:[%s404] sm:$0x77]
      %v422 = vld [vmem:[%s404 + $0x8] sm:$0x77]
      %v423 = vld [vmem:[%s404 + $0x10] sm:$0x77]
      %v424 = vld [vmem:[%s404 + $0x18] sm:$0x77]
      %v425 = vld [vmem:[%s2] sm:$0xff]
      %v426 = vld [vmem:[%s2 + $0x8] sm:$0xff]
      %428 = vset.pattern.permute.xlu0 0
      %429 = vperm.xlu0 %428, %v425
      %v430 = vpop.permute.xlu0 %429
      %433 = vset.pattern.permute.xlu0 0
      %434 = vperm.xlu0 %433, %v426
      %v435 = vpop.permute.xlu0 %434
      %v441 = vperm.slane %v421, 0
      %v442 = vperm.slane %v421, 4
      %v443 = vperm.slane %v422, 0
      %v444 = vperm.slane %v422, 4
      %v445 = vperm.slane %v423, 0
      %v446 = vperm.slane %v423, 4
      %v447 = vperm.slane %v424, 0
      %v448 = vperm.slane %v424, 4
      %v457 = vperm.slane %v441, 0
      %v458 = vperm.slane %v442, 0
      %v459 = vperm.slane %v443, 0
      %v460 = vperm.slane %v444, 0
      %v461 = vperm.slane %v445, 0
      %v462 = vperm.slane %v446, 0
      %v463 = vperm.slane %v447, 0
      %v464 = vperm.slane %v448, 0
      %v465 = vmul.f32 %v430, %v457
      %v466 = vmul.f32 %v430, %v458
      %v467 = vmul.f32 %v430, %v459
      %v468 = vmul.f32 %v430, %v460
      %v469 = vmul.f32 %v430, %v461
      %v470 = vmul.f32 %v430, %v462
      %v471 = vmul.f32 %v430, %v463
      %v472 = vmul.f32 %v430, %v464
      %v473 = vmul.f32 %v435, %v457
      %v474 = vmul.f32 %v435, %v458
      %v475 = vmul.f32 %v435, %v459
      %v476 = vmul.f32 %v435, %v460
      %v477 = vmul.f32 %v435, %v461
      %v478 = vmul.f32 %v435, %v462
      %v479 = vmul.f32 %v435, %v463
      %v480 = vmul.f32 %v435, %v464
      %481 = vset.pattern.permute.xlu0 1
      %482 = vperm.xlu0 %481, %v425
      %v483 = vpop.permute.xlu0 %482
      %485 = vset.pattern.permute.xlu0 1
      %486 = vperm.xlu0 %485, %v426
      %v487 = vpop.permute.xlu0 %486
      %v489 = vperm.slane %v421, 1
      %v490 = vperm.slane %v421, 5
      %v491 = vperm.slane %v422, 1
      %v492 = vperm.slane %v422, 5
      %v493 = vperm.slane %v423, 1
      %v494 = vperm.slane %v423, 5
      %v495 = vperm.slane %v424, 1
      %v496 = vperm.slane %v424, 5
      %v505 = vperm.slane %v489, 1
      %v506 = vperm.slane %v490, 1
      %v507 = vperm.slane %v491, 1
      %v508 = vperm.slane %v492, 1
      %v509 = vperm.slane %v493, 1
      %v510 = vperm.slane %v494, 1
      %v511 = vperm.slane %v495, 1
      %v512 = vperm.slane %v496, 1
      %v513 = vmul.f32 %v483, %v505
      %v514 = vmul.f32 %v483, %v506
      %v515 = vmul.f32 %v483, %v507
      %v516 = vmul.f32 %v483, %v508
      %v517 = vmul.f32 %v483, %v509
      %v518 = vmul.f32 %v483, %v510
      %v519 = vmul.f32 %v483, %v511
      %v520 = vmul.f32 %v483, %v512
      %v521 = vmul.f32 %v487, %v505
      %v522 = vmul.f32 %v487, %v506
      %v523 = vmul.f32 %v487, %v507
      %v524 = vmul.f32 %v487, %v508
      %v525 = vmul.f32 %v487, %v509
      %v526 = vmul.f32 %v487, %v510
      %v527 = vmul.f32 %v487, %v511
      %v528 = vmul.f32 %v487, %v512
      %v529 = vadd.f32 %v465, %v513
      %v530 = vadd.f32 %v466, %v514
      %v531 = vadd.f32 %v467, %v515
      %v532 = vadd.f32 %v468, %v516
      %v533 = vadd.f32 %v469, %v517
      %v534 = vadd.f32 %v470, %v518
      %v535 = vadd.f32 %v471, %v519
      %v536 = vadd.f32 %v472, %v520
      %v537 = vadd.f32 %v473, %v521
      %v538 = vadd.f32 %v474, %v522
      %v539 = vadd.f32 %v475, %v523
      %v540 = vadd.f32 %v476, %v524
      %v541 = vadd.f32 %v477, %v525
      %v542 = vadd.f32 %v478, %v526
      %v543 = vadd.f32 %v479, %v527
      %v544 = vadd.f32 %v480, %v528
      %545 = vset.pattern.permute.xlu0 2
      %546 = vperm.xlu0 %545, %v425
      %v547 = vpop.permute.xlu0 %546
      %549 = vset.pattern.permute.xlu0 2
      %550 = vperm.xlu0 %549, %v426
      %v551 = vpop.permute.xlu0 %550
      %v553 = vperm.slane %v421, 2
      %v554 = vperm.slane %v421, 6
      %v555 = vperm.slane %v422, 2
      %v556 = vperm.slane %v422, 6
      %v557 = vperm.slane %v423, 2
      %v558 = vperm.slane %v423, 6
      %v559 = vperm.slane %v424, 2
      %v560 = vperm.slane %v424, 6
      %v569 = vperm.slane %v553, 2
      %v570 = vperm.slane %v554, 2
      %v571 = vperm.slane %v555, 2
      %v572 = vperm.slane %v556, 2
      %v573 = vperm.slane %v557, 2
      %v574 = vperm.slane %v558, 2
      %v575 = vperm.slane %v559, 2
      %v576 = vperm.slane %v560, 2
      %v577 = vmul.f32 %v547, %v569
      %v578 = vmul.f32 %v547, %v570
      %v579 = vmul.f32 %v547, %v571
      %v580 = vmul.f32 %v547, %v572
      %v581 = vmul.f32 %v547, %v573
      %v582 = vmul.f32 %v547, %v574
      %v583 = vmul.f32 %v547, %v575
      %v584 = vmul.f32 %v547, %v576
      %v585 = vmul.f32 %v551, %v569
      %v586 = vmul.f32 %v551, %v570
      %v587 = vmul.f32 %v551, %v571
      %v588 = vmul.f32 %v551, %v572
      %v589 = vmul.f32 %v551, %v573
      %v590 = vmul.f32 %v551, %v574
      %v591 = vmul.f32 %v551, %v575
      %v592 = vmul.f32 %v551, %v576
      %v593 = vadd.f32 %v529, %v577
      %v594 = vadd.f32 %v530, %v578
      %v595 = vadd.f32 %v531, %v579
      %v596 = vadd.f32 %v532, %v580
      %v597 = vadd.f32 %v533, %v581
      %v598 = vadd.f32 %v534, %v582
      %v599 = vadd.f32 %v535, %v583
      %v600 = vadd.f32 %v536, %v584
      %v601 = vadd.f32 %v537, %v585
      %v602 = vadd.f32 %v538, %v586
      %v603 = vadd.f32 %v539, %v587
      %v604 = vadd.f32 %v540, %v588
      %v605 = vadd.f32 %v541, %v589
      %v606 = vadd.f32 %v542, %v590
      %v607 = vadd.f32 %v543, %v591
      %v608 = vadd.f32 %v544, %v592
      %v609 = vtanh.pop %v593
      %v610 = vtanh.pop %v594
      %v611 = vtanh.pop %v595
      %v612 = vtanh.pop %v596
      %v613 = vtanh.pop %v597
      %v614 = vtanh.pop %v598
      %v615 = vtanh.pop %v599
      %v616 = vtanh.pop %v600
      %v617 = vtanh.pop %v601
      %v618 = vtanh.pop %v602
      %v619 = vtanh.pop %v603
      %v620 = vtanh.pop %v604
      %v621 = vtanh.pop %v605
      %v622 = vtanh.pop %v606
      %v623 = vtanh.pop %v607
      %v624 = vtanh.pop %v608
      %625 = vrot.lane.b32.xlu0 %v609, 33
      %v626 = vpop.permute.xlu0 %625
      %627 = vrot.lane.b32.xlu0 %v617, 33
      %v628 = vpop.permute.xlu0 %627
      %629 = vrot.lane.b32.xlu0 %v610, 33
      %v630 = vpop.permute.xlu0 %629
      %631 = vrot.lane.b32.xlu0 %v618, 33
      %v632 = vpop.permute.xlu0 %631
      %633 = vrot.lane.b32.xlu0 %v611, 33
      %v634 = vpop.permute.xlu0 %633
      %635 = vrot.lane.b32.xlu0 %v619, 33
      %v636 = vpop.permute.xlu0 %635
      %637 = vrot.lane.b32.xlu0 %v612, 33
      %v638 = vpop.permute.xlu0 %637
      %639 = vrot.lane.b32.xlu0 %v620, 33
      %v640 = vpop.permute.xlu0 %639
      %641 = vrot.lane.b32.xlu0 %v613, 33
      %v642 = vpop.permute.xlu0 %641
      %643 = vrot.lane.b32.xlu0 %v621, 33
      %v644 = vpop.permute.xlu0 %643
      %645 = vrot.lane.b32.xlu0 %v614, 33
      %v646 = vpop.permute.xlu0 %645
      %647 = vrot.lane.b32.xlu0 %v622, 33
      %v648 = vpop.permute.xlu0 %647
      %649 = vrot.lane.b32.xlu0 %v615, 33
      %v650 = vpop.permute.xlu0 %649
      %651 = vrot.lane.b32.xlu0 %v623, 33
      %v652 = vpop.permute.xlu0 %651
      %653 = vrot.lane.b32.xlu0 %v616, 33
      %v654 = vpop.permute.xlu0 %653
      %655 = vrot.lane.b32.xlu0 %v624, 33
      %v656 = vpop.permute.xlu0 %655
      %v657 = vlaneseq
      %v658 = vand.u32 %v657, 127
      %vm659 = vcmp.lt.s32.totalorder %v658, 33
      %v660 = vsel %vm659, %v650, %v654
      %v661 = vsel %vm659, %v652, %v656
      %v662 = vsel %vm659, %v646, %v650
      %v663 = vsel %vm659, %v648, %v652
      %v664 = vsel %vm659, %v642, %v646
      %v665 = vsel %vm659, %v644, %v648
      %v666 = vsel %vm659, %v638, %v642
      %v667 = vsel %vm659, %v640, %v644
      %v668 = vsel %vm659, %v634, %v638
      %v669 = vsel %vm659, %v636, %v640
      %v670 = vsel %vm659, %v630, %v634
      %v671 = vsel %vm659, %v632, %v636
      %v672 = vsel %vm659, %v626, %v630
      %v673 = vsel %vm659, %v628, %v632
      %v674 = vsel %vm659, %v654, %v626
      %v675 = vsel %vm659, %v656, %v628
      %v676 = vld [vmem:[%s8] sm:$0x11]
      %v677 = vld [vmem:[%s8 + $0x8] sm:$0x11]
      %v678 = vld [vmem:[%s8 + $0x10] sm:$0x11]
      %v679 = vld [vmem:[%s8 + $0x18] sm:$0x11]
      %v680 = vunpack.c.l.bf16 %v676
      %v681 = vunpack.c.h.bf16 %v676
      %v682 = vunpack.c.l.bf16 %v677
      %v683 = vunpack.c.h.bf16 %v677
      %v684 = vunpack.c.l.bf16 %v678
      %v685 = vunpack.c.h.bf16 %v678
      %v686 = vunpack.c.l.bf16 %v679
      %v687 = vunpack.c.h.bf16 %v679
      %v688 = vperm.slane %v680, 0
      %v689 = vperm.slane %v681, 0
      %v690 = vperm.slane %v682, 0
      %v691 = vperm.slane %v683, 0
      %v692 = vperm.slane %v684, 0
      %v693 = vperm.slane %v685, 0
      %v694 = vperm.slane %v686, 0
      %v695 = vperm.slane %v687, 0
      %v696 = vmul.f32 %v674, %v688
      %v697 = vmul.f32 %v672, %v689
      %v698 = vmul.f32 %v670, %v690
      %v699 = vmul.f32 %v668, %v691
      %v700 = vmul.f32 %v666, %v692
      %v701 = vmul.f32 %v664, %v693
      %v702 = vmul.f32 %v662, %v694
      %v703 = vmul.f32 %v660, %v695
      %v704 = vmul.f32 %v675, %v688
      %v705 = vmul.f32 %v673, %v689
      %v706 = vmul.f32 %v671, %v690
      %v707 = vmul.f32 %v669, %v691
      %v708 = vmul.f32 %v667, %v692
      %v709 = vmul.f32 %v665, %v693
      %v710 = vmul.f32 %v663, %v694
      %v711 = vmul.f32 %v661, %v695
      %v712 = vpack.c.bf16 %v704, %v696
      %v713 = vpack.c.bf16 %v705, %v697
      %v714 = vpack.c.bf16 %v706, %v698
      %v715 = vpack.c.bf16 %v707, %v699
      %v716 = vpack.c.bf16 %v708, %v700
      %v717 = vpack.c.bf16 %v709, %v701
      %v718 = vpack.c.bf16 %v710, %v702
      %v719 = vpack.c.bf16 %v711, %v703
      %v720 = vld [vmem:[%s4] sm:$0xf]
      %v721 = vld [vmem:[%s4 + $0x4] sm:$0xf]
      %722 = vrot.lane.b32.xlu0 %v609, 32
      %v723 = vpop.permute.xlu0 %722
      %724 = vrot.lane.b32.xlu0 %v617, 32
      %v725 = vpop.permute.xlu0 %724
      %726 = vrot.lane.b32.xlu0 %v610, 32
      %v727 = vpop.permute.xlu0 %726
      %728 = vrot.lane.b32.xlu0 %v618, 32
      %v729 = vpop.permute.xlu0 %728
      %730 = vrot.lane.b32.xlu0 %v611, 32
      %v731 = vpop.permute.xlu0 %730
      %732 = vrot.lane.b32.xlu0 %v619, 32
      %v733 = vpop.permute.xlu0 %732
      %734 = vrot.lane.b32.xlu0 %v612, 32
      %v735 = vpop.permute.xlu0 %734
      %736 = vrot.lane.b32.xlu0 %v620, 32
      %v737 = vpop.permute.xlu0 %736
      %738 = vrot.lane.b32.xlu0 %v613, 32
      %v739 = vpop.permute.xlu0 %738
      %740 = vrot.lane.b32.xlu0 %v621, 32
      %v741 = vpop.permute.xlu0 %740
      %742 = vrot.lane.b32.xlu0 %v614, 32
      %v743 = vpop.permute.xlu0 %742
      %744 = vrot.lane.b32.xlu0 %v622, 32
      %v745 = vpop.permute.xlu0 %744
      %746 = vrot.lane.b32.xlu0 %v615, 32
      %v747 = vpop.permute.xlu0 %746
      %748 = vrot.lane.b32.xlu0 %v623, 32
      %v749 = vpop.permute.xlu0 %748
      %750 = vrot.lane.b32.xlu0 %v616, 32
      %v751 = vpop.permute.xlu0 %750
      %752 = vrot.lane.b32.xlu0 %v624, 32
      %v753 = vpop.permute.xlu0 %752
      %vm754 = vcmp.lt.s32.totalorder %v658, 32
      %v755 = vsel %vm754, %v747, %v751
      %v756 = vsel %vm754, %v749, %v753
      %v757 = vsel %vm754, %v743, %v747
      %v758 = vsel %vm754, %v745, %v749
      %v759 = vsel %vm754, %v739, %v743
      %v760 = vsel %vm754, %v741, %v745
      %v761 = vsel %vm754, %v735, %v739
      %v762 = vsel %vm754, %v737, %v741
      %v763 = vsel %vm754, %v731, %v735
      %v764 = vsel %vm754, %v733, %v737
      %v765 = vsel %vm754, %v727, %v731
      %v766 = vsel %vm754, %v729, %v733
      %v767 = vsel %vm754, %v723, %v727
      %v768 = vsel %vm754, %v725, %v729
      %v769 = vsel %vm754, %v751, %v723
      %v770 = vsel %vm754, %v753, %v725
      %v771 = vperm.slane %v680, 1
      %v772 = vperm.slane %v681, 1
      %v773 = vperm.slane %v682, 1
      %v774 = vperm.slane %v683, 1
      %v775 = vperm.slane %v684, 1
      %v776 = vperm.slane %v685, 1
      %v777 = vperm.slane %v686, 1
      %v778 = vperm.slane %v687, 1
      %v779 = vmul.f32 %v769, %v771
      %v780 = vmul.f32 %v767, %v772
      %v781 = vmul.f32 %v765, %v773
      %v782 = vmul.f32 %v763, %v774
      %v783 = vmul.f32 %v761, %v775
      %v784 = vmul.f32 %v759, %v776
      %v785 = vmul.f32 %v757, %v777
      %v786 = vmul.f32 %v755, %v778
      %v787 = vmul.f32 %v770, %v771
      %v788 = vmul.f32 %v768, %v772
      %v789 = vmul.f32 %v766, %v773
      %v790 = vmul.f32 %v764, %v774
      %v791 = vmul.f32 %v762, %v775
      %v792 = vmul.f32 %v760, %v776
      %v793 = vmul.f32 %v758, %v777
      %v794 = vmul.f32 %v756, %v778
      %v795 = vpack.c.bf16 %v787, %v779
      %v796 = vpack.c.bf16 %v788, %v780
      %v797 = vpack.c.bf16 %v789, %v781
      %v798 = vpack.c.bf16 %v790, %v782
      %v799 = vpack.c.bf16 %v791, %v783
      %v800 = vpack.c.bf16 %v792, %v784
      %v801 = vpack.c.bf16 %v793, %v785
      %v802 = vpack.c.bf16 %v794, %v786
      %v803 = vld [vmem:[%s4 + $0x8] sm:$0xf]
      %v804 = vld [vmem:[%s4 + $0xc] sm:$0xf]
      %v807 = vunpack.c.l.b16 %v803
      %v808 = vunpack.c.l.b16 %v804
      %v809 = vpack.c.b16 %v808, %v807
      %vm810 = vcmask 130048
      %v812 = vsel %vm810, %v809, 0
      %814 = vmatpush.bf16.msra.mxu0 0
      %815 = vmatpush.bf16.msra.mxu0 0
      %816 = vmatpush.bf16.msra.mxu0 0
      %817 = vmatpush.bf16.msra.mxu0 0
      %818 = vmatpush.bf16.msra.mxu0 0
      %819 = vmatpush.bf16.msra.mxu0 0
      %820 = vmatpush.bf16.msra.mxu0 0
      %821 = vmatpush.bf16.msra.mxu0 %v795
      %822 = vmatmul.bf16.gmra.mxu0 %v812
      %v823 = vpop.f32.mrf.mxu0
      %v824 = vadd.f32 0.0, %v823
      %v825 = vpop.f32.mrf.mxu0
      %v826 = vadd.f32 0.0, %v825
      %827 = vdwg.mxu0
      %828 = vmatpush.bf16.msra.mxu0 0
      %829 = vmatpush.bf16.msra.mxu0 0
      %830 = vmatpush.bf16.msra.mxu0 0
      %831 = vmatpush.bf16.msra.mxu0 0
      %832 = vmatpush.bf16.msra.mxu0 0
      %833 = vmatpush.bf16.msra.mxu0 0
      %834 = vmatpush.bf16.msra.mxu0 0
      %835 = vmatpush.bf16.msra.mxu0 %v796
      %836 = vmatmul.bf16.gmra.mxu0 %v812
      %v837 = vpop.f32.mrf.mxu0
      %v838 = vadd.f32 0.0, %v837
      %v839 = vpop.f32.mrf.mxu0
      %v840 = vadd.f32 0.0, %v839
      %841 = vdwg.mxu0
      %842 = vmatpush.bf16.msra.mxu0 0
      %843 = vmatpush.bf16.msra.mxu0 0
      %844 = vmatpush.bf16.msra.mxu0 0
      %845 = vmatpush.bf16.msra.mxu0 0
      %846 = vmatpush.bf16.msra.mxu0 0
      %847 = vmatpush.bf16.msra.mxu0 0
      %848 = vmatpush.bf16.msra.mxu0 0
      %849 = vmatpush.bf16.msra.mxu0 %v797
      %850 = vmatmul.bf16.gmra.mxu0 %v812
      %v851 = vpop.f32.mrf.mxu0
      %v852 = vadd.f32 0.0, %v851
      %v853 = vpop.f32.mrf.mxu0
      %v854 = vadd.f32 0.0, %v853
      %855 = vdwg.mxu0
      %856 = vmatpush.bf16.msra.mxu0 0
      %857 = vmatpush.bf16.msra.mxu0 0
      %858 = vmatpush.bf16.msra.mxu0 0
      %859 = vmatpush.bf16.msra.mxu0 0
      %860 = vmatpush.bf16.msra.mxu0 0
      %861 = vmatpush.bf16.msra.mxu0 0
      %862 = vmatpush.bf16.msra.mxu0 0
      %863 = vmatpush.bf16.msra.mxu0 %v798
      %864 = vmatmul.bf16.gmra.mxu0 %v812
      %v865 = vpop.f32.mrf.mxu0
      %v866 = vadd.f32 0.0, %v865
      %v867 = vpop.f32.mrf.mxu0
      %v868 = vadd.f32 0.0, %v867
      %869 = vdwg.mxu0
      %870 = vmatpush.bf16.msra.mxu0 0
      %871 = vmatpush.bf16.msra.mxu0 0
      %872 = vmatpush.bf16.msra.mxu0 0
      %873 = vmatpush.bf16.msra.mxu0 0
      %874 = vmatpush.bf16.msra.mxu0 0
      %875 = vmatpush.bf16.msra.mxu0 0
      %876 = vmatpush.bf16.msra.mxu0 0
      %877 = vmatpush.bf16.msra.mxu0 %v799
      %878 = vmatmul.bf16.gmra.mxu0 %v812
      %v879 = vpop.f32.mrf.mxu0
      %v880 = vadd.f32 0.0, %v879
      %v881 = vpop.f32.mrf.mxu0
      %v882 = vadd.f32 0.0, %v881
      %883 = vdwg.mxu0
      %884 = vmatpush.bf16.msra.mxu0 0
      %885 = vmatpush.bf16.msra.mxu0 0
      %886 = vmatpush.bf16.msra.mxu0 0
      %887 = vmatpush.bf16.msra.mxu0 0
      %888 = vmatpush.bf16.msra.mxu0 0
      %889 = vmatpush.bf16.msra.mxu0 0
      %890 = vmatpush.bf16.msra.mxu0 0
      %891 = vmatpush.bf16.msra.mxu0 %v800
      %892 = vmatmul.bf16.gmra.mxu0 %v812
      %v893 = vpop.f32.mrf.mxu0
      %v894 = vadd.f32 0.0, %v893
      %v895 = vpop.f32.mrf.mxu0
      %v896 = vadd.f32 0.0, %v895
      %897 = vdwg.mxu0
      %898 = vmatpush.bf16.msra.mxu0 0
      %899 = vmatpush.bf16.msra.mxu0 0
      %900 = vmatpush.bf16.msra.mxu0 0
      %901 = vmatpush.bf16.msra.mxu0 0
      %902 = vmatpush.bf16.msra.mxu0 0
      %903 = vmatpush.bf16.msra.mxu0 0
      %904 = vmatpush.bf16.msra.mxu0 0
      %905 = vmatpush.bf16.msra.mxu0 %v801
      %906 = vmatmul.bf16.gmra.mxu0 %v812
      %v907 = vpop.f32.mrf.mxu0
      %v908 = vadd.f32 0.0, %v907
      %v909 = vpop.f32.mrf.mxu0
      %v910 = vadd.f32 0.0, %v909
      %911 = vdwg.mxu0
      %912 = vmatpush.bf16.msra.mxu0 0
      %913 = vmatpush.bf16.msra.mxu0 0
      %914 = vmatpush.bf16.msra.mxu0 0
      %915 = vmatpush.bf16.msra.mxu0 0
      %916 = vmatpush.bf16.msra.mxu0 0
      %917 = vmatpush.bf16.msra.mxu0 0
      %918 = vmatpush.bf16.msra.mxu0 0
      %919 = vmatpush.bf16.msra.mxu0 %v802
      %920 = vmatmul.bf16.gmra.mxu0 %v812
      %v921 = vpop.f32.mrf.mxu0
      %v922 = vadd.f32 0.0, %v921
      %v923 = vpop.f32.mrf.mxu0
      %v924 = vadd.f32 0.0, %v923
      %925 = vdwg.mxu0
      %v928 = vunpack.c.l.b16 %v720
      %v929 = vunpack.c.l.b16 %v721
      %v930 = vpack.c.b16 %v929, %v928
      %v932 = vsel %vm810, %v930, 0
      %934 = vmatpush.bf16.msra.mxu0 0
      %935 = vmatpush.bf16.msra.mxu0 0
      %936 = vmatpush.bf16.msra.mxu0 0
      %937 = vmatpush.bf16.msra.mxu0 0
      %938 = vmatpush.bf16.msra.mxu0 0
      %939 = vmatpush.bf16.msra.mxu0 0
      %940 = vmatpush.bf16.msra.mxu0 0
      %941 = vmatpush.bf16.msra.mxu0 %v712
      %942 = vmatmul.bf16.gmra.mxu0 %v932
      %v943 = vpop.f32.mrf.mxu0
      %v944 = vadd.f32 %v824, %v943
      %v945 = vpop.f32.mrf.mxu0
      %v946 = vadd.f32 %v826, %v945
      %947 = vdwg.mxu0
      %948 = vmatpush.bf16.msra.mxu0 0
      %949 = vmatpush.bf16.msra.mxu0 0
      %950 = vmatpush.bf16.msra.mxu0 0
      %951 = vmatpush.bf16.msra.mxu0 0
      %952 = vmatpush.bf16.msra.mxu0 0
      %953 = vmatpush.bf16.msra.mxu0 0
      %954 = vmatpush.bf16.msra.mxu0 0
      %955 = vmatpush.bf16.msra.mxu0 %v713
      %956 = vmatmul.bf16.gmra.mxu0 %v932
      %v957 = vpop.f32.mrf.mxu0
      %v958 = vadd.f32 %v838, %v957
      %v959 = vpop.f32.mrf.mxu0
      %v960 = vadd.f32 %v840, %v959
      %961 = vdwg.mxu0
      %962 = vmatpush.bf16.msra.mxu0 0
      %963 = vmatpush.bf16.msra.mxu0 0
      %964 = vmatpush.bf16.msra.mxu0 0
      %965 = vmatpush.bf16.msra.mxu0 0
      %966 = vmatpush.bf16.msra.mxu0 0
      %967 = vmatpush.bf16.msra.mxu0 0
      %968 = vmatpush.bf16.msra.mxu0 0
      %969 = vmatpush.bf16.msra.mxu0 %v714
      %970 = vmatmul.bf16.gmra.mxu0 %v932
      %v971 = vpop.f32.mrf.mxu0
      %v972 = vadd.f32 %v852, %v971
      %v973 = vpop.f32.mrf.mxu0
      %v974 = vadd.f32 %v854, %v973
      %975 = vdwg.mxu0
      %976 = vmatpush.bf16.msra.mxu0 0
      %977 = vmatpush.bf16.msra.mxu0 0
      %978 = vmatpush.bf16.msra.mxu0 0
      %979 = vmatpush.bf16.msra.mxu0 0
      %980 = vmatpush.bf16.msra.mxu0 0
      %981 = vmatpush.bf16.msra.mxu0 0
      %982 = vmatpush.bf16.msra.mxu0 0
      %983 = vmatpush.bf16.msra.mxu0 %v715
      %984 = vmatmul.bf16.gmra.mxu0 %v932
      %v985 = vpop.f32.mrf.mxu0
      %v986 = vadd.f32 %v866, %v985
      %v987 = vpop.f32.mrf.mxu0
      %v988 = vadd.f32 %v868, %v987
      %989 = vdwg.mxu0
      %990 = vmatpush.bf16.msra.mxu0 0
      %991 = vmatpush.bf16.msra.mxu0 0
      %992 = vmatpush.bf16.msra.mxu0 0
      %993 = vmatpush.bf16.msra.mxu0 0
      %994 = vmatpush.bf16.msra.mxu0 0
      %995 = vmatpush.bf16.msra.mxu0 0
      %996 = vmatpush.bf16.msra.mxu0 0
      %997 = vmatpush.bf16.msra.mxu0 %v716
      %998 = vmatmul.bf16.gmra.mxu0 %v932
      %v999 = vpop.f32.mrf.mxu0
      %v1000 = vadd.f32 %v880, %v999
      %v1001 = vpop.f32.mrf.mxu0
      %v1002 = vadd.f32 %v882, %v1001
      %1003 = vdwg.mxu0
      %1004 = vmatpush.bf16.msra.mxu0 0
      %1005 = vmatpush.bf16.msra.mxu0 0
      %1006 = vmatpush.bf16.msra.mxu0 0
      %1007 = vmatpush.bf16.msra.mxu0 0
      %1008 = vmatpush.bf16.msra.mxu0 0
      %1009 = vmatpush.bf16.msra.mxu0 0
      %1010 = vmatpush.bf16.msra.mxu0 0
      %1011 = vmatpush.bf16.msra.mxu0 %v717
      %1012 = vmatmul.bf16.gmra.mxu0 %v932
      %v1013 = vpop.f32.mrf.mxu0
      %v1014 = vadd.f32 %v894, %v1013
      %v1015 = vpop.f32.mrf.mxu0
      %v1016 = vadd.f32 %v896, %v1015
      %1017 = vdwg.mxu0
      %1018 = vmatpush.bf16.msra.mxu0 0
      %1019 = vmatpush.bf16.msra.mxu0 0
      %1020 = vmatpush.bf16.msra.mxu0 0
      %1021 = vmatpush.bf16.msra.mxu0 0
      %1022 = vmatpush.bf16.msra.mxu0 0
      %1023 = vmatpush.bf16.msra.mxu0 0
      %1024 = vmatpush.bf16.msra.mxu0 0
      %1025 = vmatpush.bf16.msra.mxu0 %v718
      %1026 = vmatmul.bf16.gmra.mxu0 %v932
      %v1027 = vpop.f32.mrf.mxu0
      %v1028 = vadd.f32 %v908, %v1027
      %v1029 = vpop.f32.mrf.mxu0
      %v1030 = vadd.f32 %v910, %v1029
      %1031 = vdwg.mxu0
      %1032 = vmatpush.bf16.msra.mxu0 0
      %1033 = vmatpush.bf16.msra.mxu0 0
      %1034 = vmatpush.bf16.msra.mxu0 0
      %1035 = vmatpush.bf16.msra.mxu0 0
      %1036 = vmatpush.bf16.msra.mxu0 0
      %1037 = vmatpush.bf16.msra.mxu0 0
      %1038 = vmatpush.bf16.msra.mxu0 0
      %1039 = vmatpush.bf16.msra.mxu0 %v719
      %1040 = vmatmul.bf16.gmra.mxu0 %v932
      %v1041 = vpop.f32.mrf.mxu0
      %v1042 = vadd.f32 %v922, %v1041
      %v1043 = vpop.f32.mrf.mxu0
      %v1044 = vadd.f32 %v924, %v1043
      %1045 = vdwg.mxu0
      %1046 = vrot.lane.b32.xlu0 %v609, 31
      %v1047 = vpop.permute.xlu0 %1046
      %1048 = vrot.lane.b32.xlu0 %v617, 31
      %v1049 = vpop.permute.xlu0 %1048
      %1050 = vrot.lane.b32.xlu0 %v610, 31
      %v1051 = vpop.permute.xlu0 %1050
      %1052 = vrot.lane.b32.xlu0 %v618, 31
      %v1053 = vpop.permute.xlu0 %1052
      %1054 = vrot.lane.b32.xlu0 %v611, 31
      %v1055 = vpop.permute.xlu0 %1054
      %1056 = vrot.lane.b32.xlu0 %v619, 31
      %v1057 = vpop.permute.xlu0 %1056
      %1058 = vrot.lane.b32.xlu0 %v612, 31
      %v1059 = vpop.permute.xlu0 %1058
      %1060 = vrot.lane.b32.xlu0 %v620, 31
      %v1061 = vpop.permute.xlu0 %1060
      %1062 = vrot.lane.b32.xlu0 %v613, 31
      %v1063 = vpop.permute.xlu0 %1062
      %1064 = vrot.lane.b32.xlu0 %v621, 31
      %v1065 = vpop.permute.xlu0 %1064
      %1066 = vrot.lane.b32.xlu0 %v614, 31
      %v1067 = vpop.permute.xlu0 %1066
      %1068 = vrot.lane.b32.xlu0 %v622, 31
      %v1069 = vpop.permute.xlu0 %1068
      %1070 = vrot.lane.b32.xlu0 %v615, 31
      %v1071 = vpop.permute.xlu0 %1070
      %1072 = vrot.lane.b32.xlu0 %v623, 31
      %v1073 = vpop.permute.xlu0 %1072
      %1074 = vrot.lane.b32.xlu0 %v616, 31
      %v1075 = vpop.permute.xlu0 %1074
      %1076 = vrot.lane.b32.xlu0 %v624, 31
      %v1077 = vpop.permute.xlu0 %1076
      %vm1078 = vcmp.lt.s32.totalorder %v658, 31
      %v1079 = vsel %vm1078, %v1071, %v1075
      %v1080 = vsel %vm1078, %v1073, %v1077
      %v1081 = vsel %vm1078, %v1067, %v1071
      %v1082 = vsel %vm1078, %v1069, %v1073
      %v1083 = vsel %vm1078, %v1063, %v1067
      %v1084 = vsel %vm1078, %v1065, %v1069
      %v1085 = vsel %vm1078, %v1059, %v1063
      %v1086 = vsel %vm1078, %v1061, %v1065
      %v1087 = vsel %vm1078, %v1055, %v1059
      %v1088 = vsel %vm1078, %v1057, %v1061
      %v1089 = vsel %vm1078, %v1051, %v1055
      %v1090 = vsel %vm1078, %v1053, %v1057
      %v1091 = vsel %vm1078, %v1047, %v1051
      %v1092 = vsel %vm1078, %v1049, %v1053
      %v1093 = vsel %vm1078, %v1075, %v1047
      %v1094 = vsel %vm1078, %v1077, %v1049
      %v1095 = vld [vmem:[%s8] sm:$0x22]
      %v1096 = vld [vmem:[%s8 + $0x8] sm:$0x22]
      %v1097 = vld [vmem:[%s8 + $0x10] sm:$0x22]
      %v1098 = vld [vmem:[%s8 + $0x18] sm:$0x22]
      %v1099 = vunpack.c.l.bf16 %v1095
      %v1100 = vunpack.c.h.bf16 %v1095
      %v1101 = vunpack.c.l.bf16 %v1096
      %v1102 = vunpack.c.h.bf16 %v1096
      %v1103 = vunpack.c.l.bf16 %v1097
      %v1104 = vunpack.c.h.bf16 %v1097
      %v1105 = vunpack.c.l.bf16 %v1098
      %v1106 = vunpack.c.h.bf16 %v1098
      %v1107 = vperm.slane %v1099, 2
      %v1108 = vperm.slane %v1100, 2
      %v1109 = vperm.slane %v1101, 2
      %v1110 = vperm.slane %v1102, 2
      %v1111 = vperm.slane %v1103, 2
      %v1112 = vperm.slane %v1104, 2
      %v1113 = vperm.slane %v1105, 2
      %v1114 = vperm.slane %v1106, 2
      %v1115 = vmul.f32 %v1093, %v1107
      %v1116 = vmul.f32 %v1091, %v1108
      %v1117 = vmul.f32 %v1089, %v1109
      %v1118 = vmul.f32 %v1087, %v1110
      %v1119 = vmul.f32 %v1085, %v1111
      %v1120 = vmul.f32 %v1083, %v1112
      %v1121 = vmul.f32 %v1081, %v1113
      %v1122 = vmul.f32 %v1079, %v1114
      %v1123 = vmul.f32 %v1094, %v1107
      %v1124 = vmul.f32 %v1092, %v1108
      %v1125 = vmul.f32 %v1090, %v1109
      %v1126 = vmul.f32 %v1088, %v1110
      %v1127 = vmul.f32 %v1086, %v1111
      %v1128 = vmul.f32 %v1084, %v1112
      %v1129 = vmul.f32 %v1082, %v1113
      %v1130 = vmul.f32 %v1080, %v1114
      %v1131 = vpack.c.bf16 %v1123, %v1115
      %v1132 = vpack.c.bf16 %v1124, %v1116
      %v1133 = vpack.c.bf16 %v1125, %v1117
      %v1134 = vpack.c.bf16 %v1126, %v1118
      %v1135 = vpack.c.bf16 %v1127, %v1119
      %v1136 = vpack.c.bf16 %v1128, %v1120
      %v1137 = vpack.c.bf16 %v1129, %v1121
      %v1138 = vpack.c.bf16 %v1130, %v1122
      %v1139 = vld [vmem:[%s4 + $0x10] sm:$0xf]
      %v1140 = vld [vmem:[%s4 + $0x14] sm:$0xf]
      %v1143 = vunpack.c.l.b16 %v1139
      %v1144 = vunpack.c.l.b16 %v1140
      %v1145 = vpack.c.b16 %v1144, %v1143
      %v1147 = vsel %vm810, %v1145, 0
      %1149 = vmatpush.bf16.msra.mxu0 0
      %1150 = vmatpush.bf16.msra.mxu0 0
      %1151 = vmatpush.bf16.msra.mxu0 0
      %1152 = vmatpush.bf16.msra.mxu0 0
      %1153 = vmatpush.bf16.msra.mxu0 0
      %1154 = vmatpush.bf16.msra.mxu0 0
      %1155 = vmatpush.bf16.msra.mxu0 0
      %1156 = vmatpush.bf16.msra.mxu0 %v1131
      %1157 = vmatmul.bf16.gmra.mxu0 %v1147
      %v1158 = vpop.f32.mrf.mxu0
      %v1159 = vadd.f32 0.0, %v1158
      %v1160 = vpop.f32.mrf.mxu0
      %v1161 = vadd.f32 0.0, %v1160
      %1162 = vdwg.mxu0
      %1163 = vmatpush.bf16.msra.mxu0 0
      %1164 = vmatpush.bf16.msra.mxu0 0
      %1165 = vmatpush.bf16.msra.mxu0 0
      %1166 = vmatpush.bf16.msra.mxu0 0
      %1167 = vmatpush.bf16.msra.mxu0 0
      %1168 = vmatpush.bf16.msra.mxu0 0
      %1169 = vmatpush.bf16.msra.mxu0 0
      %1170 = vmatpush.bf16.msra.mxu0 %v1132
      %1171 = vmatmul.bf16.gmra.mxu0 %v1147
      %v1172 = vpop.f32.mrf.mxu0
      %v1173 = vadd.f32 0.0, %v1172
      %v1174 = vpop.f32.mrf.mxu0
      %v1175 = vadd.f32 0.0, %v1174
      %1176 = vdwg.mxu0
      %1177 = vmatpush.bf16.msra.mxu0 0
      %1178 = vmatpush.bf16.msra.mxu0 0
      %1179 = vmatpush.bf16.msra.mxu0 0
      %1180 = vmatpush.bf16.msra.mxu0 0
      %1181 = vmatpush.bf16.msra.mxu0 0
      %1182 = vmatpush.bf16.msra.mxu0 0
      %1183 = vmatpush.bf16.msra.mxu0 0
      %1184 = vmatpush.bf16.msra.mxu0 %v1133
      %1185 = vmatmul.bf16.gmra.mxu0 %v1147
      %v1186 = vpop.f32.mrf.mxu0
      %v1187 = vadd.f32 0.0, %v1186
      %v1188 = vpop.f32.mrf.mxu0
      %v1189 = vadd.f32 0.0, %v1188
      %1190 = vdwg.mxu0
      %1191 = vmatpush.bf16.msra.mxu0 0
      %1192 = vmatpush.bf16.msra.mxu0 0
      %1193 = vmatpush.bf16.msra.mxu0 0
      %1194 = vmatpush.bf16.msra.mxu0 0
      %1195 = vmatpush.bf16.msra.mxu0 0
      %1196 = vmatpush.bf16.msra.mxu0 0
      %1197 = vmatpush.bf16.msra.mxu0 0
      %1198 = vmatpush.bf16.msra.mxu0 %v1134
      %1199 = vmatmul.bf16.gmra.mxu0 %v1147
      %v1200 = vpop.f32.mrf.mxu0
      %v1201 = vadd.f32 0.0, %v1200
      %v1202 = vpop.f32.mrf.mxu0
      %v1203 = vadd.f32 0.0, %v1202
      %1204 = vdwg.mxu0
      %1205 = vmatpush.bf16.msra.mxu0 0
      %1206 = vmatpush.bf16.msra.mxu0 0
      %1207 = vmatpush.bf16.msra.mxu0 0
      %1208 = vmatpush.bf16.msra.mxu0 0
      %1209 = vmatpush.bf16.msra.mxu0 0
      %1210 = vmatpush.bf16.msra.mxu0 0
      %1211 = vmatpush.bf16.msra.mxu0 0
      %1212 = vmatpush.bf16.msra.mxu0 %v1135
      %1213 = vmatmul.bf16.gmra.mxu0 %v1147
      %v1214 = vpop.f32.mrf.mxu0
      %v1215 = vadd.f32 0.0, %v1214
      %v1216 = vpop.f32.mrf.mxu0
      %v1217 = vadd.f32 0.0, %v1216
      %1218 = vdwg.mxu0
      %1219 = vmatpush.bf16.msra.mxu0 0
      %1220 = vmatpush.bf16.msra.mxu0 0
      %1221 = vmatpush.bf16.msra.mxu0 0
      %1222 = vmatpush.bf16.msra.mxu0 0
      %1223 = vmatpush.bf16.msra.mxu0 0
      %1224 = vmatpush.bf16.msra.mxu0 0
      %1225 = vmatpush.bf16.msra.mxu0 0
      %1226 = vmatpush.bf16.msra.mxu0 %v1136
      %1227 = vmatmul.bf16.gmra.mxu0 %v1147
      %v1228 = vpop.f32.mrf.mxu0
      %v1229 = vadd.f32 0.0, %v1228
      %v1230 = vpop.f32.mrf.mxu0
      %v1231 = vadd.f32 0.0, %v1230
      %1232 = vdwg.mxu0
      %1233 = vmatpush.bf16.msra.mxu0 0
      %1234 = vmatpush.bf16.msra.mxu0 0
      %1235 = vmatpush.bf16.msra.mxu0 0
      %1236 = vmatpush.bf16.msra.mxu0 0
      %1237 = vmatpush.bf16.msra.mxu0 0
      %1238 = vmatpush.bf16.msra.mxu0 0
      %1239 = vmatpush.bf16.msra.mxu0 0
      %1240 = vmatpush.bf16.msra.mxu0 %v1137
      %1241 = vmatmul.bf16.gmra.mxu0 %v1147
      %v1242 = vpop.f32.mrf.mxu0
      %v1243 = vadd.f32 0.0, %v1242
      %v1244 = vpop.f32.mrf.mxu0
      %v1245 = vadd.f32 0.0, %v1244
      %1246 = vdwg.mxu0
      %1247 = vmatpush.bf16.msra.mxu0 0
      %1248 = vmatpush.bf16.msra.mxu0 0
      %1249 = vmatpush.bf16.msra.mxu0 0
      %1250 = vmatpush.bf16.msra.mxu0 0
      %1251 = vmatpush.bf16.msra.mxu0 0
      %1252 = vmatpush.bf16.msra.mxu0 0
      %1253 = vmatpush.bf16.msra.mxu0 0
      %1254 = vmatpush.bf16.msra.mxu0 %v1138
      %1255 = vmatmul.bf16.gmra.mxu0 %v1147
      %v1256 = vpop.f32.mrf.mxu0
      %v1257 = vadd.f32 0.0, %v1256
      %v1258 = vpop.f32.mrf.mxu0
      %v1259 = vadd.f32 0.0, %v1258
      %1260 = vdwg.mxu0
      %v1261 = vadd.f32 %v944, %v1159
      %v1262 = vadd.f32 %v958, %v1173
      %v1263 = vadd.f32 %v972, %v1187
      %v1264 = vadd.f32 %v986, %v1201
      %v1265 = vadd.f32 %v1000, %v1215
      %v1266 = vadd.f32 %v1014, %v1229
      %v1267 = vadd.f32 %v1028, %v1243
      %v1268 = vadd.f32 %v1042, %v1257
      %v1269 = vadd.f32 %v946, %v1161
      %v1270 = vadd.f32 %v960, %v1175
      %v1271 = vadd.f32 %v974, %v1189
      %v1272 = vadd.f32 %v988, %v1203
      %v1273 = vadd.f32 %v1002, %v1217
      %v1274 = vadd.f32 %v1016, %v1231
      %v1275 = vadd.f32 %v1030, %v1245
      %v1276 = vadd.f32 %v1044, %v1259
      %1277 = vrot.lane.b32.xlu0 %v609, 1
      %v1278 = vpop.permute.xlu0 %1277
      %1279 = vrot.lane.b32.xlu0 %v617, 1
      %v1280 = vpop.permute.xlu0 %1279
      %1281 = vrot.lane.b32.xlu0 %v610, 1
      %v1282 = vpop.permute.xlu0 %1281
      %1283 = vrot.lane.b32.xlu0 %v618, 1
      %v1284 = vpop.permute.xlu0 %1283
      %1285 = vrot.lane.b32.xlu0 %v611, 1
      %v1286 = vpop.permute.xlu0 %1285
      %1287 = vrot.lane.b32.xlu0 %v619, 1
      %v1288 = vpop.permute.xlu0 %1287
      %1289 = vrot.lane.b32.xlu0 %v612, 1
      %v1290 = vpop.permute.xlu0 %1289
      %1291 = vrot.lane.b32.xlu0 %v620, 1
      %v1292 = vpop.permute.xlu0 %1291
      %1293 = vrot.lane.b32.xlu0 %v613, 1
      %v1294 = vpop.permute.xlu0 %1293
      %1295 = vrot.lane.b32.xlu0 %v621, 1
      %v1296 = vpop.permute.xlu0 %1295
      %1297 = vrot.lane.b32.xlu0 %v614, 1
      %v1298 = vpop.permute.xlu0 %1297
      %1299 = vrot.lane.b32.xlu0 %v622, 1
      %v1300 = vpop.permute.xlu0 %1299
      %1301 = vrot.lane.b32.xlu0 %v615, 1
      %v1302 = vpop.permute.xlu0 %1301
      %1303 = vrot.lane.b32.xlu0 %v623, 1
      %v1304 = vpop.permute.xlu0 %1303
      %1305 = vrot.lane.b32.xlu0 %v616, 1
      %v1306 = vpop.permute.xlu0 %1305
      %1307 = vrot.lane.b32.xlu0 %v624, 1
      %v1308 = vpop.permute.xlu0 %1307
      %vm1309 = vcmp.lt.s32.totalorder %v658, 1
      %v1310 = vsel %vm1309, %v1302, %v1306
      %v1311 = vsel %vm1309, %v1304, %v1308
      %v1312 = vsel %vm1309, %v1298, %v1302
      %v1313 = vsel %vm1309, %v1300, %v1304
      %v1314 = vsel %vm1309, %v1294, %v1298
      %v1315 = vsel %vm1309, %v1296, %v1300
      %v1316 = vsel %vm1309, %v1290, %v1294
      %v1317 = vsel %vm1309, %v1292, %v1296
      %v1318 = vsel %vm1309, %v1286, %v1290
      %v1319 = vsel %vm1309, %v1288, %v1292
      %v1320 = vsel %vm1309, %v1282, %v1286
      %v1321 = vsel %vm1309, %v1284, %v1288
      %v1322 = vsel %vm1309, %v1278, %v1282
      %v1323 = vsel %vm1309, %v1280, %v1284
      %v1324 = vsel %vm1309, %v1306, %v1278
      %v1325 = vsel %vm1309, %v1308, %v1280
      %v1326 = vperm.slane %v1099, 3
      %v1327 = vperm.slane %v1100, 3
      %v1328 = vperm.slane %v1101, 3
      %v1329 = vperm.slane %v1102, 3
      %v1330 = vperm.slane %v1103, 3
      %v1331 = vperm.slane %v1104, 3
      %v1332 = vperm.slane %v1105, 3
      %v1333 = vperm.slane %v1106, 3
      %v1334 = vmul.f32 %v1324, %v1326
      %v1335 = vmul.f32 %v1322, %v1327
      %v1336 = vmul.f32 %v1320, %v1328
      %v1337 = vmul.f32 %v1318, %v1329
      %v1338 = vmul.f32 %v1316, %v1330
      %v1339 = vmul.f32 %v1314, %v1331
      %v1340 = vmul.f32 %v1312, %v1332
      %v1341 = vmul.f32 %v1310, %v1333
      %v1342 = vmul.f32 %v1325, %v1326
      %v1343 = vmul.f32 %v1323, %v1327
      %v1344 = vmul.f32 %v1321, %v1328
      %v1345 = vmul.f32 %v1319, %v1329
      %v1346 = vmul.f32 %v1317, %v1330
      %v1347 = vmul.f32 %v1315, %v1331
      %v1348 = vmul.f32 %v1313, %v1332
      %v1349 = vmul.f32 %v1311, %v1333
      %v1350 = vpack.c.bf16 %v1342, %v1334
      %v1351 = vpack.c.bf16 %v1343, %v1335
      %v1352 = vpack.c.bf16 %v1344, %v1336
      %v1353 = vpack.c.bf16 %v1345, %v1337
      %v1354 = vpack.c.bf16 %v1346, %v1338
      %v1355 = vpack.c.bf16 %v1347, %v1339
      %v1356 = vpack.c.bf16 %v1348, %v1340
      %v1357 = vpack.c.bf16 %v1349, %v1341
      %v1358 = vld [vmem:[%s4 + $0x18] sm:$0xf]
      %v1359 = vld [vmem:[%s4 + $0x1c] sm:$0xf]
      %v1362 = vunpack.c.l.b16 %v1358
      %v1363 = vunpack.c.l.b16 %v1359
      %v1364 = vpack.c.b16 %v1363, %v1362
      %v1366 = vsel %vm810, %v1364, 0
      %1368 = vmatpush.bf16.msra.mxu0 0
      %1369 = vmatpush.bf16.msra.mxu0 0
      %1370 = vmatpush.bf16.msra.mxu0 0
      %1371 = vmatpush.bf16.msra.mxu0 0
      %1372 = vmatpush.bf16.msra.mxu0 0
      %1373 = vmatpush.bf16.msra.mxu0 0
      %1374 = vmatpush.bf16.msra.mxu0 0
      %1375 = vmatpush.bf16.msra.mxu0 %v1350
      %1376 = vmatmul.bf16.gmra.mxu0 %v1366
      %v1377 = vpop.f32.mrf.mxu0
      %v1378 = vadd.f32 0.0, %v1377
      %v1379 = vpop.f32.mrf.mxu0
      %v1380 = vadd.f32 0.0, %v1379
      %1381 = vdwg.mxu0
      %1382 = vmatpush.bf16.msra.mxu0 0
      %1383 = vmatpush.bf16.msra.mxu0 0
      %1384 = vmatpush.bf16.msra.mxu0 0
      %1385 = vmatpush.bf16.msra.mxu0 0
      %1386 = vmatpush.bf16.msra.mxu0 0
      %1387 = vmatpush.bf16.msra.mxu0 0
      %1388 = vmatpush.bf16.msra.mxu0 0
      %1389 = vmatpush.bf16.msra.mxu0 %v1351
      %1390 = vmatmul.bf16.gmra.mxu0 %v1366
      %v1391 = vpop.f32.mrf.mxu0
      %v1392 = vadd.f32 0.0, %v1391
      %v1393 = vpop.f32.mrf.mxu0
      %v1394 = vadd.f32 0.0, %v1393
      %1395 = vdwg.mxu0
      %1396 = vmatpush.bf16.msra.mxu0 0
      %1397 = vmatpush.bf16.msra.mxu0 0
      %1398 = vmatpush.bf16.msra.mxu0 0
      %1399 = vmatpush.bf16.msra.mxu0 0
      %1400 = vmatpush.bf16.msra.mxu0 0
      %1401 = vmatpush.bf16.msra.mxu0 0
      %1402 = vmatpush.bf16.msra.mxu0 0
      %1403 = vmatpush.bf16.msra.mxu0 %v1352
      %1404 = vmatmul.bf16.gmra.mxu0 %v1366
      %v1405 = vpop.f32.mrf.mxu0
      %v1406 = vadd.f32 0.0, %v1405
      %v1407 = vpop.f32.mrf.mxu0
      %v1408 = vadd.f32 0.0, %v1407
      %1409 = vdwg.mxu0
      %1410 = vmatpush.bf16.msra.mxu0 0
      %1411 = vmatpush.bf16.msra.mxu0 0
      %1412 = vmatpush.bf16.msra.mxu0 0
      %1413 = vmatpush.bf16.msra.mxu0 0
      %1414 = vmatpush.bf16.msra.mxu0 0
      %1415 = vmatpush.bf16.msra.mxu0 0
      %1416 = vmatpush.bf16.msra.mxu0 0
      %1417 = vmatpush.bf16.msra.mxu0 %v1353
      %1418 = vmatmul.bf16.gmra.mxu0 %v1366
      %v1419 = vpop.f32.mrf.mxu0
      %v1420 = vadd.f32 0.0, %v1419
      %v1421 = vpop.f32.mrf.mxu0
      %v1422 = vadd.f32 0.0, %v1421
      %1423 = vdwg.mxu0
      %1424 = vmatpush.bf16.msra.mxu0 0
      %1425 = vmatpush.bf16.msra.mxu0 0
      %1426 = vmatpush.bf16.msra.mxu0 0
      %1427 = vmatpush.bf16.msra.mxu0 0
      %1428 = vmatpush.bf16.msra.mxu0 0
      %1429 = vmatpush.bf16.msra.mxu0 0
      %1430 = vmatpush.bf16.msra.mxu0 0
      %1431 = vmatpush.bf16.msra.mxu0 %v1354
      %1432 = vmatmul.bf16.gmra.mxu0 %v1366
      %v1433 = vpop.f32.mrf.mxu0
      %v1434 = vadd.f32 0.0, %v1433
      %v1435 = vpop.f32.mrf.mxu0
      %v1436 = vadd.f32 0.0, %v1435
      %1437 = vdwg.mxu0
      %1438 = vmatpush.bf16.msra.mxu0 0
      %1439 = vmatpush.bf16.msra.mxu0 0
      %1440 = vmatpush.bf16.msra.mxu0 0
      %1441 = vmatpush.bf16.msra.mxu0 0
      %1442 = vmatpush.bf16.msra.mxu0 0
      %1443 = vmatpush.bf16.msra.mxu0 0
      %1444 = vmatpush.bf16.msra.mxu0 0
      %1445 = vmatpush.bf16.msra.mxu0 %v1355
      %1446 = vmatmul.bf16.gmra.mxu0 %v1366
      %v1447 = vpop.f32.mrf.mxu0
      %v1448 = vadd.f32 0.0, %v1447
      %v1449 = vpop.f32.mrf.mxu0
      %v1450 = vadd.f32 0.0, %v1449
      %1451 = vdwg.mxu0
      %1452 = vmatpush.bf16.msra.mxu0 0
      %1453 = vmatpush.bf16.msra.mxu0 0
      %1454 = vmatpush.bf16.msra.mxu0 0
      %1455 = vmatpush.bf16.msra.mxu0 0
      %1456 = vmatpush.bf16.msra.mxu0 0
      %1457 = vmatpush.bf16.msra.mxu0 0
      %1458 = vmatpush.bf16.msra.mxu0 0
      %1459 = vmatpush.bf16.msra.mxu0 %v1356
      %1460 = vmatmul.bf16.gmra.mxu0 %v1366
      %v1461 = vpop.f32.mrf.mxu0
      %v1462 = vadd.f32 0.0, %v1461
      %v1463 = vpop.f32.mrf.mxu0
      %v1464 = vadd.f32 0.0, %v1463
      %1465 = vdwg.mxu0
      %1466 = vmatpush.bf16.msra.mxu0 0
      %1467 = vmatpush.bf16.msra.mxu0 0
      %1468 = vmatpush.bf16.msra.mxu0 0
      %1469 = vmatpush.bf16.msra.mxu0 0
      %1470 = vmatpush.bf16.msra.mxu0 0
      %1471 = vmatpush.bf16.msra.mxu0 0
      %1472 = vmatpush.bf16.msra.mxu0 0
      %1473 = vmatpush.bf16.msra.mxu0 %v1357
      %1474 = vmatmul.bf16.gmra.mxu0 %v1366
      %v1475 = vpop.f32.mrf.mxu0
      %v1476 = vadd.f32 0.0, %v1475
      %v1477 = vpop.f32.mrf.mxu0
      %v1478 = vadd.f32 0.0, %v1477
      %1479 = vdwg.mxu0
      %v1480 = vadd.f32 %v1261, %v1378
      %v1481 = vadd.f32 %v1262, %v1392
      %v1482 = vadd.f32 %v1263, %v1406
      %v1483 = vadd.f32 %v1264, %v1420
      %v1484 = vadd.f32 %v1265, %v1434
      %v1485 = vadd.f32 %v1266, %v1448
      %v1486 = vadd.f32 %v1267, %v1462
      %v1487 = vadd.f32 %v1268, %v1476
      %v1488 = vadd.f32 %v1269, %v1380
      %v1489 = vadd.f32 %v1270, %v1394
      %v1490 = vadd.f32 %v1271, %v1408
      %v1491 = vadd.f32 %v1272, %v1422
      %v1492 = vadd.f32 %v1273, %v1436
      %v1493 = vadd.f32 %v1274, %v1450
      %v1494 = vadd.f32 %v1275, %v1464
      %v1495 = vadd.f32 %v1276, %v1478
      %v1496 = vpack.c.bf16 %v617, %v609
      %v1497 = vpack.c.bf16 %v618, %v610
      %v1498 = vpack.c.bf16 %v619, %v611
      %v1499 = vpack.c.bf16 %v620, %v612
      %v1500 = vpack.c.bf16 %v621, %v613
      %v1501 = vpack.c.bf16 %v622, %v614
      %v1502 = vpack.c.bf16 %v623, %v615
      %v1503 = vpack.c.bf16 %v624, %v616
      %v1504 = vld [vmem:[%s4 + $0x20] sm:$0xf]
      %v1505 = vld [vmem:[%s4 + $0x24] sm:$0xf]
      %v1508 = vunpack.c.l.b16 %v1504
      %v1509 = vunpack.c.l.b16 %v1505
      %v1510 = vpack.c.b16 %v1509, %v1508
      %v1512 = vsel %vm810, %v1510, 0
      %1514 = vmatpush.bf16.msra.mxu0 0
      %1515 = vmatpush.bf16.msra.mxu0 0
      %1516 = vmatpush.bf16.msra.mxu0 0
      %1517 = vmatpush.bf16.msra.mxu0 0
      %1518 = vmatpush.bf16.msra.mxu0 0
      %1519 = vmatpush.bf16.msra.mxu0 0
      %1520 = vmatpush.bf16.msra.mxu0 0
      %1521 = vmatpush.bf16.msra.mxu0 %v1496
      %1522 = vmatmul.bf16.gmra.mxu0 %v1512
      %v1523 = vpop.f32.mrf.mxu0
      %v1524 = vadd.f32 0.0, %v1523
      %v1525 = vpop.f32.mrf.mxu0
      %v1526 = vadd.f32 0.0, %v1525
      %1527 = vdwg.mxu0
      %1528 = vmatpush.bf16.msra.mxu0 0
      %1529 = vmatpush.bf16.msra.mxu0 0
      %1530 = vmatpush.bf16.msra.mxu0 0
      %1531 = vmatpush.bf16.msra.mxu0 0
      %1532 = vmatpush.bf16.msra.mxu0 0
      %1533 = vmatpush.bf16.msra.mxu0 0
      %1534 = vmatpush.bf16.msra.mxu0 0
      %1535 = vmatpush.bf16.msra.mxu0 %v1497
      %1536 = vmatmul.bf16.gmra.mxu0 %v1512
      %v1537 = vpop.f32.mrf.mxu0
      %v1538 = vadd.f32 0.0, %v1537
      %v1539 = vpop.f32.mrf.mxu0
      %v1540 = vadd.f32 0.0, %v1539
      %1541 = vdwg.mxu0
      %1542 = vmatpush.bf16.msra.mxu0 0
      %1543 = vmatpush.bf16.msra.mxu0 0
      %1544 = vmatpush.bf16.msra.mxu0 0
      %1545 = vmatpush.bf16.msra.mxu0 0
      %1546 = vmatpush.bf16.msra.mxu0 0
      %1547 = vmatpush.bf16.msra.mxu0 0
      %1548 = vmatpush.bf16.msra.mxu0 0
      %1549 = vmatpush.bf16.msra.mxu0 %v1498
      %1550 = vmatmul.bf16.gmra.mxu0 %v1512
      %v1551 = vpop.f32.mrf.mxu0
      %v1552 = vadd.f32 0.0, %v1551
      %v1553 = vpop.f32.mrf.mxu0
      %v1554 = vadd.f32 0.0, %v1553
      %1555 = vdwg.mxu0
      %1556 = vmatpush.bf16.msra.mxu0 0
      %1557 = vmatpush.bf16.msra.mxu0 0
      %1558 = vmatpush.bf16.msra.mxu0 0
      %1559 = vmatpush.bf16.msra.mxu0 0
      %1560 = vmatpush.bf16.msra.mxu0 0
      %1561 = vmatpush.bf16.msra.mxu0 0
      %1562 = vmatpush.bf16.msra.mxu0 0
      %1563 = vmatpush.bf16.msra.mxu0 %v1499
      %1564 = vmatmul.bf16.gmra.mxu0 %v1512
      %v1565 = vpop.f32.mrf.mxu0
      %v1566 = vadd.f32 0.0, %v1565
      %v1567 = vpop.f32.mrf.mxu0
      %v1568 = vadd.f32 0.0, %v1567
      %1569 = vdwg.mxu0
      %1570 = vmatpush.bf16.msra.mxu0 0
      %1571 = vmatpush.bf16.msra.mxu0 0
      %1572 = vmatpush.bf16.msra.mxu0 0
      %1573 = vmatpush.bf16.msra.mxu0 0
      %1574 = vmatpush.bf16.msra.mxu0 0
      %1575 = vmatpush.bf16.msra.mxu0 0
      %1576 = vmatpush.bf16.msra.mxu0 0
      %1577 = vmatpush.bf16.msra.mxu0 %v1500
      %1578 = vmatmul.bf16.gmra.mxu0 %v1512
      %v1579 = vpop.f32.mrf.mxu0
      %v1580 = vadd.f32 0.0, %v1579
      %v1581 = vpop.f32.mrf.mxu0
      %v1582 = vadd.f32 0.0, %v1581
      %1583 = vdwg.mxu0
      %1584 = vmatpush.bf16.msra.mxu0 0
      %1585 = vmatpush.bf16.msra.mxu0 0
      %1586 = vmatpush.bf16.msra.mxu0 0
      %1587 = vmatpush.bf16.msra.mxu0 0
      %1588 = vmatpush.bf16.msra.mxu0 0
      %1589 = vmatpush.bf16.msra.mxu0 0
      %1590 = vmatpush.bf16.msra.mxu0 0
      %1591 = vmatpush.bf16.msra.mxu0 %v1501
      %1592 = vmatmul.bf16.gmra.mxu0 %v1512
      %v1593 = vpop.f32.mrf.mxu0
      %v1594 = vadd.f32 0.0, %v1593
      %v1595 = vpop.f32.mrf.mxu0
      %v1596 = vadd.f32 0.0, %v1595
      %1597 = vdwg.mxu0
      %1598 = vmatpush.bf16.msra.mxu0 0
      %1599 = vmatpush.bf16.msra.mxu0 0
      %1600 = vmatpush.bf16.msra.mxu0 0
      %1601 = vmatpush.bf16.msra.mxu0 0
      %1602 = vmatpush.bf16.msra.mxu0 0
      %1603 = vmatpush.bf16.msra.mxu0 0
      %1604 = vmatpush.bf16.msra.mxu0 0
      %1605 = vmatpush.bf16.msra.mxu0 %v1502
      %1606 = vmatmul.bf16.gmra.mxu0 %v1512
      %v1607 = vpop.f32.mrf.mxu0
      %v1608 = vadd.f32 0.0, %v1607
      %v1609 = vpop.f32.mrf.mxu0
      %v1610 = vadd.f32 0.0, %v1609
      %1611 = vdwg.mxu0
      %1612 = vmatpush.bf16.msra.mxu0 0
      %1613 = vmatpush.bf16.msra.mxu0 0
      %1614 = vmatpush.bf16.msra.mxu0 0
      %1615 = vmatpush.bf16.msra.mxu0 0
      %1616 = vmatpush.bf16.msra.mxu0 0
      %1617 = vmatpush.bf16.msra.mxu0 0
      %1618 = vmatpush.bf16.msra.mxu0 0
      %1619 = vmatpush.bf16.msra.mxu0 %v1503
      %1620 = vmatmul.bf16.gmra.mxu0 %v1512
      %v1621 = vpop.f32.mrf.mxu0
      %v1622 = vadd.f32 0.0, %v1621
      %v1623 = vpop.f32.mrf.mxu0
      %v1624 = vadd.f32 0.0, %v1623
      %1625 = vdwg.mxu0
      %v1626 = vadd.f32 %v1480, %v1524
      %v1627 = vadd.f32 %v1481, %v1538
      %v1628 = vadd.f32 %v1482, %v1552
      %v1629 = vadd.f32 %v1483, %v1566
      %v1630 = vadd.f32 %v1484, %v1580
      %v1631 = vadd.f32 %v1485, %v1594
      %v1632 = vadd.f32 %v1486, %v1608
      %v1633 = vadd.f32 %v1487, %v1622
      %v1634 = vadd.f32 %v1488, %v1526
      %v1635 = vadd.f32 %v1489, %v1540
      %v1636 = vadd.f32 %v1490, %v1554
      %v1637 = vadd.f32 %v1491, %v1568
      %v1638 = vadd.f32 %v1492, %v1582
      %v1639 = vadd.f32 %v1493, %v1596
      %v1640 = vadd.f32 %v1494, %v1610
      %v1641 = vadd.f32 %v1495, %v1624
      %1642 = vrot.lane.b32.xlu0 %v609, 127
      %v1643 = vpop.permute.xlu0 %1642
      %1644 = vrot.lane.b32.xlu0 %v617, 127
      %v1645 = vpop.permute.xlu0 %1644
      %1646 = vrot.lane.b32.xlu0 %v610, 127
      %v1647 = vpop.permute.xlu0 %1646
      %1648 = vrot.lane.b32.xlu0 %v618, 127
      %v1649 = vpop.permute.xlu0 %1648
      %1650 = vrot.lane.b32.xlu0 %v611, 127
      %v1651 = vpop.permute.xlu0 %1650
      %1652 = vrot.lane.b32.xlu0 %v619, 127
      %v1653 = vpop.permute.xlu0 %1652
      %1654 = vrot.lane.b32.xlu0 %v612, 127
      %v1655 = vpop.permute.xlu0 %1654
      %1656 = vrot.lane.b32.xlu0 %v620, 127
      %v1657 = vpop.permute.xlu0 %1656
      %1658 = vrot.lane.b32.xlu0 %v613, 127
      %v1659 = vpop.permute.xlu0 %1658
      %1660 = vrot.lane.b32.xlu0 %v621, 127
      %v1661 = vpop.permute.xlu0 %1660
      %1662 = vrot.lane.b32.xlu0 %v614, 127
      %v1663 = vpop.permute.xlu0 %1662
      %1664 = vrot.lane.b32.xlu0 %v622, 127
      %v1665 = vpop.permute.xlu0 %1664
      %1666 = vrot.lane.b32.xlu0 %v615, 127
      %v1667 = vpop.permute.xlu0 %1666
      %1668 = vrot.lane.b32.xlu0 %v623, 127
      %v1669 = vpop.permute.xlu0 %1668
      %1670 = vrot.lane.b32.xlu0 %v616, 127
      %v1671 = vpop.permute.xlu0 %1670
      %1672 = vrot.lane.b32.xlu0 %v624, 127
      %v1673 = vpop.permute.xlu0 %1672
      %vm1674 = vcmp.lt.s32.totalorder %v658, 127
      %v1675 = vsel %vm1674, %v1667, %v1671
      %v1676 = vsel %vm1674, %v1669, %v1673
      %v1677 = vsel %vm1674, %v1663, %v1667
      %v1678 = vsel %vm1674, %v1665, %v1669
      %v1679 = vsel %vm1674, %v1659, %v1663
      %v1680 = vsel %vm1674, %v1661, %v1665
      %v1681 = vsel %vm1674, %v1655, %v1659
      %v1682 = vsel %vm1674, %v1657, %v1661
      %v1683 = vsel %vm1674, %v1651, %v1655
      %v1684 = vsel %vm1674, %v1653, %v1657
      %v1685 = vsel %vm1674, %v1647, %v1651
      %v1686 = vsel %vm1674, %v1649, %v1653
      %v1687 = vsel %vm1674, %v1643, %v1647
      %v1688 = vsel %vm1674, %v1645, %v1649
      %v1689 = vsel %vm1674, %v1671, %v1643
      %v1690 = vsel %vm1674, %v1673, %v1645
      %v1691 = vld [vmem:[%s8] sm:$0x44]
      %v1692 = vld [vmem:[%s8 + $0x8] sm:$0x44]
      %v1693 = vld [vmem:[%s8 + $0x10] sm:$0x44]
      %v1694 = vld [vmem:[%s8 + $0x18] sm:$0x44]
      %v1695 = vunpack.c.l.bf16 %v1691
      %v1696 = vunpack.c.h.bf16 %v1691
      %v1697 = vunpack.c.l.bf16 %v1692
      %v1698 = vunpack.c.h.bf16 %v1692
      %v1699 = vunpack.c.l.bf16 %v1693
      %v1700 = vunpack.c.h.bf16 %v1693
      %v1701 = vunpack.c.l.bf16 %v1694
      %v1702 = vunpack.c.h.bf16 %v1694
      %v1703 = vperm.slane %v1695, 5
      %v1704 = vperm.slane %v1696, 5
      %v1705 = vperm.slane %v1697, 5
      %v1706 = vperm.slane %v1698, 5
      %v1707 = vperm.slane %v1699, 5
      %v1708 = vperm.slane %v1700, 5
      %v1709 = vperm.slane %v1701, 5
      %v1710 = vperm.slane %v1702, 5
      %v1711 = vmul.f32 %v1687, %v1703
      %v1712 = vmul.f32 %v1685, %v1704
      %v1713 = vmul.f32 %v1683, %v1705
      %v1714 = vmul.f32 %v1681, %v1706
      %v1715 = vmul.f32 %v1679, %v1707
      %v1716 = vmul.f32 %v1677, %v1708
      %v1717 = vmul.f32 %v1675, %v1709
      %v1718 = vmul.f32 %v1689, %v1710
      %v1719 = vmul.f32 %v1688, %v1703
      %v1720 = vmul.f32 %v1686, %v1704
      %v1721 = vmul.f32 %v1684, %v1705
      %v1722 = vmul.f32 %v1682, %v1706
      %v1723 = vmul.f32 %v1680, %v1707
      %v1724 = vmul.f32 %v1678, %v1708
      %v1725 = vmul.f32 %v1676, %v1709
      %v1726 = vmul.f32 %v1690, %v1710
      %v1727 = vpack.c.bf16 %v1719, %v1711
      %v1728 = vpack.c.bf16 %v1720, %v1712
      %v1729 = vpack.c.bf16 %v1721, %v1713
      %v1730 = vpack.c.bf16 %v1722, %v1714
      %v1731 = vpack.c.bf16 %v1723, %v1715
      %v1732 = vpack.c.bf16 %v1724, %v1716
      %v1733 = vpack.c.bf16 %v1725, %v1717
      %v1734 = vpack.c.bf16 %v1726, %v1718
      %v1735 = vld [vmem:[%s4 + $0x28] sm:$0xf]
      %v1736 = vld [vmem:[%s4 + $0x2c] sm:$0xf]
      %v1739 = vunpack.c.l.b16 %v1735
      %v1740 = vunpack.c.l.b16 %v1736
      %v1741 = vpack.c.b16 %v1740, %v1739
      %v1743 = vsel %vm810, %v1741, 0
      %1745 = vmatpush.bf16.msra.mxu0 0
      %1746 = vmatpush.bf16.msra.mxu0 0
      %1747 = vmatpush.bf16.msra.mxu0 0
      %1748 = vmatpush.bf16.msra.mxu0 0
      %1749 = vmatpush.bf16.msra.mxu0 0
      %1750 = vmatpush.bf16.msra.mxu0 0
      %1751 = vmatpush.bf16.msra.mxu0 0
      %1752 = vmatpush.bf16.msra.mxu0 %v1727
      %1753 = vmatmul.bf16.gmra.mxu0 %v1743
      %v1754 = vpop.f32.mrf.mxu0
      %v1755 = vadd.f32 0.0, %v1754
      %v1756 = vpop.f32.mrf.mxu0
      %v1757 = vadd.f32 0.0, %v1756
      %1758 = vdwg.mxu0
      %1759 = vmatpush.bf16.msra.mxu0 0
      %1760 = vmatpush.bf16.msra.mxu0 0
      %1761 = vmatpush.bf16.msra.mxu0 0
      %1762 = vmatpush.bf16.msra.mxu0 0
      %1763 = vmatpush.bf16.msra.mxu0 0
      %1764 = vmatpush.bf16.msra.mxu0 0
      %1765 = vmatpush.bf16.msra.mxu0 0
      %1766 = vmatpush.bf16.msra.mxu0 %v1728
      %1767 = vmatmul.bf16.gmra.mxu0 %v1743
      %v1768 = vpop.f32.mrf.mxu0
      %v1769 = vadd.f32 0.0, %v1768
      %v1770 = vpop.f32.mrf.mxu0
      %v1771 = vadd.f32 0.0, %v1770
      %1772 = vdwg.mxu0
      %1773 = vmatpush.bf16.msra.mxu0 0
      %1774 = vmatpush.bf16.msra.mxu0 0
      %1775 = vmatpush.bf16.msra.mxu0 0
      %1776 = vmatpush.bf16.msra.mxu0 0
      %1777 = vmatpush.bf16.msra.mxu0 0
      %1778 = vmatpush.bf16.msra.mxu0 0
      %1779 = vmatpush.bf16.msra.mxu0 0
      %1780 = vmatpush.bf16.msra.mxu0 %v1729
      %1781 = vmatmul.bf16.gmra.mxu0 %v1743
      %v1782 = vpop.f32.mrf.mxu0
      %v1783 = vadd.f32 0.0, %v1782
      %v1784 = vpop.f32.mrf.mxu0
      %v1785 = vadd.f32 0.0, %v1784
      %1786 = vdwg.mxu0
      %1787 = vmatpush.bf16.msra.mxu0 0
      %1788 = vmatpush.bf16.msra.mxu0 0
      %1789 = vmatpush.bf16.msra.mxu0 0
      %1790 = vmatpush.bf16.msra.mxu0 0
      %1791 = vmatpush.bf16.msra.mxu0 0
      %1792 = vmatpush.bf16.msra.mxu0 0
      %1793 = vmatpush.bf16.msra.mxu0 0
      %1794 = vmatpush.bf16.msra.mxu0 %v1730
      %1795 = vmatmul.bf16.gmra.mxu0 %v1743
      %v1796 = vpop.f32.mrf.mxu0
      %v1797 = vadd.f32 0.0, %v1796
      %v1798 = vpop.f32.mrf.mxu0
      %v1799 = vadd.f32 0.0, %v1798
      %1800 = vdwg.mxu0
      %1801 = vmatpush.bf16.msra.mxu0 0
      %1802 = vmatpush.bf16.msra.mxu0 0
      %1803 = vmatpush.bf16.msra.mxu0 0
      %1804 = vmatpush.bf16.msra.mxu0 0
      %1805 = vmatpush.bf16.msra.mxu0 0
      %1806 = vmatpush.bf16.msra.mxu0 0
      %1807 = vmatpush.bf16.msra.mxu0 0
      %1808 = vmatpush.bf16.msra.mxu0 %v1731
      %1809 = vmatmul.bf16.gmra.mxu0 %v1743
      %v1810 = vpop.f32.mrf.mxu0
      %v1811 = vadd.f32 0.0, %v1810
      %v1812 = vpop.f32.mrf.mxu0
      %v1813 = vadd.f32 0.0, %v1812
      %1814 = vdwg.mxu0
      %1815 = vmatpush.bf16.msra.mxu0 0
      %1816 = vmatpush.bf16.msra.mxu0 0
      %1817 = vmatpush.bf16.msra.mxu0 0
      %1818 = vmatpush.bf16.msra.mxu0 0
      %1819 = vmatpush.bf16.msra.mxu0 0
      %1820 = vmatpush.bf16.msra.mxu0 0
      %1821 = vmatpush.bf16.msra.mxu0 0
      %1822 = vmatpush.bf16.msra.mxu0 %v1732
      %1823 = vmatmul.bf16.gmra.mxu0 %v1743
      %v1824 = vpop.f32.mrf.mxu0
      %v1825 = vadd.f32 0.0, %v1824
      %v1826 = vpop.f32.mrf.mxu0
      %v1827 = vadd.f32 0.0, %v1826
      %1828 = vdwg.mxu0
      %1829 = vmatpush.bf16.msra.mxu0 0
      %1830 = vmatpush.bf16.msra.mxu0 0
      %1831 = vmatpush.bf16.msra.mxu0 0
      %1832 = vmatpush.bf16.msra.mxu0 0
      %1833 = vmatpush.bf16.msra.mxu0 0
      %1834 = vmatpush.bf16.msra.mxu0 0
      %1835 = vmatpush.bf16.msra.mxu0 0
      %1836 = vmatpush.bf16.msra.mxu0 %v1733
      %1837 = vmatmul.bf16.gmra.mxu0 %v1743
      %v1838 = vpop.f32.mrf.mxu0
      %v1839 = vadd.f32 0.0, %v1838
      %v1840 = vpop.f32.mrf.mxu0
      %v1841 = vadd.f32 0.0, %v1840
      %1842 = vdwg.mxu0
      %1843 = vmatpush.bf16.msra.mxu0 0
      %1844 = vmatpush.bf16.msra.mxu0 0
      %1845 = vmatpush.bf16.msra.mxu0 0
      %1846 = vmatpush.bf16.msra.mxu0 0
      %1847 = vmatpush.bf16.msra.mxu0 0
      %1848 = vmatpush.bf16.msra.mxu0 0
      %1849 = vmatpush.bf16.msra.mxu0 0
      %1850 = vmatpush.bf16.msra.mxu0 %v1734
      %1851 = vmatmul.bf16.gmra.mxu0 %v1743
      %v1852 = vpop.f32.mrf.mxu0
      %v1853 = vadd.f32 0.0, %v1852
      %v1854 = vpop.f32.mrf.mxu0
      %v1855 = vadd.f32 0.0, %v1854
      %1856 = vdwg.mxu0
      %v1857 = vadd.f32 %v1626, %v1755
      %v1858 = vadd.f32 %v1627, %v1769
      %v1859 = vadd.f32 %v1628, %v1783
      %v1860 = vadd.f32 %v1629, %v1797
      %v1861 = vadd.f32 %v1630, %v1811
      %v1862 = vadd.f32 %v1631, %v1825
      %v1863 = vadd.f32 %v1632, %v1839
      %v1864 = vadd.f32 %v1633, %v1853
      %v1865 = vadd.f32 %v1634, %v1757
      %v1866 = vadd.f32 %v1635, %v1771
      %v1867 = vadd.f32 %v1636, %v1785
      %v1868 = vadd.f32 %v1637, %v1799
      %v1869 = vadd.f32 %v1638, %v1813
      %v1870 = vadd.f32 %v1639, %v1827
      %v1871 = vadd.f32 %v1640, %v1841
      %v1872 = vadd.f32 %v1641, %v1855
      %1873 = vrot.lane.b32.xlu0 %v609, 97
      %v1874 = vpop.permute.xlu0 %1873
      %1875 = vrot.lane.b32.xlu0 %v617, 97
      %v1876 = vpop.permute.xlu0 %1875
      %1877 = vrot.lane.b32.xlu0 %v610, 97
      %v1878 = vpop.permute.xlu0 %1877
      %1879 = vrot.lane.b32.xlu0 %v618, 97
      %v1880 = vpop.permute.xlu0 %1879
      %1881 = vrot.lane.b32.xlu0 %v611, 97
      %v1882 = vpop.permute.xlu0 %1881
      %1883 = vrot.lane.b32.xlu0 %v619, 97
      %v1884 = vpop.permute.xlu0 %1883
      %1885 = vrot.lane.b32.xlu0 %v612, 97
      %v1886 = vpop.permute.xlu0 %1885
      %1887 = vrot.lane.b32.xlu0 %v620, 97
      %v1888 = vpop.permute.xlu0 %1887
      %1889 = vrot.lane.b32.xlu0 %v613, 97
      %v1890 = vpop.permute.xlu0 %1889
      %1891 = vrot.lane.b32.xlu0 %v621, 97
      %v1892 = vpop.permute.xlu0 %1891
      %1893 = vrot.lane.b32.xlu0 %v614, 97
      %v1894 = vpop.permute.xlu0 %1893
      %1895 = vrot.lane.b32.xlu0 %v622, 97
      %v1896 = vpop.permute.xlu0 %1895
      %1897 = vrot.lane.b32.xlu0 %v615, 97
      %v1898 = vpop.permute.xlu0 %1897
      %1899 = vrot.lane.b32.xlu0 %v623, 97
      %v1900 = vpop.permute.xlu0 %1899
      %1901 = vrot.lane.b32.xlu0 %v616, 97
      %v1902 = vpop.permute.xlu0 %1901
      %1903 = vrot.lane.b32.xlu0 %v624, 97
      %v1904 = vpop.permute.xlu0 %1903
      %vm1905 = vcmp.lt.s32.totalorder %v658, 97
      %v1906 = vsel %vm1905, %v1898, %v1902
      %v1907 = vsel %vm1905, %v1900, %v1904
      %v1908 = vsel %vm1905, %v1894, %v1898
      %v1909 = vsel %vm1905, %v1896, %v1900
      %v1910 = vsel %vm1905, %v1890, %v1894
      %v1911 = vsel %vm1905, %v1892, %v1896
      %v1912 = vsel %vm1905, %v1886, %v1890
      %v1913 = vsel %vm1905, %v1888, %v1892
      %v1914 = vsel %vm1905, %v1882, %v1886
      %v1915 = vsel %vm1905, %v1884, %v1888
      %v1916 = vsel %vm1905, %v1878, %v1882
      %v1917 = vsel %vm1905, %v1880, %v1884
      %v1918 = vsel %vm1905, %v1874, %v1878
      %v1919 = vsel %vm1905, %v1876, %v1880
      %v1920 = vsel %vm1905, %v1902, %v1874
      %v1921 = vsel %vm1905, %v1904, %v1876
      %v1922 = vld [vmem:[%s8] sm:$0x88]
      %v1923 = vld [vmem:[%s8 + $0x8] sm:$0x88]
      %v1924 = vld [vmem:[%s8 + $0x10] sm:$0x88]
      %v1925 = vld [vmem:[%s8 + $0x18] sm:$0x88]
      %v1926 = vunpack.c.l.bf16 %v1922
      %v1927 = vunpack.c.h.bf16 %v1922
      %v1928 = vunpack.c.l.bf16 %v1923
      %v1929 = vunpack.c.h.bf16 %v1923
      %v1930 = vunpack.c.l.bf16 %v1924
      %v1931 = vunpack.c.h.bf16 %v1924
      %v1932 = vunpack.c.l.bf16 %v1925
      %v1933 = vunpack.c.h.bf16 %v1925
      %v1934 = vperm.slane %v1926, 6
      %v1935 = vperm.slane %v1927, 6
      %v1936 = vperm.slane %v1928, 6
      %v1937 = vperm.slane %v1929, 6
      %v1938 = vperm.slane %v1930, 6
      %v1939 = vperm.slane %v1931, 6
      %v1940 = vperm.slane %v1932, 6
      %v1941 = vperm.slane %v1933, 6
      %v1942 = vmul.f32 %v1918, %v1934
      %v1943 = vmul.f32 %v1916, %v1935
      %v1944 = vmul.f32 %v1914, %v1936
      %v1945 = vmul.f32 %v1912, %v1937
      %v1946 = vmul.f32 %v1910, %v1938
      %v1947 = vmul.f32 %v1908, %v1939
      %v1948 = vmul.f32 %v1906, %v1940
      %v1949 = vmul.f32 %v1920, %v1941
      %v1950 = vmul.f32 %v1919, %v1934
      %v1951 = vmul.f32 %v1917, %v1935
      %v1952 = vmul.f32 %v1915, %v1936
      %v1953 = vmul.f32 %v1913, %v1937
      %v1954 = vmul.f32 %v1911, %v1938
      %v1955 = vmul.f32 %v1909, %v1939
      %v1956 = vmul.f32 %v1907, %v1940
      %v1957 = vmul.f32 %v1921, %v1941
      %v1958 = vpack.c.bf16 %v1950, %v1942
      %v1959 = vpack.c.bf16 %v1951, %v1943
      %v1960 = vpack.c.bf16 %v1952, %v1944
      %v1961 = vpack.c.bf16 %v1953, %v1945
      %v1962 = vpack.c.bf16 %v1954, %v1946
      %v1963 = vpack.c.bf16 %v1955, %v1947
      %v1964 = vpack.c.bf16 %v1956, %v1948
      %v1965 = vpack.c.bf16 %v1957, %v1949
      %v1966 = vld [vmem:[%s4 + $0x30] sm:$0xf]
      %v1967 = vld [vmem:[%s4 + $0x34] sm:$0xf]
      %v1970 = vunpack.c.l.b16 %v1966
      %v1971 = vunpack.c.l.b16 %v1967
      %v1972 = vpack.c.b16 %v1971, %v1970
      %v1974 = vsel %vm810, %v1972, 0
      %1976 = vmatpush.bf16.msra.mxu0 0
      %1977 = vmatpush.bf16.msra.mxu0 0
      %1978 = vmatpush.bf16.msra.mxu0 0
      %1979 = vmatpush.bf16.msra.mxu0 0
      %1980 = vmatpush.bf16.msra.mxu0 0
      %1981 = vmatpush.bf16.msra.mxu0 0
      %1982 = vmatpush.bf16.msra.mxu0 0
      %1983 = vmatpush.bf16.msra.mxu0 %v1958
      %1984 = vmatmul.bf16.gmra.mxu0 %v1974
      %v1985 = vpop.f32.mrf.mxu0
      %v1986 = vadd.f32 0.0, %v1985
      %v1987 = vpop.f32.mrf.mxu0
      %v1988 = vadd.f32 0.0, %v1987
      %1989 = vdwg.mxu0
      %1990 = vmatpush.bf16.msra.mxu0 0
      %1991 = vmatpush.bf16.msra.mxu0 0
      %1992 = vmatpush.bf16.msra.mxu0 0
      %1993 = vmatpush.bf16.msra.mxu0 0
      %1994 = vmatpush.bf16.msra.mxu0 0
      %1995 = vmatpush.bf16.msra.mxu0 0
      %1996 = vmatpush.bf16.msra.mxu0 0
      %1997 = vmatpush.bf16.msra.mxu0 %v1959
      %1998 = vmatmul.bf16.gmra.mxu0 %v1974
      %v1999 = vpop.f32.mrf.mxu0
      %v2000 = vadd.f32 0.0, %v1999
      %v2001 = vpop.f32.mrf.mxu0
      %v2002 = vadd.f32 0.0, %v2001
      %2003 = vdwg.mxu0
      %2004 = vmatpush.bf16.msra.mxu0 0
      %2005 = vmatpush.bf16.msra.mxu0 0
      %2006 = vmatpush.bf16.msra.mxu0 0
      %2007 = vmatpush.bf16.msra.mxu0 0
      %2008 = vmatpush.bf16.msra.mxu0 0
      %2009 = vmatpush.bf16.msra.mxu0 0
      %2010 = vmatpush.bf16.msra.mxu0 0
      %2011 = vmatpush.bf16.msra.mxu0 %v1960
      %2012 = vmatmul.bf16.gmra.mxu0 %v1974
      %v2013 = vpop.f32.mrf.mxu0
      %v2014 = vadd.f32 0.0, %v2013
      %v2015 = vpop.f32.mrf.mxu0
      %v2016 = vadd.f32 0.0, %v2015
      %2017 = vdwg.mxu0
      %2018 = vmatpush.bf16.msra.mxu0 0
      %2019 = vmatpush.bf16.msra.mxu0 0
      %2020 = vmatpush.bf16.msra.mxu0 0
      %2021 = vmatpush.bf16.msra.mxu0 0
      %2022 = vmatpush.bf16.msra.mxu0 0
      %2023 = vmatpush.bf16.msra.mxu0 0
      %2024 = vmatpush.bf16.msra.mxu0 0
      %2025 = vmatpush.bf16.msra.mxu0 %v1961
      %2026 = vmatmul.bf16.gmra.mxu0 %v1974
      %v2027 = vpop.f32.mrf.mxu0
      %v2028 = vadd.f32 0.0, %v2027
      %v2029 = vpop.f32.mrf.mxu0
      %v2030 = vadd.f32 0.0, %v2029
      %2031 = vdwg.mxu0
      %2032 = vmatpush.bf16.msra.mxu0 0
      %2033 = vmatpush.bf16.msra.mxu0 0
      %2034 = vmatpush.bf16.msra.mxu0 0
      %2035 = vmatpush.bf16.msra.mxu0 0
      %2036 = vmatpush.bf16.msra.mxu0 0
      %2037 = vmatpush.bf16.msra.mxu0 0
      %2038 = vmatpush.bf16.msra.mxu0 0
      %2039 = vmatpush.bf16.msra.mxu0 %v1962
      %2040 = vmatmul.bf16.gmra.mxu0 %v1974
      %v2041 = vpop.f32.mrf.mxu0
      %v2042 = vadd.f32 0.0, %v2041
      %v2043 = vpop.f32.mrf.mxu0
      %v2044 = vadd.f32 0.0, %v2043
      %2045 = vdwg.mxu0
      %2046 = vmatpush.bf16.msra.mxu0 0
      %2047 = vmatpush.bf16.msra.mxu0 0
      %2048 = vmatpush.bf16.msra.mxu0 0
      %2049 = vmatpush.bf16.msra.mxu0 0
      %2050 = vmatpush.bf16.msra.mxu0 0
      %2051 = vmatpush.bf16.msra.mxu0 0
      %2052 = vmatpush.bf16.msra.mxu0 0
      %2053 = vmatpush.bf16.msra.mxu0 %v1963
      %2054 = vmatmul.bf16.gmra.mxu0 %v1974
      %v2055 = vpop.f32.mrf.mxu0
      %v2056 = vadd.f32 0.0, %v2055
      %v2057 = vpop.f32.mrf.mxu0
      %v2058 = vadd.f32 0.0, %v2057
      %2059 = vdwg.mxu0
      %2060 = vmatpush.bf16.msra.mxu0 0
      %2061 = vmatpush.bf16.msra.mxu0 0
      %2062 = vmatpush.bf16.msra.mxu0 0
      %2063 = vmatpush.bf16.msra.mxu0 0
      %2064 = vmatpush.bf16.msra.mxu0 0
      %2065 = vmatpush.bf16.msra.mxu0 0
      %2066 = vmatpush.bf16.msra.mxu0 0
      %2067 = vmatpush.bf16.msra.mxu0 %v1964
      %2068 = vmatmul.bf16.gmra.mxu0 %v1974
      %v2069 = vpop.f32.mrf.mxu0
      %v2070 = vadd.f32 0.0, %v2069
      %v2071 = vpop.f32.mrf.mxu0
      %v2072 = vadd.f32 0.0, %v2071
      %2073 = vdwg.mxu0
      %2074 = vmatpush.bf16.msra.mxu0 0
      %2075 = vmatpush.bf16.msra.mxu0 0
      %2076 = vmatpush.bf16.msra.mxu0 0
      %2077 = vmatpush.bf16.msra.mxu0 0
      %2078 = vmatpush.bf16.msra.mxu0 0
      %2079 = vmatpush.bf16.msra.mxu0 0
      %2080 = vmatpush.bf16.msra.mxu0 0
      %2081 = vmatpush.bf16.msra.mxu0 %v1965
      %2082 = vmatmul.bf16.gmra.mxu0 %v1974
      %v2083 = vpop.f32.mrf.mxu0
      %v2084 = vadd.f32 0.0, %v2083
      %v2085 = vpop.f32.mrf.mxu0
      %v2086 = vadd.f32 0.0, %v2085
      %2087 = vdwg.mxu0
      %v2088 = vadd.f32 %v1857, %v1986
      %v2089 = vadd.f32 %v1858, %v2000
      %v2090 = vadd.f32 %v1859, %v2014
      %v2091 = vadd.f32 %v1860, %v2028
      %v2092 = vadd.f32 %v1861, %v2042
      %v2093 = vadd.f32 %v1862, %v2056
      %v2094 = vadd.f32 %v1863, %v2070
      %v2095 = vadd.f32 %v1864, %v2084
      %v2096 = vadd.f32 %v1865, %v1988
      %v2097 = vadd.f32 %v1866, %v2002
      %v2098 = vadd.f32 %v1867, %v2016
      %v2099 = vadd.f32 %v1868, %v2030
      %v2100 = vadd.f32 %v1869, %v2044
      %v2101 = vadd.f32 %v1870, %v2058
      %v2102 = vadd.f32 %v1871, %v2072
      %v2103 = vadd.f32 %v1872, %v2086
      %2104 = vrot.lane.b32.xlu0 %v609, 96
      %v2105 = vpop.permute.xlu0 %2104
      %2106 = vrot.lane.b32.xlu0 %v617, 96
      %v2107 = vpop.permute.xlu0 %2106
      %2108 = vrot.lane.b32.xlu0 %v610, 96
      %v2109 = vpop.permute.xlu0 %2108
      %2110 = vrot.lane.b32.xlu0 %v618, 96
      %v2111 = vpop.permute.xlu0 %2110
      %2112 = vrot.lane.b32.xlu0 %v611, 96
      %v2113 = vpop.permute.xlu0 %2112
      %2114 = vrot.lane.b32.xlu0 %v619, 96
      %v2115 = vpop.permute.xlu0 %2114
      %2116 = vrot.lane.b32.xlu0 %v612, 96
      %v2117 = vpop.permute.xlu0 %2116
      %2118 = vrot.lane.b32.xlu0 %v620, 96
      %v2119 = vpop.permute.xlu0 %2118
      %2120 = vrot.lane.b32.xlu0 %v613, 96
      %v2121 = vpop.permute.xlu0 %2120
      %2122 = vrot.lane.b32.xlu0 %v621, 96
      %v2123 = vpop.permute.xlu0 %2122
      %2124 = vrot.lane.b32.xlu0 %v614, 96
      %v2125 = vpop.permute.xlu0 %2124
      %2126 = vrot.lane.b32.xlu0 %v622, 96
      %v2127 = vpop.permute.xlu0 %2126
      %2128 = vrot.lane.b32.xlu0 %v615, 96
      %v2129 = vpop.permute.xlu0 %2128
      %2130 = vrot.lane.b32.xlu0 %v623, 96
      %v2131 = vpop.permute.xlu0 %2130
      %2132 = vrot.lane.b32.xlu0 %v616, 96
      %v2133 = vpop.permute.xlu0 %2132
      %2134 = vrot.lane.b32.xlu0 %v624, 96
      %v2135 = vpop.permute.xlu0 %2134
      %vm2136 = vcmp.lt.s32.totalorder %v658, 96
      %v2137 = vsel %vm2136, %v2129, %v2133
      %v2138 = vsel %vm2136, %v2131, %v2135
      %v2139 = vsel %vm2136, %v2125, %v2129
      %v2140 = vsel %vm2136, %v2127, %v2131
      %v2141 = vsel %vm2136, %v2121, %v2125
      %v2142 = vsel %vm2136, %v2123, %v2127
      %v2143 = vsel %vm2136, %v2117, %v2121
      %v2144 = vsel %vm2136, %v2119, %v2123
      %v2145 = vsel %vm2136, %v2113, %v2117
      %v2146 = vsel %vm2136, %v2115, %v2119
      %v2147 = vsel %vm2136, %v2109, %v2113
      %v2148 = vsel %vm2136, %v2111, %v2115
      %v2149 = vsel %vm2136, %v2105, %v2109
      %v2150 = vsel %vm2136, %v2107, %v2111
      %v2151 = vsel %vm2136, %v2133, %v2105
      %v2152 = vsel %vm2136, %v2135, %v2107
      %v2153 = vperm.slane %v1926, 7
      %v2154 = vperm.slane %v1927, 7
      %v2155 = vperm.slane %v1928, 7
      %v2156 = vperm.slane %v1929, 7
      %v2157 = vperm.slane %v1930, 7
      %v2158 = vperm.slane %v1931, 7
      %v2159 = vperm.slane %v1932, 7
      %v2160 = vperm.slane %v1933, 7
      %v2161 = vmul.f32 %v2149, %v2153
      %v2162 = vmul.f32 %v2147, %v2154
      %v2163 = vmul.f32 %v2145, %v2155
      %v2164 = vmul.f32 %v2143, %v2156
      %v2165 = vmul.f32 %v2141, %v2157
      %v2166 = vmul.f32 %v2139, %v2158
      %v2167 = vmul.f32 %v2137, %v2159
      %v2168 = vmul.f32 %v2151, %v2160
      %v2169 = vmul.f32 %v2150, %v2153
      %v2170 = vmul.f32 %v2148, %v2154
      %v2171 = vmul.f32 %v2146, %v2155
      %v2172 = vmul.f32 %v2144, %v2156
      %v2173 = vmul.f32 %v2142, %v2157
      %v2174 = vmul.f32 %v2140, %v2158
      %v2175 = vmul.f32 %v2138, %v2159
      %v2176 = vmul.f32 %v2152, %v2160
      %v2177 = vpack.c.bf16 %v2169, %v2161
      %v2178 = vpack.c.bf16 %v2170, %v2162
      %v2179 = vpack.c.bf16 %v2171, %v2163
      %v2180 = vpack.c.bf16 %v2172, %v2164
      %v2181 = vpack.c.bf16 %v2173, %v2165
      %v2182 = vpack.c.bf16 %v2174, %v2166
      %v2183 = vpack.c.bf16 %v2175, %v2167
      %v2184 = vpack.c.bf16 %v2176, %v2168
      %v2185 = vld [vmem:[%s4 + $0x38] sm:$0xf]
      %v2186 = vld [vmem:[%s4 + $0x3c] sm:$0xf]
      %v2189 = vunpack.c.l.b16 %v2185
      %v2190 = vunpack.c.l.b16 %v2186
      %v2191 = vpack.c.b16 %v2190, %v2189
      %v2193 = vsel %vm810, %v2191, 0
      %2195 = vmatpush.bf16.msra.mxu0 0
      %2196 = vmatpush.bf16.msra.mxu0 0
      %2197 = vmatpush.bf16.msra.mxu0 0
      %2198 = vmatpush.bf16.msra.mxu0 0
      %2199 = vmatpush.bf16.msra.mxu0 0
      %2200 = vmatpush.bf16.msra.mxu0 0
      %2201 = vmatpush.bf16.msra.mxu0 0
      %2202 = vmatpush.bf16.msra.mxu0 %v2177
      %2203 = vmatmul.bf16.gmra.mxu0 %v2193
      %v2204 = vpop.f32.mrf.mxu0
      %v2205 = vadd.f32 0.0, %v2204
      %v2206 = vpop.f32.mrf.mxu0
      %v2207 = vadd.f32 0.0, %v2206
      %2208 = vdwg.mxu0
      %2209 = vmatpush.bf16.msra.mxu0 0
      %2210 = vmatpush.bf16.msra.mxu0 0
      %2211 = vmatpush.bf16.msra.mxu0 0
      %2212 = vmatpush.bf16.msra.mxu0 0
      %2213 = vmatpush.bf16.msra.mxu0 0
      %2214 = vmatpush.bf16.msra.mxu0 0
      %2215 = vmatpush.bf16.msra.mxu0 0
      %2216 = vmatpush.bf16.msra.mxu0 %v2178
      %2217 = vmatmul.bf16.gmra.mxu0 %v2193
      %v2218 = vpop.f32.mrf.mxu0
      %v2219 = vadd.f32 0.0, %v2218
      %v2220 = vpop.f32.mrf.mxu0
      %v2221 = vadd.f32 0.0, %v2220
      %2222 = vdwg.mxu0
      %2223 = vmatpush.bf16.msra.mxu0 0
      %2224 = vmatpush.bf16.msra.mxu0 0
      %2225 = vmatpush.bf16.msra.mxu0 0
      %2226 = vmatpush.bf16.msra.mxu0 0
      %2227 = vmatpush.bf16.msra.mxu0 0
      %2228 = vmatpush.bf16.msra.mxu0 0
      %2229 = vmatpush.bf16.msra.mxu0 0
      %2230 = vmatpush.bf16.msra.mxu0 %v2179
      %2231 = vmatmul.bf16.gmra.mxu0 %v2193
      %v2232 = vpop.f32.mrf.mxu0
      %v2233 = vadd.f32 0.0, %v2232
      %v2234 = vpop.f32.mrf.mxu0
      %v2235 = vadd.f32 0.0, %v2234
      %2236 = vdwg.mxu0
      %2237 = vmatpush.bf16.msra.mxu0 0
      %2238 = vmatpush.bf16.msra.mxu0 0
      %2239 = vmatpush.bf16.msra.mxu0 0
      %2240 = vmatpush.bf16.msra.mxu0 0
      %2241 = vmatpush.bf16.msra.mxu0 0
      %2242 = vmatpush.bf16.msra.mxu0 0
      %2243 = vmatpush.bf16.msra.mxu0 0
      %2244 = vmatpush.bf16.msra.mxu0 %v2180
      %2245 = vmatmul.bf16.gmra.mxu0 %v2193
      %v2246 = vpop.f32.mrf.mxu0
      %v2247 = vadd.f32 0.0, %v2246
      %v2248 = vpop.f32.mrf.mxu0
      %v2249 = vadd.f32 0.0, %v2248
      %2250 = vdwg.mxu0
      %2251 = vmatpush.bf16.msra.mxu0 0
      %2252 = vmatpush.bf16.msra.mxu0 0
      %2253 = vmatpush.bf16.msra.mxu0 0
      %2254 = vmatpush.bf16.msra.mxu0 0
      %2255 = vmatpush.bf16.msra.mxu0 0
      %2256 = vmatpush.bf16.msra.mxu0 0
      %2257 = vmatpush.bf16.msra.mxu0 0
      %2258 = vmatpush.bf16.msra.mxu0 %v2181
      %2259 = vmatmul.bf16.gmra.mxu0 %v2193
      %v2260 = vpop.f32.mrf.mxu0
      %v2261 = vadd.f32 0.0, %v2260
      %v2262 = vpop.f32.mrf.mxu0
      %v2263 = vadd.f32 0.0, %v2262
      %2264 = vdwg.mxu0
      %2265 = vmatpush.bf16.msra.mxu0 0
      %2266 = vmatpush.bf16.msra.mxu0 0
      %2267 = vmatpush.bf16.msra.mxu0 0
      %2268 = vmatpush.bf16.msra.mxu0 0
      %2269 = vmatpush.bf16.msra.mxu0 0
      %2270 = vmatpush.bf16.msra.mxu0 0
      %2271 = vmatpush.bf16.msra.mxu0 0
      %2272 = vmatpush.bf16.msra.mxu0 %v2182
      %2273 = vmatmul.bf16.gmra.mxu0 %v2193
      %v2274 = vpop.f32.mrf.mxu0
      %v2275 = vadd.f32 0.0, %v2274
      %v2276 = vpop.f32.mrf.mxu0
      %v2277 = vadd.f32 0.0, %v2276
      %2278 = vdwg.mxu0
      %2279 = vmatpush.bf16.msra.mxu0 0
      %2280 = vmatpush.bf16.msra.mxu0 0
      %2281 = vmatpush.bf16.msra.mxu0 0
      %2282 = vmatpush.bf16.msra.mxu0 0
      %2283 = vmatpush.bf16.msra.mxu0 0
      %2284 = vmatpush.bf16.msra.mxu0 0
      %2285 = vmatpush.bf16.msra.mxu0 0
      %2286 = vmatpush.bf16.msra.mxu0 %v2183
      %2287 = vmatmul.bf16.gmra.mxu0 %v2193
      %v2288 = vpop.f32.mrf.mxu0
      %v2289 = vadd.f32 0.0, %v2288
      %v2290 = vpop.f32.mrf.mxu0
      %v2291 = vadd.f32 0.0, %v2290
      %2292 = vdwg.mxu0
      %2293 = vmatpush.bf16.msra.mxu0 0
      %2294 = vmatpush.bf16.msra.mxu0 0
      %2295 = vmatpush.bf16.msra.mxu0 0
      %2296 = vmatpush.bf16.msra.mxu0 0
      %2297 = vmatpush.bf16.msra.mxu0 0
      %2298 = vmatpush.bf16.msra.mxu0 0
      %2299 = vmatpush.bf16.msra.mxu0 0
      %2300 = vmatpush.bf16.msra.mxu0 %v2184
      %2301 = vmatmul.bf16.gmra.mxu0 %v2193
      %v2302 = vpop.f32.mrf.mxu0
      %v2303 = vadd.f32 0.0, %v2302
      %v2304 = vpop.f32.mrf.mxu0
      %v2305 = vadd.f32 0.0, %v2304
      %2306 = vdwg.mxu0
      %v2307 = vadd.f32 %v2088, %v2205
      %v2308 = vadd.f32 %v2089, %v2219
      %v2309 = vadd.f32 %v2090, %v2233
      %v2310 = vadd.f32 %v2091, %v2247
      %v2311 = vadd.f32 %v2092, %v2261
      %v2312 = vadd.f32 %v2093, %v2275
      %v2313 = vadd.f32 %v2094, %v2289
      %v2314 = vadd.f32 %v2095, %v2303
      %v2315 = vadd.f32 %v2096, %v2207
      %v2316 = vadd.f32 %v2097, %v2221
      %v2317 = vadd.f32 %v2098, %v2235
      %v2318 = vadd.f32 %v2099, %v2249
      %v2319 = vadd.f32 %v2100, %v2263
      %v2320 = vadd.f32 %v2101, %v2277
      %v2321 = vadd.f32 %v2102, %v2291
      %v2322 = vadd.f32 %v2103, %v2305
      %2323 = vrot.lane.b32.xlu0 %v609, 95
      %v2324 = vpop.permute.xlu0 %2323
      %2325 = vrot.lane.b32.xlu0 %v617, 95
      %v2326 = vpop.permute.xlu0 %2325
      %2327 = vrot.lane.b32.xlu0 %v610, 95
      %v2328 = vpop.permute.xlu0 %2327
      %2329 = vrot.lane.b32.xlu0 %v618, 95
      %v2330 = vpop.permute.xlu0 %2329
      %2331 = vrot.lane.b32.xlu0 %v611, 95
      %v2332 = vpop.permute.xlu0 %2331
      %2333 = vrot.lane.b32.xlu0 %v619, 95
      %v2334 = vpop.permute.xlu0 %2333
      %2335 = vrot.lane.b32.xlu0 %v612, 95
      %v2336 = vpop.permute.xlu0 %2335
      %2337 = vrot.lane.b32.xlu0 %v620, 95
      %v2338 = vpop.permute.xlu0 %2337
      %2339 = vrot.lane.b32.xlu0 %v613, 95
      %v2340 = vpop.permute.xlu0 %2339
      %2341 = vrot.lane.b32.xlu0 %v621, 95
      %v2342 = vpop.permute.xlu0 %2341
      %2343 = vrot.lane.b32.xlu0 %v614, 95
      %v2344 = vpop.permute.xlu0 %2343
      %2345 = vrot.lane.b32.xlu0 %v622, 95
      %v2346 = vpop.permute.xlu0 %2345
      %2347 = vrot.lane.b32.xlu0 %v615, 95
      %v2348 = vpop.permute.xlu0 %2347
      %2349 = vrot.lane.b32.xlu0 %v623, 95
      %v2350 = vpop.permute.xlu0 %2349
      %2351 = vrot.lane.b32.xlu0 %v616, 95
      %v2352 = vpop.permute.xlu0 %2351
      %2353 = vrot.lane.b32.xlu0 %v624, 95
      %v2354 = vpop.permute.xlu0 %2353
      %vm2355 = vcmp.lt.s32.totalorder %v658, 95
      %v2356 = vsel %vm2355, %v2348, %v2352
      %v2357 = vsel %vm2355, %v2350, %v2354
      %v2358 = vsel %vm2355, %v2344, %v2348
      %v2359 = vsel %vm2355, %v2346, %v2350
      %v2360 = vsel %vm2355, %v2340, %v2344
      %v2361 = vsel %vm2355, %v2342, %v2346
      %v2362 = vsel %vm2355, %v2336, %v2340
      %v2363 = vsel %vm2355, %v2338, %v2342
      %v2364 = vsel %vm2355, %v2332, %v2336
      %v2365 = vsel %vm2355, %v2334, %v2338
      %v2366 = vsel %vm2355, %v2328, %v2332
      %v2367 = vsel %vm2355, %v2330, %v2334
      %v2368 = vsel %vm2355, %v2324, %v2328
      %v2369 = vsel %vm2355, %v2326, %v2330
      %v2370 = vsel %vm2355, %v2352, %v2324
      %v2371 = vsel %vm2355, %v2354, %v2326
      %v2372 = vld [vmem:[%s8 + $0x20] sm:$0x11]
      %v2373 = vld [vmem:[%s8 + $0x28] sm:$0x11]
      %v2374 = vld [vmem:[%s8 + $0x30] sm:$0x11]
      %v2375 = vld [vmem:[%s8 + $0x38] sm:$0x11]
      %v2376 = vunpack.c.l.bf16 %v2372
      %v2377 = vunpack.c.h.bf16 %v2372
      %v2378 = vunpack.c.l.bf16 %v2373
      %v2379 = vunpack.c.h.bf16 %v2373
      %v2380 = vunpack.c.l.bf16 %v2374
      %v2381 = vunpack.c.h.bf16 %v2374
      %v2382 = vunpack.c.l.bf16 %v2375
      %v2383 = vunpack.c.h.bf16 %v2375
      %v2384 = vperm.slane %v2376, 0
      %v2385 = vperm.slane %v2377, 0
      %v2386 = vperm.slane %v2378, 0
      %v2387 = vperm.slane %v2379, 0
      %v2388 = vperm.slane %v2380, 0
      %v2389 = vperm.slane %v2381, 0
      %v2390 = vperm.slane %v2382, 0
      %v2391 = vperm.slane %v2383, 0
      %v2392 = vmul.f32 %v2368, %v2384
      %v2393 = vmul.f32 %v2366, %v2385
      %v2394 = vmul.f32 %v2364, %v2386
      %v2395 = vmul.f32 %v2362, %v2387
      %v2396 = vmul.f32 %v2360, %v2388
      %v2397 = vmul.f32 %v2358, %v2389
      %v2398 = vmul.f32 %v2356, %v2390
      %v2399 = vmul.f32 %v2370, %v2391
      %v2400 = vmul.f32 %v2369, %v2384
      %v2401 = vmul.f32 %v2367, %v2385
      %v2402 = vmul.f32 %v2365, %v2386
      %v2403 = vmul.f32 %v2363, %v2387
      %v2404 = vmul.f32 %v2361, %v2388
      %v2405 = vmul.f32 %v2359, %v2389
      %v2406 = vmul.f32 %v2357, %v2390
      %v2407 = vmul.f32 %v2371, %v2391
      %v2408 = vpack.c.bf16 %v2400, %v2392
      %v2409 = vpack.c.bf16 %v2401, %v2393
      %v2410 = vpack.c.bf16 %v2402, %v2394
      %v2411 = vpack.c.bf16 %v2403, %v2395
      %v2412 = vpack.c.bf16 %v2404, %v2396
      %v2413 = vpack.c.bf16 %v2405, %v2397
      %v2414 = vpack.c.bf16 %v2406, %v2398
      %v2415 = vpack.c.bf16 %v2407, %v2399
      %v2416 = vld [vmem:[%s4 + $0x40] sm:$0xf]
      %v2417 = vld [vmem:[%s4 + $0x44] sm:$0xf]
      %v2420 = vunpack.c.l.b16 %v2416
      %v2421 = vunpack.c.l.b16 %v2417
      %v2422 = vpack.c.b16 %v2421, %v2420
      %v2424 = vsel %vm810, %v2422, 0
      %2426 = vmatpush.bf16.msra.mxu0 0
      %2427 = vmatpush.bf16.msra.mxu0 0
      %2428 = vmatpush.bf16.msra.mxu0 0
      %2429 = vmatpush.bf16.msra.mxu0 0
      %2430 = vmatpush.bf16.msra.mxu0 0
      %2431 = vmatpush.bf16.msra.mxu0 0
      %2432 = vmatpush.bf16.msra.mxu0 0
      %2433 = vmatpush.bf16.msra.mxu0 %v2408
      %2434 = vmatmul.bf16.gmra.mxu0 %v2424
      %v2435 = vpop.f32.mrf.mxu0
      %v2436 = vadd.f32 0.0, %v2435
      %v2437 = vpop.f32.mrf.mxu0
      %v2438 = vadd.f32 0.0, %v2437
      %2439 = vdwg.mxu0
      %2440 = vmatpush.bf16.msra.mxu0 0
      %2441 = vmatpush.bf16.msra.mxu0 0
      %2442 = vmatpush.bf16.msra.mxu0 0
      %2443 = vmatpush.bf16.msra.mxu0 0
      %2444 = vmatpush.bf16.msra.mxu0 0
      %2445 = vmatpush.bf16.msra.mxu0 0
      %2446 = vmatpush.bf16.msra.mxu0 0
      %2447 = vmatpush.bf16.msra.mxu0 %v2409
      %2448 = vmatmul.bf16.gmra.mxu0 %v2424
      %v2449 = vpop.f32.mrf.mxu0
      %v2450 = vadd.f32 0.0, %v2449
      %v2451 = vpop.f32.mrf.mxu0
      %v2452 = vadd.f32 0.0, %v2451
      %2453 = vdwg.mxu0
      %2454 = vmatpush.bf16.msra.mxu0 0
      %2455 = vmatpush.bf16.msra.mxu0 0
      %2456 = vmatpush.bf16.msra.mxu0 0
      %2457 = vmatpush.bf16.msra.mxu0 0
      %2458 = vmatpush.bf16.msra.mxu0 0
      %2459 = vmatpush.bf16.msra.mxu0 0
      %2460 = vmatpush.bf16.msra.mxu0 0
      %2461 = vmatpush.bf16.msra.mxu0 %v2410
      %2462 = vmatmul.bf16.gmra.mxu0 %v2424
      %v2463 = vpop.f32.mrf.mxu0
      %v2464 = vadd.f32 0.0, %v2463
      %v2465 = vpop.f32.mrf.mxu0
      %v2466 = vadd.f32 0.0, %v2465
      %2467 = vdwg.mxu0
      %2468 = vmatpush.bf16.msra.mxu0 0
      %2469 = vmatpush.bf16.msra.mxu0 0
      %2470 = vmatpush.bf16.msra.mxu0 0
      %2471 = vmatpush.bf16.msra.mxu0 0
      %2472 = vmatpush.bf16.msra.mxu0 0
      %2473 = vmatpush.bf16.msra.mxu0 0
      %2474 = vmatpush.bf16.msra.mxu0 0
      %2475 = vmatpush.bf16.msra.mxu0 %v2411
      %2476 = vmatmul.bf16.gmra.mxu0 %v2424
      %v2477 = vpop.f32.mrf.mxu0
      %v2478 = vadd.f32 0.0, %v2477
      %v2479 = vpop.f32.mrf.mxu0
      %v2480 = vadd.f32 0.0, %v2479
      %2481 = vdwg.mxu0
      %2482 = vmatpush.bf16.msra.mxu0 0
      %2483 = vmatpush.bf16.msra.mxu0 0
      %2484 = vmatpush.bf16.msra.mxu0 0
      %2485 = vmatpush.bf16.msra.mxu0 0
      %2486 = vmatpush.bf16.msra.mxu0 0
      %2487 = vmatpush.bf16.msra.mxu0 0
      %2488 = vmatpush.bf16.msra.mxu0 0
      %2489 = vmatpush.bf16.msra.mxu0 %v2412
      %2490 = vmatmul.bf16.gmra.mxu0 %v2424
      %v2491 = vpop.f32.mrf.mxu0
      %v2492 = vadd.f32 0.0, %v2491
      %v2493 = vpop.f32.mrf.mxu0
      %v2494 = vadd.f32 0.0, %v2493
      %2495 = vdwg.mxu0
      %2496 = vmatpush.bf16.msra.mxu0 0
      %2497 = vmatpush.bf16.msra.mxu0 0
      %2498 = vmatpush.bf16.msra.mxu0 0
      %2499 = vmatpush.bf16.msra.mxu0 0
      %2500 = vmatpush.bf16.msra.mxu0 0
      %2501 = vmatpush.bf16.msra.mxu0 0
      %2502 = vmatpush.bf16.msra.mxu0 0
      %2503 = vmatpush.bf16.msra.mxu0 %v2413
      %2504 = vmatmul.bf16.gmra.mxu0 %v2424
      %v2505 = vpop.f32.mrf.mxu0
      %v2506 = vadd.f32 0.0, %v2505
      %v2507 = vpop.f32.mrf.mxu0
      %v2508 = vadd.f32 0.0, %v2507
      %2509 = vdwg.mxu0
      %2510 = vmatpush.bf16.msra.mxu0 0
      %2511 = vmatpush.bf16.msra.mxu0 0
      %2512 = vmatpush.bf16.msra.mxu0 0
      %2513 = vmatpush.bf16.msra.mxu0 0
      %2514 = vmatpush.bf16.msra.mxu0 0
      %2515 = vmatpush.bf16.msra.mxu0 0
      %2516 = vmatpush.bf16.msra.mxu0 0
      %2517 = vmatpush.bf16.msra.mxu0 %v2414
      %2518 = vmatmul.bf16.gmra.mxu0 %v2424
      %v2519 = vpop.f32.mrf.mxu0
      %v2520 = vadd.f32 0.0, %v2519
      %v2521 = vpop.f32.mrf.mxu0
      %v2522 = vadd.f32 0.0, %v2521
      %2523 = vdwg.mxu0
      %2524 = vmatpush.bf16.msra.mxu0 0
      %2525 = vmatpush.bf16.msra.mxu0 0
      %2526 = vmatpush.bf16.msra.mxu0 0
      %2527 = vmatpush.bf16.msra.mxu0 0
      %2528 = vmatpush.bf16.msra.mxu0 0
      %2529 = vmatpush.bf16.msra.mxu0 0
      %2530 = vmatpush.bf16.msra.mxu0 0
      %2531 = vmatpush.bf16.msra.mxu0 %v2415
      %2532 = vmatmul.bf16.gmra.mxu0 %v2424
      %v2533 = vpop.f32.mrf.mxu0
      %v2534 = vadd.f32 0.0, %v2533
      %v2535 = vpop.f32.mrf.mxu0
      %v2536 = vadd.f32 0.0, %v2535
      %2537 = vdwg.mxu0
      %v2538 = vadd.f32 %v2307, %v2436
      %v2539 = vadd.f32 %v2308, %v2450
      %v2540 = vadd.f32 %v2309, %v2464
      %v2541 = vadd.f32 %v2310, %v2478
      %v2542 = vadd.f32 %v2311, %v2492
      %v2543 = vadd.f32 %v2312, %v2506
      %v2544 = vadd.f32 %v2313, %v2520
      %v2545 = vadd.f32 %v2314, %v2534
      %v2546 = vadd.f32 %v2315, %v2438
      %v2547 = vadd.f32 %v2316, %v2452
      %v2548 = vadd.f32 %v2317, %v2466
      %v2549 = vadd.f32 %v2318, %v2480
      %v2550 = vadd.f32 %v2319, %v2494
      %v2551 = vadd.f32 %v2320, %v2508
      %v2552 = vadd.f32 %v2321, %v2522
      %v2553 = vadd.f32 %v2322, %v2536
      %v2554 = vld [vmem:[%s6] sm:$0xff]
      %v2555 = vld [vmem:[%s6 + $0x8] sm:$0xff]
      %2557 = vset.pattern.permute.xlu0 0
      %2558 = vperm.xlu0 %2557, %v2554
      %v2559 = vpop.permute.xlu0 %2558
      %2562 = vset.pattern.permute.xlu0 0
      %2563 = vperm.xlu0 %2562, %v2555
      %v2564 = vpop.permute.xlu0 %2563
      %v2566 = vadd.f32 %v2538, %v2559
      %v2567 = vadd.f32 %v2539, %v2559
      %v2568 = vadd.f32 %v2540, %v2559
      %v2569 = vadd.f32 %v2541, %v2559
      %v2570 = vadd.f32 %v2542, %v2559
      %v2571 = vadd.f32 %v2543, %v2559
      %v2572 = vadd.f32 %v2544, %v2559
      %v2573 = vadd.f32 %v2545, %v2559
      %v2574 = vadd.f32 %v2546, %v2564
      %v2575 = vadd.f32 %v2547, %v2564
      %v2576 = vadd.f32 %v2548, %v2564
      %v2577 = vadd.f32 %v2549, %v2564
      %v2578 = vadd.f32 %v2550, %v2564
      %v2579 = vadd.f32 %v2551, %v2564
      %v2580 = vadd.f32 %v2552, %v2564
      %v2581 = vadd.f32 %v2553, %v2564
      %v2582 = vand.u32 2147483647, %v2566
      %v2583 = vand.u32 2147483647, %v2567
      %v2584 = vand.u32 2147483647, %v2568
      %v2585 = vand.u32 2147483647, %v2569
      %v2586 = vand.u32 2147483647, %v2570
      %v2587 = vand.u32 2147483647, %v2571
      %v2588 = vand.u32 2147483647, %v2572
      %v2589 = vand.u32 2147483647, %v2573
      %v2590 = vand.u32 2147483647, %v2574
      %v2591 = vand.u32 2147483647, %v2575
      %v2592 = vand.u32 2147483647, %v2576
      %v2593 = vand.u32 2147483647, %v2577
      %v2594 = vand.u32 2147483647, %v2578
      %v2595 = vand.u32 2147483647, %v2579
      %v2596 = vand.u32 2147483647, %v2580
      %v2597 = vand.u32 2147483647, %v2581
      %2598 = vst [vmem:[%s414] sm:$0xff] %v2582
      %2599 = vst [vmem:[%s414 + $0x8] sm:$0xff] %v2583
      %2600 = vst [vmem:[%s414 + $0x10] sm:$0xff] %v2584
      %2601 = vst [vmem:[%s414 + $0x18] sm:$0xff] %v2585
      %2602 = vst [vmem:[%s414 + $0x20] sm:$0xff] %v2586
      %2603 = vst [vmem:[%s414 + $0x28] sm:$0xff] %v2587
      %2604 = vst [vmem:[%s414 + $0x30] sm:$0xff] %v2588
      %2605 = vst [vmem:[%s414 + $0x38] sm:$0xff] %v2589
      %2606 = vst [vmem:[%s414 + $0x40] sm:$0xff] %v2590
      %2607 = vst [vmem:[%s414 + $0x48] sm:$0xff] %v2591
      %2608 = vst [vmem:[%s414 + $0x50] sm:$0xff] %v2592
      %2609 = vst [vmem:[%s414 + $0x58] sm:$0xff] %v2593
      %2610 = vst [vmem:[%s414 + $0x60] sm:$0xff] %v2594
      %2611 = vst [vmem:[%s414 + $0x68] sm:$0xff] %v2595
      %2612 = vst [vmem:[%s414 + $0x70] sm:$0xff] %v2596
      %2613 = vst [vmem:[%s414 + $0x78] sm:$0xff] %v2597
      %v2614 = vld [vmem:[%s409] sm:$0x77]
      %v2615 = vld [vmem:[%s3] sm:$0xff]
      %v2616 = vld [vmem:[%s3 + $0x8] sm:$0xff]
      %v2617 = vld [vmem:[%s3 + $0x10] sm:$0xff]
      %v2618 = vld [vmem:[%s3 + $0x18] sm:$0xff]
      %2620 = vset.pattern.permute.xlu0 0
      %2621 = vperm.xlu0 %2620, %v2615
      %v2622 = vpop.permute.xlu0 %2621
      %2625 = vset.pattern.permute.xlu0 0
      %2626 = vperm.xlu0 %2625, %v2616
      %v2627 = vpop.permute.xlu0 %2626
      %2630 = vset.pattern.permute.xlu0 0
      %2631 = vperm.xlu0 %2630, %v2617
      %v2632 = vpop.permute.xlu0 %2631
      %2635 = vset.pattern.permute.xlu0 0
      %2636 = vperm.xlu0 %2635, %v2618
      %v2637 = vpop.permute.xlu0 %2636
      %v2640 = vperm.slane %v2614, 0
      %v2641 = vperm.slane %v2614, 4
      %v2644 = vperm.slane %v2640, 0
      %v2645 = vperm.slane %v2641, 0
      %v2646 = vmul.f32 %v2622, %v2644
      %v2647 = vmul.f32 %v2622, %v2645
      %v2648 = vmul.f32 %v2627, %v2644
      %v2649 = vmul.f32 %v2627, %v2645
      %v2650 = vmul.f32 %v2632, %v2644
      %v2651 = vmul.f32 %v2632, %v2645
      %v2652 = vmul.f32 %v2637, %v2644
      %v2653 = vmul.f32 %v2637, %v2645
      %2654 = vset.pattern.permute.xlu0 1
      %2655 = vperm.xlu0 %2654, %v2615
      %v2656 = vpop.permute.xlu0 %2655
      %2658 = vset.pattern.permute.xlu0 1
      %2659 = vperm.xlu0 %2658, %v2616
      %v2660 = vpop.permute.xlu0 %2659
      %2662 = vset.pattern.permute.xlu0 1
      %2663 = vperm.xlu0 %2662, %v2617
      %v2664 = vpop.permute.xlu0 %2663
      %2666 = vset.pattern.permute.xlu0 1
      %2667 = vperm.xlu0 %2666, %v2618
      %v2668 = vpop.permute.xlu0 %2667
      %v2670 = vperm.slane %v2614, 1
      %v2671 = vperm.slane %v2614, 5
      %v2674 = vperm.slane %v2670, 1
      %v2675 = vperm.slane %v2671, 1
      %v2676 = vmul.f32 %v2656, %v2674
      %v2677 = vmul.f32 %v2656, %v2675
      %v2678 = vmul.f32 %v2660, %v2674
      %v2679 = vmul.f32 %v2660, %v2675
      %v2680 = vmul.f32 %v2664, %v2674
      %v2681 = vmul.f32 %v2664, %v2675
      %v2682 = vmul.f32 %v2668, %v2674
      %v2683 = vmul.f32 %v2668, %v2675
      %v2684 = vadd.f32 %v2646, %v2676
      %v2685 = vadd.f32 %v2647, %v2677
      %v2686 = vadd.f32 %v2648, %v2678
      %v2687 = vadd.f32 %v2649, %v2679
      %v2688 = vadd.f32 %v2650, %v2680
      %v2689 = vadd.f32 %v2651, %v2681
      %v2690 = vadd.f32 %v2652, %v2682
      %v2691 = vadd.f32 %v2653, %v2683
      %2692 = vset.pattern.permute.xlu0 2
      %2693 = vperm.xlu0 %2692, %v2615
      %v2694 = vpop.permute.xlu0 %2693
      %2696 = vset.pattern.permute.xlu0 2
      %2697 = vperm.xlu0 %2696, %v2616
      %v2698 = vpop.permute.xlu0 %2697
      %2700 = vset.pattern.permute.xlu0 2
      %2701 = vperm.xlu0 %2700, %v2617
      %v2702 = vpop.permute.xlu0 %2701
      %2704 = vset.pattern.permute.xlu0 2
      %2705 = vperm.xlu0 %2704, %v2618
      %v2706 = vpop.permute.xlu0 %2705
      %v2708 = vperm.slane %v2614, 2
      %v2709 = vperm.slane %v2614, 6
      %v2712 = vperm.slane %v2708, 2
      %v2713 = vperm.slane %v2709, 2
      %v2714 = vmul.f32 %v2694, %v2712
      %v2715 = vmul.f32 %v2694, %v2713
      %v2716 = vmul.f32 %v2698, %v2712
      %v2717 = vmul.f32 %v2698, %v2713
      %v2718 = vmul.f32 %v2702, %v2712
      %v2719 = vmul.f32 %v2702, %v2713
      %v2720 = vmul.f32 %v2706, %v2712
      %v2721 = vmul.f32 %v2706, %v2713
      %v2722 = vadd.f32 %v2684, %v2714
      %v2723 = vadd.f32 %v2685, %v2715
      %v2724 = vadd.f32 %v2686, %v2716
      %v2725 = vadd.f32 %v2687, %v2717
      %v2726 = vadd.f32 %v2688, %v2718
      %v2727 = vadd.f32 %v2689, %v2719
      %v2728 = vadd.f32 %v2690, %v2720
      %v2729 = vadd.f32 %v2691, %v2721
      %v2730 = vtanh.pop %v2722
      %v2731 = vtanh.pop %v2723
      %v2732 = vtanh.pop %v2724
      %v2733 = vtanh.pop %v2725
      %v2734 = vtanh.pop %v2726
      %v2735 = vtanh.pop %v2727
      %v2736 = vtanh.pop %v2728
      %v2737 = vtanh.pop %v2729
      %2738 = vrot.lane.b32.xlu0 %v2730, 17
      %v2739 = vpop.permute.xlu0 %2738
      %2740 = vrot.lane.b32.xlu0 %v2732, 17
      %v2741 = vpop.permute.xlu0 %2740
      %2742 = vrot.lane.b32.xlu0 %v2734, 17
      %v2743 = vpop.permute.xlu0 %2742
      %2744 = vrot.lane.b32.xlu0 %v2736, 17
      %v2745 = vpop.permute.xlu0 %2744
      %2746 = vrot.lane.b32.xlu0 %v2731, 17
      %v2747 = vpop.permute.xlu0 %2746
      %2748 = vrot.lane.b32.xlu0 %v2733, 17
      %v2749 = vpop.permute.xlu0 %2748
      %2750 = vrot.lane.b32.xlu0 %v2735, 17
      %v2751 = vpop.permute.xlu0 %2750
      %2752 = vrot.lane.b32.xlu0 %v2737, 17
      %v2753 = vpop.permute.xlu0 %2752
      %vm2754 = vcmp.lt.s32.totalorder %v658, 17
      %v2755 = vsel %vm2754, %v2739, %v2747
      %v2756 = vsel %vm2754, %v2741, %v2749
      %v2757 = vsel %vm2754, %v2743, %v2751
      %v2758 = vsel %vm2754, %v2745, %v2753
      %v2759 = vsel %vm2754, %v2747, %v2739
      %v2760 = vsel %vm2754, %v2749, %v2741
      %v2761 = vsel %vm2754, %v2751, %v2743
      %v2762 = vsel %vm2754, %v2753, %v2745
      %v2763 = vld [vmem:[%s9] sm:$0x11]
      %v2764 = vunpack.c.l.bf16 %v2763
      %v2765 = vunpack.c.h.bf16 %v2763
      %v2766 = vperm.slane %v2764, 0
      %v2767 = vperm.slane %v2765, 0
      %v2768 = vmul.f32 %v2759, %v2766
      %v2769 = vmul.f32 %v2755, %v2767
      %v2770 = vmul.f32 %v2760, %v2766
      %v2771 = vmul.f32 %v2756, %v2767
      %v2772 = vmul.f32 %v2761, %v2766
      %v2773 = vmul.f32 %v2757, %v2767
      %v2774 = vmul.f32 %v2762, %v2766
      %v2775 = vmul.f32 %v2758, %v2767
      %v2776 = vpack.c.bf16 %v2770, %v2768
      %v2777 = vpack.c.bf16 %v2771, %v2769
      %v2778 = vpack.c.bf16 %v2774, %v2772
      %v2779 = vpack.c.bf16 %v2775, %v2773
      %v2780 = vld [vmem:[%s5] sm:$0xf]
      %v2781 = vld [vmem:[%s5 + $0x4] sm:$0xf]
      %2782 = vrot.lane.b32.xlu0 %v2730, 16
      %v2783 = vpop.permute.xlu0 %2782
      %2784 = vrot.lane.b32.xlu0 %v2732, 16
      %v2785 = vpop.permute.xlu0 %2784
      %2786 = vrot.lane.b32.xlu0 %v2734, 16
      %v2787 = vpop.permute.xlu0 %2786
      %2788 = vrot.lane.b32.xlu0 %v2736, 16
      %v2789 = vpop.permute.xlu0 %2788
      %2790 = vrot.lane.b32.xlu0 %v2731, 16
      %v2791 = vpop.permute.xlu0 %2790
      %2792 = vrot.lane.b32.xlu0 %v2733, 16
      %v2793 = vpop.permute.xlu0 %2792
      %2794 = vrot.lane.b32.xlu0 %v2735, 16
      %v2795 = vpop.permute.xlu0 %2794
      %2796 = vrot.lane.b32.xlu0 %v2737, 16
      %v2797 = vpop.permute.xlu0 %2796
      %vm2798 = vcmp.lt.s32.totalorder %v658, 16
      %v2799 = vsel %vm2798, %v2783, %v2791
      %v2800 = vsel %vm2798, %v2785, %v2793
      %v2801 = vsel %vm2798, %v2787, %v2795
      %v2802 = vsel %vm2798, %v2789, %v2797
      %v2803 = vsel %vm2798, %v2791, %v2783
      %v2804 = vsel %vm2798, %v2793, %v2785
      %v2805 = vsel %vm2798, %v2795, %v2787
      %v2806 = vsel %vm2798, %v2797, %v2789
      %v2807 = vperm.slane %v2764, 1
      %v2808 = vperm.slane %v2765, 1
      %v2809 = vmul.f32 %v2803, %v2807
      %v2810 = vmul.f32 %v2799, %v2808
      %v2811 = vmul.f32 %v2804, %v2807
      %v2812 = vmul.f32 %v2800, %v2808
      %v2813 = vmul.f32 %v2805, %v2807
      %v2814 = vmul.f32 %v2801, %v2808
      %v2815 = vmul.f32 %v2806, %v2807
      %v2816 = vmul.f32 %v2802, %v2808
      %v2817 = vpack.c.bf16 %v2811, %v2809
      %v2818 = vpack.c.bf16 %v2812, %v2810
      %v2819 = vpack.c.bf16 %v2815, %v2813
      %v2820 = vpack.c.bf16 %v2816, %v2814
      %v2821 = vld [vmem:[%s5 + $0x8] sm:$0xf]
      %v2822 = vld [vmem:[%s5 + $0xc] sm:$0xf]
      %v2825 = vunpack.c.l.b16 %v2821
      %v2826 = vunpack.c.l.b16 %v2822
      %v2827 = vpack.c.b16 %v2826, %v2825
      %vm2828 = vcmask 261120
      %v2830 = vsel %vm2828, %v2827, 0
      %2832 = vmatpush.bf16.msra.mxu0 0
      %2833 = vmatpush.bf16.msra.mxu0 0
      %2834 = vmatpush.bf16.msra.mxu0 0
      %2835 = vmatpush.bf16.msra.mxu0 0
      %2836 = vmatpush.bf16.msra.mxu0 0
      %2837 = vmatpush.bf16.msra.mxu0 0
      %2838 = vmatpush.bf16.msra.mxu0 %v2819
      %2839 = vmatpush.bf16.msra.mxu0 %v2817
      %2840 = vmatmul.bf16.gmra.mxu0 %v2830
      %v2841 = vpop.f32.mrf.mxu0
      %v2842 = vadd.f32 0.0, %v2841
      %v2843 = vpop.f32.mrf.mxu0
      %v2844 = vadd.f32 0.0, %v2843
      %2845 = vdwg.mxu0
      %2846 = vmatpush.bf16.msra.mxu0 0
      %2847 = vmatpush.bf16.msra.mxu0 0
      %2848 = vmatpush.bf16.msra.mxu0 0
      %2849 = vmatpush.bf16.msra.mxu0 0
      %2850 = vmatpush.bf16.msra.mxu0 0
      %2851 = vmatpush.bf16.msra.mxu0 0
      %2852 = vmatpush.bf16.msra.mxu0 %v2820
      %2853 = vmatpush.bf16.msra.mxu0 %v2818
      %2854 = vmatmul.bf16.gmra.mxu0 %v2830
      %v2855 = vpop.f32.mrf.mxu0
      %v2856 = vadd.f32 0.0, %v2855
      %v2857 = vpop.f32.mrf.mxu0
      %v2858 = vadd.f32 0.0, %v2857
      %2859 = vdwg.mxu0
      %v2862 = vunpack.c.l.b16 %v2780
      %v2863 = vunpack.c.l.b16 %v2781
      %v2864 = vpack.c.b16 %v2863, %v2862
      %v2866 = vsel %vm2828, %v2864, 0
      %2868 = vmatpush.bf16.msra.mxu0 0
      %2869 = vmatpush.bf16.msra.mxu0 0
      %2870 = vmatpush.bf16.msra.mxu0 0
      %2871 = vmatpush.bf16.msra.mxu0 0
      %2872 = vmatpush.bf16.msra.mxu0 0
      %2873 = vmatpush.bf16.msra.mxu0 0
      %2874 = vmatpush.bf16.msra.mxu0 %v2778
      %2875 = vmatpush.bf16.msra.mxu0 %v2776
      %2876 = vmatmul.bf16.gmra.mxu0 %v2866
      %v2877 = vpop.f32.mrf.mxu0
      %v2878 = vadd.f32 %v2842, %v2877
      %v2879 = vpop.f32.mrf.mxu0
      %v2880 = vadd.f32 %v2844, %v2879
      %2881 = vdwg.mxu0
      %2882 = vmatpush.bf16.msra.mxu0 0
      %2883 = vmatpush.bf16.msra.mxu0 0
      %2884 = vmatpush.bf16.msra.mxu0 0
      %2885 = vmatpush.bf16.msra.mxu0 0
      %2886 = vmatpush.bf16.msra.mxu0 0
      %2887 = vmatpush.bf16.msra.mxu0 0
      %2888 = vmatpush.bf16.msra.mxu0 %v2779
      %2889 = vmatpush.bf16.msra.mxu0 %v2777
      %2890 = vmatmul.bf16.gmra.mxu0 %v2866
      %v2891 = vpop.f32.mrf.mxu0
      %v2892 = vadd.f32 %v2856, %v2891
      %v2893 = vpop.f32.mrf.mxu0
      %v2894 = vadd.f32 %v2858, %v2893
      %2895 = vdwg.mxu0
      %2896 = vrot.lane.b32.xlu0 %v2730, 15
      %v2897 = vpop.permute.xlu0 %2896
      %2898 = vrot.lane.b32.xlu0 %v2732, 15
      %v2899 = vpop.permute.xlu0 %2898
      %2900 = vrot.lane.b32.xlu0 %v2734, 15
      %v2901 = vpop.permute.xlu0 %2900
      %2902 = vrot.lane.b32.xlu0 %v2736, 15
      %v2903 = vpop.permute.xlu0 %2902
      %2904 = vrot.lane.b32.xlu0 %v2731, 15
      %v2905 = vpop.permute.xlu0 %2904
      %2906 = vrot.lane.b32.xlu0 %v2733, 15
      %v2907 = vpop.permute.xlu0 %2906
      %2908 = vrot.lane.b32.xlu0 %v2735, 15
      %v2909 = vpop.permute.xlu0 %2908
      %2910 = vrot.lane.b32.xlu0 %v2737, 15
      %v2911 = vpop.permute.xlu0 %2910
      %vm2912 = vcmp.lt.s32.totalorder %v658, 15
      %v2913 = vsel %vm2912, %v2897, %v2905
      %v2914 = vsel %vm2912, %v2899, %v2907
      %v2915 = vsel %vm2912, %v2901, %v2909
      %v2916 = vsel %vm2912, %v2903, %v2911
      %v2917 = vsel %vm2912, %v2905, %v2897
      %v2918 = vsel %vm2912, %v2907, %v2899
      %v2919 = vsel %vm2912, %v2909, %v2901
      %v2920 = vsel %vm2912, %v2911, %v2903
      %v2921 = vld [vmem:[%s9] sm:$0x22]
      %v2922 = vunpack.c.l.bf16 %v2921
      %v2923 = vunpack.c.h.bf16 %v2921
      %v2924 = vperm.slane %v2922, 2
      %v2925 = vperm.slane %v2923, 2
      %v2926 = vmul.f32 %v2917, %v2924
      %v2927 = vmul.f32 %v2913, %v2925
      %v2928 = vmul.f32 %v2918, %v2924
      %v2929 = vmul.f32 %v2914, %v2925
      %v2930 = vmul.f32 %v2919, %v2924
      %v2931 = vmul.f32 %v2915, %v2925
      %v2932 = vmul.f32 %v2920, %v2924
      %v2933 = vmul.f32 %v2916, %v2925
      %v2934 = vpack.c.bf16 %v2928, %v2926
      %v2935 = vpack.c.bf16 %v2929, %v2927
      %v2936 = vpack.c.bf16 %v2932, %v2930
      %v2937 = vpack.c.bf16 %v2933, %v2931
      %v2938 = vld [vmem:[%s5 + $0x10] sm:$0xf]
      %v2939 = vld [vmem:[%s5 + $0x14] sm:$0xf]
      %v2942 = vunpack.c.l.b16 %v2938
      %v2943 = vunpack.c.l.b16 %v2939
      %v2944 = vpack.c.b16 %v2943, %v2942
      %v2946 = vsel %vm2828, %v2944, 0
      %2948 = vmatpush.bf16.msra.mxu0 0
      %2949 = vmatpush.bf16.msra.mxu0 0
      %2950 = vmatpush.bf16.msra.mxu0 0
      %2951 = vmatpush.bf16.msra.mxu0 0
      %2952 = vmatpush.bf16.msra.mxu0 0
      %2953 = vmatpush.bf16.msra.mxu0 0
      %2954 = vmatpush.bf16.msra.mxu0 %v2936
      %2955 = vmatpush.bf16.msra.mxu0 %v2934
      %2956 = vmatmul.bf16.gmra.mxu0 %v2946
      %v2957 = vpop.f32.mrf.mxu0
      %v2958 = vadd.f32 0.0, %v2957
      %v2959 = vpop.f32.mrf.mxu0
      %v2960 = vadd.f32 0.0, %v2959
      %2961 = vdwg.mxu0
      %2962 = vmatpush.bf16.msra.mxu0 0
      %2963 = vmatpush.bf16.msra.mxu0 0
      %2964 = vmatpush.bf16.msra.mxu0 0
      %2965 = vmatpush.bf16.msra.mxu0 0
      %2966 = vmatpush.bf16.msra.mxu0 0
      %2967 = vmatpush.bf16.msra.mxu0 0
      %2968 = vmatpush.bf16.msra.mxu0 %v2937
      %2969 = vmatpush.bf16.msra.mxu0 %v2935
      %2970 = vmatmul.bf16.gmra.mxu0 %v2946
      %v2971 = vpop.f32.mrf.mxu0
      %v2972 = vadd.f32 0.0, %v2971
      %v2973 = vpop.f32.mrf.mxu0
      %v2974 = vadd.f32 0.0, %v2973
      %2975 = vdwg.mxu0
      %v2976 = vadd.f32 %v2878, %v2958
      %v2977 = vadd.f32 %v2892, %v2972
      %v2978 = vadd.f32 %v2880, %v2960
      %v2979 = vadd.f32 %v2894, %v2974
      %2980 = vrot.lane.b32.xlu0 %v2730, 1
      %v2981 = vpop.permute.xlu0 %2980
      %2982 = vrot.lane.b32.xlu0 %v2732, 1
      %v2983 = vpop.permute.xlu0 %2982
      %2984 = vrot.lane.b32.xlu0 %v2734, 1
      %v2985 = vpop.permute.xlu0 %2984
      %2986 = vrot.lane.b32.xlu0 %v2736, 1
      %v2987 = vpop.permute.xlu0 %2986
      %2988 = vrot.lane.b32.xlu0 %v2731, 1
      %v2989 = vpop.permute.xlu0 %2988
      %2990 = vrot.lane.b32.xlu0 %v2733, 1
      %v2991 = vpop.permute.xlu0 %2990
      %2992 = vrot.lane.b32.xlu0 %v2735, 1
      %v2993 = vpop.permute.xlu0 %2992
      %2994 = vrot.lane.b32.xlu0 %v2737, 1
      %v2995 = vpop.permute.xlu0 %2994
      %v2996 = vsel %vm1309, %v2981, %v2989
      %v2997 = vsel %vm1309, %v2983, %v2991
      %v2998 = vsel %vm1309, %v2985, %v2993
      %v2999 = vsel %vm1309, %v2987, %v2995
      %v3000 = vsel %vm1309, %v2989, %v2981
      %v3001 = vsel %vm1309, %v2991, %v2983
      %v3002 = vsel %vm1309, %v2993, %v2985
      %v3003 = vsel %vm1309, %v2995, %v2987
      %v3004 = vperm.slane %v2922, 3
      %v3005 = vperm.slane %v2923, 3
      %v3006 = vmul.f32 %v3000, %v3004
      %v3007 = vmul.f32 %v2996, %v3005
      %v3008 = vmul.f32 %v3001, %v3004
      %v3009 = vmul.f32 %v2997, %v3005
      %v3010 = vmul.f32 %v3002, %v3004
      %v3011 = vmul.f32 %v2998, %v3005
      %v3012 = vmul.f32 %v3003, %v3004
      %v3013 = vmul.f32 %v2999, %v3005
      %v3014 = vpack.c.bf16 %v3008, %v3006
      %v3015 = vpack.c.bf16 %v3009, %v3007
      %v3016 = vpack.c.bf16 %v3012, %v3010
      %v3017 = vpack.c.bf16 %v3013, %v3011
      %v3018 = vld [vmem:[%s5 + $0x18] sm:$0xf]
      %v3019 = vld [vmem:[%s5 + $0x1c] sm:$0xf]
      %v3022 = vunpack.c.l.b16 %v3018
      %v3023 = vunpack.c.l.b16 %v3019
      %v3024 = vpack.c.b16 %v3023, %v3022
      %v3026 = vsel %vm2828, %v3024, 0
      %3028 = vmatpush.bf16.msra.mxu0 0
      %3029 = vmatpush.bf16.msra.mxu0 0
      %3030 = vmatpush.bf16.msra.mxu0 0
      %3031 = vmatpush.bf16.msra.mxu0 0
      %3032 = vmatpush.bf16.msra.mxu0 0
      %3033 = vmatpush.bf16.msra.mxu0 0
      %3034 = vmatpush.bf16.msra.mxu0 %v3016
      %3035 = vmatpush.bf16.msra.mxu0 %v3014
      %3036 = vmatmul.bf16.gmra.mxu0 %v3026
      %v3037 = vpop.f32.mrf.mxu0
      %v3038 = vadd.f32 0.0, %v3037
      %v3039 = vpop.f32.mrf.mxu0
      %v3040 = vadd.f32 0.0, %v3039
      %3041 = vdwg.mxu0
      %3042 = vmatpush.bf16.msra.mxu0 0
      %3043 = vmatpush.bf16.msra.mxu0 0
      %3044 = vmatpush.bf16.msra.mxu0 0
      %3045 = vmatpush.bf16.msra.mxu0 0
      %3046 = vmatpush.bf16.msra.mxu0 0
      %3047 = vmatpush.bf16.msra.mxu0 0
      %3048 = vmatpush.bf16.msra.mxu0 %v3017
      %3049 = vmatpush.bf16.msra.mxu0 %v3015
      %3050 = vmatmul.bf16.gmra.mxu0 %v3026
      %v3051 = vpop.f32.mrf.mxu0
      %v3052 = vadd.f32 0.0, %v3051
      %v3053 = vpop.f32.mrf.mxu0
      %v3054 = vadd.f32 0.0, %v3053
      %3055 = vdwg.mxu0
      %v3056 = vadd.f32 %v2976, %v3038
      %v3057 = vadd.f32 %v2977, %v3052
      %v3058 = vadd.f32 %v2978, %v3040
      %v3059 = vadd.f32 %v2979, %v3054
      %v3060 = vpack.c.bf16 %v2732, %v2730
      %v3061 = vpack.c.bf16 %v2733, %v2731
      %v3062 = vpack.c.bf16 %v2736, %v2734
      %v3063 = vpack.c.bf16 %v2737, %v2735
      %v3064 = vld [vmem:[%s5 + $0x20] sm:$0xf]
      %v3065 = vld [vmem:[%s5 + $0x24] sm:$0xf]
      %v3068 = vunpack.c.l.b16 %v3064
      %v3069 = vunpack.c.l.b16 %v3065
      %v3070 = vpack.c.b16 %v3069, %v3068
      %v3072 = vsel %vm2828, %v3070, 0
      %3074 = vmatpush.bf16.msra.mxu0 0
      %3075 = vmatpush.bf16.msra.mxu0 0
      %3076 = vmatpush.bf16.msra.mxu0 0
      %3077 = vmatpush.bf16.msra.mxu0 0
      %3078 = vmatpush.bf16.msra.mxu0 0
      %3079 = vmatpush.bf16.msra.mxu0 0
      %3080 = vmatpush.bf16.msra.mxu0 %v3062
      %3081 = vmatpush.bf16.msra.mxu0 %v3060
      %3082 = vmatmul.bf16.gmra.mxu0 %v3072
      %v3083 = vpop.f32.mrf.mxu0
      %v3084 = vadd.f32 0.0, %v3083
      %v3085 = vpop.f32.mrf.mxu0
      %v3086 = vadd.f32 0.0, %v3085
      %3087 = vdwg.mxu0
      %3088 = vmatpush.bf16.msra.mxu0 0
      %3089 = vmatpush.bf16.msra.mxu0 0
      %3090 = vmatpush.bf16.msra.mxu0 0
      %3091 = vmatpush.bf16.msra.mxu0 0
      %3092 = vmatpush.bf16.msra.mxu0 0
      %3093 = vmatpush.bf16.msra.mxu0 0
      %3094 = vmatpush.bf16.msra.mxu0 %v3063
      %3095 = vmatpush.bf16.msra.mxu0 %v3061
      %3096 = vmatmul.bf16.gmra.mxu0 %v3072
      %v3097 = vpop.f32.mrf.mxu0
      %v3098 = vadd.f32 0.0, %v3097
      %v3099 = vpop.f32.mrf.mxu0
      %v3100 = vadd.f32 0.0, %v3099
      %3101 = vdwg.mxu0
      %v3102 = vadd.f32 %v3056, %v3084
      %v3103 = vadd.f32 %v3057, %v3098
      %v3104 = vadd.f32 %v3058, %v3086
      %v3105 = vadd.f32 %v3059, %v3100
      %3106 = vrot.lane.b32.xlu0 %v2730, 127
      %v3107 = vpop.permute.xlu0 %3106
      %3108 = vrot.lane.b32.xlu0 %v2732, 127
      %v3109 = vpop.permute.xlu0 %3108
      %3110 = vrot.lane.b32.xlu0 %v2734, 127
      %v3111 = vpop.permute.xlu0 %3110
      %3112 = vrot.lane.b32.xlu0 %v2736, 127
      %v3113 = vpop.permute.xlu0 %3112
      %3114 = vrot.lane.b32.xlu0 %v2731, 127
      %v3115 = vpop.permute.xlu0 %3114
      %3116 = vrot.lane.b32.xlu0 %v2733, 127
      %v3117 = vpop.permute.xlu0 %3116
      %3118 = vrot.lane.b32.xlu0 %v2735, 127
      %v3119 = vpop.permute.xlu0 %3118
      %3120 = vrot.lane.b32.xlu0 %v2737, 127
      %v3121 = vpop.permute.xlu0 %3120
      %v3122 = vsel %vm1674, %v3107, %v3115
      %v3123 = vsel %vm1674, %v3109, %v3117
      %v3124 = vsel %vm1674, %v3111, %v3119
      %v3125 = vsel %vm1674, %v3113, %v3121
      %v3126 = vsel %vm1674, %v3115, %v3107
      %v3127 = vsel %vm1674, %v3117, %v3109
      %v3128 = vsel %vm1674, %v3119, %v3111
      %v3129 = vsel %vm1674, %v3121, %v3113
      %v3130 = vld [vmem:[%s9] sm:$0x44]
      %v3131 = vunpack.c.l.bf16 %v3130
      %v3132 = vunpack.c.h.bf16 %v3130
      %v3133 = vperm.slane %v3131, 5
      %v3134 = vperm.slane %v3132, 5
      %v3135 = vmul.f32 %v3122, %v3133
      %v3136 = vmul.f32 %v3126, %v3134
      %v3137 = vmul.f32 %v3123, %v3133
      %v3138 = vmul.f32 %v3127, %v3134
      %v3139 = vmul.f32 %v3124, %v3133
      %v3140 = vmul.f32 %v3128, %v3134
      %v3141 = vmul.f32 %v3125, %v3133
      %v3142 = vmul.f32 %v3129, %v3134
      %v3143 = vpack.c.bf16 %v3137, %v3135
      %v3144 = vpack.c.bf16 %v3138, %v3136
      %v3145 = vpack.c.bf16 %v3141, %v3139
      %v3146 = vpack.c.bf16 %v3142, %v3140
      %v3147 = vld [vmem:[%s5 + $0x28] sm:$0xf]
      %v3148 = vld [vmem:[%s5 + $0x2c] sm:$0xf]
      %v3151 = vunpack.c.l.b16 %v3147
      %v3152 = vunpack.c.l.b16 %v3148
      %v3153 = vpack.c.b16 %v3152, %v3151
      %v3155 = vsel %vm2828, %v3153, 0
      %3157 = vmatpush.bf16.msra.mxu0 0
      %3158 = vmatpush.bf16.msra.mxu0 0
      %3159 = vmatpush.bf16.msra.mxu0 0
      %3160 = vmatpush.bf16.msra.mxu0 0
      %3161 = vmatpush.bf16.msra.mxu0 0
      %3162 = vmatpush.bf16.msra.mxu0 0
      %3163 = vmatpush.bf16.msra.mxu0 %v3145
      %3164 = vmatpush.bf16.msra.mxu0 %v3143
      %3165 = vmatmul.bf16.gmra.mxu0 %v3155
      %v3166 = vpop.f32.mrf.mxu0
      %v3167 = vadd.f32 0.0, %v3166
      %v3168 = vpop.f32.mrf.mxu0
      %v3169 = vadd.f32 0.0, %v3168
      %3170 = vdwg.mxu0
      %3171 = vmatpush.bf16.msra.mxu0 0
      %3172 = vmatpush.bf16.msra.mxu0 0
      %3173 = vmatpush.bf16.msra.mxu0 0
      %3174 = vmatpush.bf16.msra.mxu0 0
      %3175 = vmatpush.bf16.msra.mxu0 0
      %3176 = vmatpush.bf16.msra.mxu0 0
      %3177 = vmatpush.bf16.msra.mxu0 %v3146
      %3178 = vmatpush.bf16.msra.mxu0 %v3144
      %3179 = vmatmul.bf16.gmra.mxu0 %v3155
      %v3180 = vpop.f32.mrf.mxu0
      %v3181 = vadd.f32 0.0, %v3180
      %v3182 = vpop.f32.mrf.mxu0
      %v3183 = vadd.f32 0.0, %v3182
      %3184 = vdwg.mxu0
      %v3185 = vadd.f32 %v3102, %v3167
      %v3186 = vadd.f32 %v3103, %v3181
      %v3187 = vadd.f32 %v3104, %v3169
      %v3188 = vadd.f32 %v3105, %v3183
      %3189 = vrot.lane.b32.xlu0 %v2730, 113
      %v3190 = vpop.permute.xlu0 %3189
      %3191 = vrot.lane.b32.xlu0 %v2732, 113
      %v3192 = vpop.permute.xlu0 %3191
      %3193 = vrot.lane.b32.xlu0 %v2734, 113
      %v3194 = vpop.permute.xlu0 %3193
      %3195 = vrot.lane.b32.xlu0 %v2736, 113
      %v3196 = vpop.permute.xlu0 %3195
      %3197 = vrot.lane.b32.xlu0 %v2731, 113
      %v3198 = vpop.permute.xlu0 %3197
      %3199 = vrot.lane.b32.xlu0 %v2733, 113
      %v3200 = vpop.permute.xlu0 %3199
      %3201 = vrot.lane.b32.xlu0 %v2735, 113
      %v3202 = vpop.permute.xlu0 %3201
      %3203 = vrot.lane.b32.xlu0 %v2737, 113
      %v3204 = vpop.permute.xlu0 %3203
      %vm3205 = vcmp.lt.s32.totalorder %v658, 113
      %v3206 = vsel %vm3205, %v3190, %v3198
      %v3207 = vsel %vm3205, %v3192, %v3200
      %v3208 = vsel %vm3205, %v3194, %v3202
      %v3209 = vsel %vm3205, %v3196, %v3204
      %v3210 = vsel %vm3205, %v3198, %v3190
      %v3211 = vsel %vm3205, %v3200, %v3192
      %v3212 = vsel %vm3205, %v3202, %v3194
      %v3213 = vsel %vm3205, %v3204, %v3196
      %v3214 = vld [vmem:[%s9] sm:$0x88]
      %v3215 = vunpack.c.l.bf16 %v3214
      %v3216 = vunpack.c.h.bf16 %v3214
      %v3217 = vperm.slane %v3215, 6
      %v3218 = vperm.slane %v3216, 6
      %v3219 = vmul.f32 %v3206, %v3217
      %v3220 = vmul.f32 %v3210, %v3218
      %v3221 = vmul.f32 %v3207, %v3217
      %v3222 = vmul.f32 %v3211, %v3218
      %v3223 = vmul.f32 %v3208, %v3217
      %v3224 = vmul.f32 %v3212, %v3218
      %v3225 = vmul.f32 %v3209, %v3217
      %v3226 = vmul.f32 %v3213, %v3218
      %v3227 = vpack.c.bf16 %v3221, %v3219
      %v3228 = vpack.c.bf16 %v3222, %v3220
      %v3229 = vpack.c.bf16 %v3225, %v3223
      %v3230 = vpack.c.bf16 %v3226, %v3224
      %v3231 = vld [vmem:[%s5 + $0x30] sm:$0xf]
      %v3232 = vld [vmem:[%s5 + $0x34] sm:$0xf]
      %v3235 = vunpack.c.l.b16 %v3231
      %v3236 = vunpack.c.l.b16 %v3232
      %v3237 = vpack.c.b16 %v3236, %v3235
      %v3239 = vsel %vm2828, %v3237, 0
      %3241 = vmatpush.bf16.msra.mxu0 0
      %3242 = vmatpush.bf16.msra.mxu0 0
      %3243 = vmatpush.bf16.msra.mxu0 0
      %3244 = vmatpush.bf16.msra.mxu0 0
      %3245 = vmatpush.bf16.msra.mxu0 0
      %3246 = vmatpush.bf16.msra.mxu0 0
      %3247 = vmatpush.bf16.msra.mxu0 %v3229
      %3248 = vmatpush.bf16.msra.mxu0 %v3227
      %3249 = vmatmul.bf16.gmra.mxu0 %v3239
      %v3250 = vpop.f32.mrf.mxu0
      %v3251 = vadd.f32 0.0, %v3250
      %v3252 = vpop.f32.mrf.mxu0
      %v3253 = vadd.f32 0.0, %v3252
      %3254 = vdwg.mxu0
      %3255 = vmatpush.bf16.msra.mxu0 0
      %3256 = vmatpush.bf16.msra.mxu0 0
      %3257 = vmatpush.bf16.msra.mxu0 0
      %3258 = vmatpush.bf16.msra.mxu0 0
      %3259 = vmatpush.bf16.msra.mxu0 0
      %3260 = vmatpush.bf16.msra.mxu0 0
      %3261 = vmatpush.bf16.msra.mxu0 %v3230
      %3262 = vmatpush.bf16.msra.mxu0 %v3228
      %3263 = vmatmul.bf16.gmra.mxu0 %v3239
      %v3264 = vpop.f32.mrf.mxu0
      %v3265 = vadd.f32 0.0, %v3264
      %v3266 = vpop.f32.mrf.mxu0
      %v3267 = vadd.f32 0.0, %v3266
      %3268 = vdwg.mxu0
      %v3269 = vadd.f32 %v3185, %v3251
      %v3270 = vadd.f32 %v3186, %v3265
      %v3271 = vadd.f32 %v3187, %v3253
      %v3272 = vadd.f32 %v3188, %v3267
      %3273 = vrot.lane.b32.xlu0 %v2730, 112
      %v3274 = vpop.permute.xlu0 %3273
      %3275 = vrot.lane.b32.xlu0 %v2732, 112
      %v3276 = vpop.permute.xlu0 %3275
      %3277 = vrot.lane.b32.xlu0 %v2734, 112
      %v3278 = vpop.permute.xlu0 %3277
      %3279 = vrot.lane.b32.xlu0 %v2736, 112
      %v3280 = vpop.permute.xlu0 %3279
      %3281 = vrot.lane.b32.xlu0 %v2731, 112
      %v3282 = vpop.permute.xlu0 %3281
      %3283 = vrot.lane.b32.xlu0 %v2733, 112
      %v3284 = vpop.permute.xlu0 %3283
      %3285 = vrot.lane.b32.xlu0 %v2735, 112
      %v3286 = vpop.permute.xlu0 %3285
      %3287 = vrot.lane.b32.xlu0 %v2737, 112
      %v3288 = vpop.permute.xlu0 %3287
      %vm3289 = vcmp.lt.s32.totalorder %v658, 112
      %v3290 = vsel %vm3289, %v3274, %v3282
      %v3291 = vsel %vm3289, %v3276, %v3284
      %v3292 = vsel %vm3289, %v3278, %v3286
      %v3293 = vsel %vm3289, %v3280, %v3288
      %v3294 = vsel %vm3289, %v3282, %v3274
      %v3295 = vsel %vm3289, %v3284, %v3276
      %v3296 = vsel %vm3289, %v3286, %v3278
      %v3297 = vsel %vm3289, %v3288, %v3280
      %v3298 = vperm.slane %v3215, 7
      %v3299 = vperm.slane %v3216, 7
      %v3300 = vmul.f32 %v3290, %v3298
      %v3301 = vmul.f32 %v3294, %v3299
      %v3302 = vmul.f32 %v3291, %v3298
      %v3303 = vmul.f32 %v3295, %v3299
      %v3304 = vmul.f32 %v3292, %v3298
      %v3305 = vmul.f32 %v3296, %v3299
      %v3306 = vmul.f32 %v3293, %v3298
      %v3307 = vmul.f32 %v3297, %v3299
      %v3308 = vpack.c.bf16 %v3302, %v3300
      %v3309 = vpack.c.bf16 %v3303, %v3301
      %v3310 = vpack.c.bf16 %v3306, %v3304
      %v3311 = vpack.c.bf16 %v3307, %v3305
      %v3312 = vld [vmem:[%s5 + $0x38] sm:$0xf]
      %v3313 = vld [vmem:[%s5 + $0x3c] sm:$0xf]
      %v3316 = vunpack.c.l.b16 %v3312
      %v3317 = vunpack.c.l.b16 %v3313
      %v3318 = vpack.c.b16 %v3317, %v3316
      %v3320 = vsel %vm2828, %v3318, 0
      %3322 = vmatpush.bf16.msra.mxu0 0
      %3323 = vmatpush.bf16.msra.mxu0 0
      %3324 = vmatpush.bf16.msra.mxu0 0
      %3325 = vmatpush.bf16.msra.mxu0 0
      %3326 = vmatpush.bf16.msra.mxu0 0
      %3327 = vmatpush.bf16.msra.mxu0 0
      %3328 = vmatpush.bf16.msra.mxu0 %v3310
      %3329 = vmatpush.bf16.msra.mxu0 %v3308
      %3330 = vmatmul.bf16.gmra.mxu0 %v3320
      %v3331 = vpop.f32.mrf.mxu0
      %v3332 = vadd.f32 0.0, %v3331
      %v3333 = vpop.f32.mrf.mxu0
      %v3334 = vadd.f32 0.0, %v3333
      %3335 = vdwg.mxu0
      %3336 = vmatpush.bf16.msra.mxu0 0
      %3337 = vmatpush.bf16.msra.mxu0 0
      %3338 = vmatpush.bf16.msra.mxu0 0
      %3339 = vmatpush.bf16.msra.mxu0 0
      %3340 = vmatpush.bf16.msra.mxu0 0
      %3341 = vmatpush.bf16.msra.mxu0 0
      %3342 = vmatpush.bf16.msra.mxu0 %v3311
      %3343 = vmatpush.bf16.msra.mxu0 %v3309
      %3344 = vmatmul.bf16.gmra.mxu0 %v3320
      %v3345 = vpop.f32.mrf.mxu0
      %v3346 = vadd.f32 0.0, %v3345
      %v3347 = vpop.f32.mrf.mxu0
      %v3348 = vadd.f32 0.0, %v3347
      %3349 = vdwg.mxu0
      %v3350 = vadd.f32 %v3269, %v3332
      %v3351 = vadd.f32 %v3270, %v3346
      %v3352 = vadd.f32 %v3271, %v3334
      %v3353 = vadd.f32 %v3272, %v3348
      %3354 = vrot.lane.b32.xlu0 %v2730, 111
      %v3355 = vpop.permute.xlu0 %3354
      %3356 = vrot.lane.b32.xlu0 %v2732, 111
      %v3357 = vpop.permute.xlu0 %3356
      %3358 = vrot.lane.b32.xlu0 %v2734, 111
      %v3359 = vpop.permute.xlu0 %3358
      %3360 = vrot.lane.b32.xlu0 %v2736, 111
      %v3361 = vpop.permute.xlu0 %3360
      %3362 = vrot.lane.b32.xlu0 %v2731, 111
      %v3363 = vpop.permute.xlu0 %3362
      %3364 = vrot.lane.b32.xlu0 %v2733, 111
      %v3365 = vpop.permute.xlu0 %3364
      %3366 = vrot.lane.b32.xlu0 %v2735, 111
      %v3367 = vpop.permute.xlu0 %3366
      %3368 = vrot.lane.b32.xlu0 %v2737, 111
      %v3369 = vpop.permute.xlu0 %3368
      %vm3370 = vcmp.lt.s32.totalorder %v658, 111
      %v3371 = vsel %vm3370, %v3355, %v3363
      %v3372 = vsel %vm3370, %v3357, %v3365
      %v3373 = vsel %vm3370, %v3359, %v3367
      %v3374 = vsel %vm3370, %v3361, %v3369
      %v3375 = vsel %vm3370, %v3363, %v3355
      %v3376 = vsel %vm3370, %v3365, %v3357
      %v3377 = vsel %vm3370, %v3367, %v3359
      %v3378 = vsel %vm3370, %v3369, %v3361
      %v3379 = vld [vmem:[%s9 + $0x8] sm:$0x11]
      %v3380 = vunpack.c.l.bf16 %v3379
      %v3381 = vunpack.c.h.bf16 %v3379
      %v3382 = vperm.slane %v3380, 0
      %v3383 = vperm.slane %v3381, 0
      %v3384 = vmul.f32 %v3371, %v3382
      %v3385 = vmul.f32 %v3375, %v3383
      %v3386 = vmul.f32 %v3372, %v3382
      %v3387 = vmul.f32 %v3376, %v3383
      %v3388 = vmul.f32 %v3373, %v3382
      %v3389 = vmul.f32 %v3377, %v3383
      %v3390 = vmul.f32 %v3374, %v3382
      %v3391 = vmul.f32 %v3378, %v3383
      %v3392 = vpack.c.bf16 %v3386, %v3384
      %v3393 = vpack.c.bf16 %v3387, %v3385
      %v3394 = vpack.c.bf16 %v3390, %v3388
      %v3395 = vpack.c.bf16 %v3391, %v3389
      %v3396 = vld [vmem:[%s5 + $0x40] sm:$0xf]
      %v3397 = vld [vmem:[%s5 + $0x44] sm:$0xf]
      %v3400 = vunpack.c.l.b16 %v3396
      %v3401 = vunpack.c.l.b16 %v3397
      %v3402 = vpack.c.b16 %v3401, %v3400
      %v3404 = vsel %vm2828, %v3402, 0
      %3406 = vmatpush.bf16.msra.mxu0 0
      %3407 = vmatpush.bf16.msra.mxu0 0
      %3408 = vmatpush.bf16.msra.mxu0 0
      %3409 = vmatpush.bf16.msra.mxu0 0
      %3410 = vmatpush.bf16.msra.mxu0 0
      %3411 = vmatpush.bf16.msra.mxu0 0
      %3412 = vmatpush.bf16.msra.mxu0 %v3394
      %3413 = vmatpush.bf16.msra.mxu0 %v3392
      %3414 = vmatmul.bf16.gmra.mxu0 %v3404
      %v3415 = vpop.f32.mrf.mxu0
      %v3416 = vadd.f32 0.0, %v3415
      %v3417 = vpop.f32.mrf.mxu0
      %v3418 = vadd.f32 0.0, %v3417
      %3419 = vdwg.mxu0
      %3420 = vmatpush.bf16.msra.mxu0 0
      %3421 = vmatpush.bf16.msra.mxu0 0
      %3422 = vmatpush.bf16.msra.mxu0 0
      %3423 = vmatpush.bf16.msra.mxu0 0
      %3424 = vmatpush.bf16.msra.mxu0 0
      %3425 = vmatpush.bf16.msra.mxu0 0
      %3426 = vmatpush.bf16.msra.mxu0 %v3395
      %3427 = vmatpush.bf16.msra.mxu0 %v3393
      %3428 = vmatmul.bf16.gmra.mxu0 %v3404
      %v3429 = vpop.f32.mrf.mxu0
      %v3430 = vadd.f32 0.0, %v3429
      %v3431 = vpop.f32.mrf.mxu0
      %v3432 = vadd.f32 0.0, %v3431
      %3433 = vdwg.mxu0
      %v3434 = vadd.f32 %v3350, %v3416
      %v3435 = vadd.f32 %v3351, %v3430
      %v3436 = vadd.f32 %v3352, %v3418
      %v3437 = vadd.f32 %v3353, %v3432
      %v3438 = vld [vmem:[%s7] sm:$0xff]
      %v3439 = vld [vmem:[%s7 + $0x8] sm:$0xff]
      %3441 = vset.pattern.permute.xlu0 0
      %3442 = vperm.xlu0 %3441, %v3438
      %v3443 = vpop.permute.xlu0 %3442
      %3446 = vset.pattern.permute.xlu0 0
      %3447 = vperm.xlu0 %3446, %v3439
      %v3448 = vpop.permute.xlu0 %3447
      %v3450 = vadd.f32 %v3434, %v3443
      %v3451 = vadd.f32 %v3435, %v3443
      %v3452 = vadd.f32 %v3436, %v3448
      %v3453 = vadd.f32 %v3437, %v3448
      %v3454 = vand.u32 2147483647, %v3450
      %v3455 = vand.u32 2147483647, %v3451
      %v3456 = vand.u32 2147483647, %v3452
      %v3457 = vand.u32 2147483647, %v3453
      %3458 = vst [vmem:[%s419] sm:$0xff] %v3454
      %3459 = vst [vmem:[%s419 + $0x8] sm:$0xff] %v3455
      %3460 = vst [vmem:[%s419 + $0x10] sm:$0xff] %v3456
      %3461 = vst [vmem:[%s419 + $0x18] sm:$0xff] %v3457
      %p3462 = scmp.lt.s32.totalorder %s23, 1
      %s3463 = scalar_select %p3462, %s23, 1
      %s3464 = smul.addr %s3463, 16
      %s3465 = smul.addr %s3464, 8
      %s3466 = scalar_lea.vmem %s10, %s3465
      %p3467 = scmp.lt.s32.totalorder %s23, 1
      %s3468 = scalar_select %p3467, %s23, 1
      %s3469 = smul.addr %s3468, 4
      %s3470 = smul.addr %s3469, 8
      %s3471 = scalar_lea.vmem %s11, %s3470
      // Predicated region
      $region61: #{affinity_net_forward.1} parent=59 // pred_check
        %p3472 = pneg %p261
      $region62: #{affinity_net_forward.1} parent=59 // pred_check_branch
        %3474 = sbr.rel (%p3472) target = $region64
      $region63: #{affinity_net_forward.1} parent=59 // pred_region
        _
      $region64: #{affinity_net_forward.1} parent=59 // pred_fallthru
        _
      // Predicated region
      $region65: #{affinity_net_forward.1} parent=59 // pred_check
        %p3475 = pneg %p287
      $region66: #{affinity_net_forward.1} parent=59 // pred_check_branch
        %3477 = sbr.rel (%p3475) target = $region68
      $region67: #{affinity_net_forward.1} parent=59 // pred_region
        _
      $region68: #{affinity_net_forward.1} parent=59 // pred_fallthru
        _
    $region60: #{affinity_net_forward.1} parent=5 // pred_fallthru
      _
    %p3478 = scmp.le.s32.totalorder 2, %s18
    // Predicated region
    $region69: #{affinity_net_forward.1} parent=5 // pred_check
      %p3479 = pneg %p3478
    $region70: #{affinity_net_forward.1} parent=5 // pred_check_branch
      %3481 = sbr.rel (%p3479) target = $region72
    $region71: #{affinity_net_forward.1} parent=5 // pred_region
      %s3482 = ssub.s32 %s18, 2
      // Predicated region
      $region73: #{affinity_net_forward.1} parent=71 // pred_check
        %p3483 = pneg %p267
      $region74: #{affinity_net_forward.1} parent=71 // pred_check_branch
        %3485 = sbr.rel (%p3483) target = $region76
      $region75: #{affinity_net_forward.1} parent=71 // pred_region
        %p3486 = scmp.lt.s32.totalorder %s24, 1
        %s3487 = scalar_select %p3486, %s24, 1
        %s3488 = smul.addr %s3487, 16
        %s3489 = smul.addr %s3488, 8
        %s3490 = scalar_lea.vmem %s10, %s3489
      $region76: #{affinity_net_forward.1} parent=71 // pred_fallthru
        _
      // Predicated region
      $region77: #{affinity_net_forward.1} parent=71 // pred_check
        %p3491 = pneg %p293
      $region78: #{affinity_net_forward.1} parent=71 // pred_check_branch
        %3493 = sbr.rel (%p3491) target = $region80
      $region79: #{affinity_net_forward.1} parent=71 // pred_region
        %p3494 = scmp.lt.s32.totalorder %s24, 1
        %s3495 = scalar_select %p3494, %s24, 1
        %s3496 = smul.addr %s3495, 4
        %s3497 = smul.addr %s3496, 8
        %s3498 = scalar_lea.vmem %s11, %s3497
      $region80: #{affinity_net_forward.1} parent=71 // pred_fallthru
        _
    $region72: #{affinity_net_forward.1} parent=5 // pred_fallthru
      _
  $region6: #{affinity_net_forward.1} parent=0 // loop_footer
    %s22 = sadd.s32 1, %s18
  $region7: #{affinity_net_forward.1} parent=0 // loop_footer_branch
    %17 = sbr.rel target = $region3
  $region8: #{affinity_net_forward.1} parent=0 // loop_exit
    _

</llo_original>
